<compile_context>
chip_gen: v5e
topology: v5e:2x2
jax: 0.10.0
libtpu: 0.0.40
codegen_flags: <defaults>
</compile_context>

<pallas_src>
import jax
import jax.numpy as jnp
from jax.experimental import pallas as pl
from jax.experimental.pallas import tpu as pltpu


def _leaky_relu(x, slope=0.2):
    return jnp.where(x > 0, x, slope * x)


def discriminator_kernel(lab_ref, rep_ref,
                         w1l_ref, w1r_ref, b1_ref,
                         w2_ref, b2_ref,
                         w3_ref, b3_ref,
                         w4_ref, b4_ref,
                         out_ref):
    """One batch-tile of the discriminator MLP.

    lab_ref : (tb, lab_pad)  bf16  (labels zero-padded to a 128-lane slab)
    rep_ref : (tb, 2048)     bf16
    wN_ref  : (in, out)      bf16 weights
    bN_ref  : (1, out)       f32 biases
    out_ref : (tb, 1)        f32 sigmoid validity
    """
    # Linear(attr_num + 2048 -> 512) as two partial matmuls (split of the
    # concatenated input), f32 accumulation, + LeakyReLU(0.2) in f32.
    h = jnp.dot(rep_ref[...], w1r_ref[...], preferred_element_type=jnp.float32)
    h = h + jnp.dot(lab_ref[...], w1l_ref[...], preferred_element_type=jnp.float32)
    h = _leaky_relu(h + b1_ref[...])

    # Linear(512 -> 512) + Dropout(0.4) + LeakyReLU(0.2)
    h = jnp.dot(h.astype(jnp.bfloat16), w2_ref[...],
                preferred_element_type=jnp.float32) + b2_ref[...]
    # TODO(synk): Dropout(0.4) is identity in eval mode; training-mode dropout
    # (pltpu.prng_seed + prng_random_bits mask) intentionally not applied.
    h = _leaky_relu(h)

    # Linear(512 -> 512) + Dropout(0.4) + LeakyReLU(0.2)
    h = jnp.dot(h.astype(jnp.bfloat16), w3_ref[...],
                preferred_element_type=jnp.float32) + b3_ref[...]
    h = _leaky_relu(h)

    # Linear(512 -> 1) + Sigmoid (numerically stable form, EUP exp)
    logit = jnp.dot(h.astype(jnp.bfloat16), w4_ref[...],
                    preferred_element_type=jnp.float32) + b4_ref[...]
    e = jnp.exp(-jnp.abs(logit))
    sig = jnp.where(logit >= 0.0, 1.0 / (1.0 + e), e / (1.0 + e))
    out_ref[...] = sig.astype(out_ref.dtype)


def prepare_discriminator_params(params, attr_num):
    """One-time parameter prep (do NOT call per forward).

    Splits w1 along the concat axis, zero-pads the label half to a 128-lane
    slab, downcasts weights to bf16 and keeps biases in f32.
    """
    (w1, b1, w2, b2, w3, b3, w4, b4) = params
    lab_pad = ((attr_num + 127) // 128) * 128
    w1_lab = jnp.zeros((lab_pad, w1.shape[1]), w1.dtype).at[:attr_num].set(w1[:attr_num])
    w1_lab = w1_lab.astype(jnp.bfloat16)
    w1_rep = jnp.asarray(w1[attr_num:], jnp.bfloat16)
    w2b = jnp.asarray(w2, jnp.bfloat16)
    w3b = jnp.asarray(w3, jnp.bfloat16)
    w4b = jnp.asarray(w4, jnp.bfloat16)
    b1f, b2f, b3f, b4f = (jnp.asarray(b, jnp.float32).reshape(1, -1)
                          for b in (b1, b2, b3, b4))
    return (w1_lab, w1_rep, b1f, w2b, b2f, w3b, b3f, w4b, b4f)


def _choose_batch_tile(B):
    """Static batch-tile selection (shapes are static under jit)."""
    if B < 256:
        # single tile, rounded to a multiple of 16 (bf16 sublane packing)
        return max(16, ((B + 15) // 16) * 16)
    if B < 1024:
        # guarantee >= 2 grid steps so both v7x TensorCores get work
        half = -(-B // 2)
        return ((half + 15) // 16) * 16
    # large batch: prefer a tile that divides B (no padded HBM copy of rep)
    for cand in (1024, 512, 256):
        if B % cand == 0:
            return cand
    return 512


def discriminator_forward(representation, labels, prepped_params):
    """JAX wrapper: tile the batch and run the Pallas MLP.

    `prepped_params` must come from `prepare_discriminator_params` (bf16,
    pre-split) — no weight casting happens here.
    """
    (w1_lab, w1_rep, b1f, w2b, b2f, w3b, b3f, w4b, b4f) = prepped_params

    B = labels.shape[0]
    labels_flat = labels.reshape(B, -1)
    attr_num = labels_flat.shape[1]
    lab_pad = w1_lab.shape[0]
    rep_dim = representation.shape[1]

    tb = _choose_batch_tile(B)
    padded_B = -(-B // tb) * tb
    num_tiles = padded_B // tb

    lab = labels_flat
    rep = representation
    if padded_B != B:
        pad = padded_B - B
        lab = jnp.pad(lab, ((0, pad), (0, 0)))
        rep = jnp.pad(rep, ((0, pad), (0, 0)))
    if lab_pad != attr_num:
        lab = jnp.pad(lab, ((0, 0), (0, lab_pad - attr_num)))
    # single bf16 cast per activation (pad+convert fuse under XLA)
    lab = lab.astype(jnp.bfloat16)
    rep = rep.astype(jnp.bfloat16)

    batch_spec = lambda d: pl.BlockSpec((tb, d), lambda i: (i, 0))
    # constant-index blocks: DMA'd once, so single-buffer them to save VMEM
    const_spec = lambda shape: pl.BlockSpec(shape, lambda i: (0, 0),
                                            pipeline_mode=pl.Buffered(1))

    out = pl.pallas_call(
        discriminator_kernel,
        out_shape=jax.ShapeDtypeStruct((padded_B, 1), jnp.float32),
        grid=(num_tiles,),
        in_specs=[
            batch_spec(lab_pad),
            batch_spec(rep_dim),
            const_spec(w1_lab.shape), const_spec(w1_rep.shape), const_spec(b1f.shape),
            const_spec(w2b.shape), const_spec(b2f.shape),
            const_spec(w3b.shape), const_spec(b3f.shape),
            const_spec(w4b.shape), const_spec(b4f.shape),
        ],
        out_specs=pl.BlockSpec((tb, 1), lambda i: (i, 0)),
        compiler_params=pltpu.CompilerParams(
            dimension_semantics=(pltpu.PARALLEL,),
            vmem_limit_bytes=48 * 1024 * 1024,
        ),
    )(lab, rep, w1_lab, w1_rep, b1f, w2b, b2f, w3b, b3f, w4b, b4f)
    return out[:B]


def discriminator_reference(representation, labels, params):
    """Pure-JAX f32 reference (eval mode: Dropout == identity)."""
    (w1, b1, w2, b2, w3, b3, w4, b4) = params
    x = jnp.concatenate([labels.reshape(labels.shape[0], -1), representation], axis=-1)
    h = _leaky_relu(x @ w1 + b1)
    h = _leaky_relu(h @ w2 + b2)
    h = _leaky_relu(h @ w3 + b3)
    return jax.nn.sigmoid(h @ w4 + b4)


def init_params(key, attr_num):
    """Deterministic PyTorch-style (Kaiming-uniform-ish) init of the 4 Linears."""
    dims = [(attr_num + 2048, 512), (512, 512), (512, 512), (512, 1)]
    params = []
    for (fan_in, fan_out) in dims:
        key, kw, kb = jax.random.split(key, 3)
        bound = 1.0 / jnp.sqrt(fan_in)
        w = jax.random.uniform(kw, (fan_in, fan_out), jnp.float32, -bound, bound)
        b = jax.random.uniform(kb, (1, fan_out), jnp.float32, -bound, bound)
        params += [w, b]
    return tuple(params)


if __name__ == "__main__":
    ATTR_NUM = 8        # opt.attr_num
    BATCH = 8           # small batch (rounded to a 16-row sublane tile)

    key = jax.random.PRNGKey(0)
    k_rep, k_lab, k_par = jax.random.split(key, 3)

    representation = jax.random.normal(k_rep, (BATCH, 2048), dtype=jnp.float32)
    labels = jax.random.normal(k_lab, (BATCH, ATTR_NUM), dtype=jnp.float32)
    params = init_params(k_par, ATTR_NUM)

    # One-time param prep (split / pad / bf16 cast) — outside the per-call path.
    prepped = jax.tree_util.tree_map(jax.block_until_ready,
                                     prepare_discriminator_params(params, ATTR_NUM))

    fwd = jax.jit(discriminator_forward)
    validity = fwd(representation, labels, prepped)
    validity = jax.block_until_ready(validity)

    # sanity: shape, sigmoid range, and agreement with the f32 reference
    assert validity.shape == (BATCH, 1)
    assert bool(jnp.all((validity >= 0.0) & (validity <= 1.0)))
    ref = discriminator_reference(representation, labels, params)
    assert bool(jnp.all(jnp.abs(validity - ref) < 5e-2)), "mismatch vs f32 reference"

    print("KERNEL_OK")
</pallas_src>

<mosaic_0001>
module attributes {stable_mosaic.version = 11 : i64} {
  func.func @discriminator_kernel(%arg0: i32, %arg1: memref<16x128xbf16, #tpu.memory_space<vmem>>, %arg2: memref<16x2048xbf16, #tpu.memory_space<vmem>>, %arg3: memref<128x512xbf16, #tpu.memory_space<vmem>>, %arg4: memref<2048x512xbf16, #tpu.memory_space<vmem>>, %arg5: memref<1x512xf32, #tpu.memory_space<vmem>>, %arg6: memref<512x512xbf16, #tpu.memory_space<vmem>>, %arg7: memref<1x512xf32, #tpu.memory_space<vmem>>, %arg8: memref<512x512xbf16, #tpu.memory_space<vmem>>, %arg9: memref<1x512xf32, #tpu.memory_space<vmem>>, %arg10: memref<512x1xbf16, #tpu.memory_space<vmem>>, %arg11: memref<1x1xf32, #tpu.memory_space<vmem>>, %arg12: memref<16x1xf32, #tpu.memory_space<vmem>>) attributes {dimension_semantics = [#tpu.dimension_semantics<parallel>], iteration_bounds = array<i64: 1>, scalar_prefetch = 0 : i64, scratch_operands = 0 : i64, tpu.core_type = #tpu.core_type<tc>, window_params = [{transform_indices = @transform_0, window_bounds = array<i64: 16, 128>}, {transform_indices = @transform_1, window_bounds = array<i64: 16, 2048>}, {pipeline_mode = #tpu.pipeline_mode<synchronous>, transform_indices = @transform_2, window_bounds = array<i64: 128, 512>}, {pipeline_mode = #tpu.pipeline_mode<synchronous>, transform_indices = @transform_3, window_bounds = array<i64: 2048, 512>}, {pipeline_mode = #tpu.pipeline_mode<synchronous>, transform_indices = @transform_4, window_bounds = array<i64: 1, 512>}, {pipeline_mode = #tpu.pipeline_mode<synchronous>, transform_indices = @transform_5, window_bounds = array<i64: 512, 512>}, {pipeline_mode = #tpu.pipeline_mode<synchronous>, transform_indices = @transform_6, window_bounds = array<i64: 1, 512>}, {pipeline_mode = #tpu.pipeline_mode<synchronous>, transform_indices = @transform_7, window_bounds = array<i64: 512, 512>}, {pipeline_mode = #tpu.pipeline_mode<synchronous>, transform_indices = @transform_8, window_bounds = array<i64: 1, 512>}, {pipeline_mode = #tpu.pipeline_mode<synchronous>, transform_indices = @transform_9, window_bounds = array<i64: 512, 1>}, {pipeline_mode = #tpu.pipeline_mode<synchronous>, transform_indices = @transform_10, window_bounds = array<i64: 1, 1>}, {transform_indices = @transform_11, window_bounds = array<i64: 16, 1>}]} {
    %c0 = arith.constant 0 : index
    %c0_0 = arith.constant 0 : index
    %0 = vector.load %arg2[%c0, %c0_0] : memref<16x2048xbf16, #tpu.memory_space<vmem>>, vector<16x2048xbf16>
    %c0_1 = arith.constant 0 : index
    %c0_2 = arith.constant 0 : index
    %1 = vector.load %arg4[%c0_1, %c0_2] : memref<2048x512xbf16, #tpu.memory_space<vmem>>, vector<2048x512xbf16>
    %cst = arith.constant dense<0.000000e+00> : vector<16x512xf32>
    %2 = tpu.matmul %0, %1, %cst {dimension_numbers = #tpu.dot_dimension_numbers<[1], [0], [0], [1], [0, 0, 1, 1], [], []>} : vector<16x2048xbf16>, vector<2048x512xbf16>, vector<16x512xf32> -> vector<16x512xf32>
    %c0_3 = arith.constant 0 : index
    %c0_4 = arith.constant 0 : index
    %3 = vector.load %arg1[%c0_3, %c0_4] : memref<16x128xbf16, #tpu.memory_space<vmem>>, vector<16x128xbf16>
    %c0_5 = arith.constant 0 : index
    %c0_6 = arith.constant 0 : index
    %4 = vector.load %arg3[%c0_5, %c0_6] : memref<128x512xbf16, #tpu.memory_space<vmem>>, vector<128x512xbf16>
    %cst_7 = arith.constant dense<0.000000e+00> : vector<16x512xf32>
    %5 = tpu.matmul %3, %4, %cst_7 {dimension_numbers = #tpu.dot_dimension_numbers<[1], [0], [0], [1], [0, 0, 1, 1], [], []>} : vector<16x128xbf16>, vector<128x512xbf16>, vector<16x512xf32> -> vector<16x512xf32>
    %6 = arith.addf %2, %5 : vector<16x512xf32>
    %c0_8 = arith.constant 0 : index
    %c0_9 = arith.constant 0 : index
    %7 = vector.load %arg5[%c0_8, %c0_9] : memref<1x512xf32, #tpu.memory_space<vmem>>, vector<1x512xf32>
    %8 = vector.broadcast %7 : vector<1x512xf32> to vector<16x512xf32>
    %9 = arith.addf %6, %8 : vector<16x512xf32>
    %cst_10 = arith.constant 0.000000e+00 : f32
    %10 = vector.broadcast %cst_10 : f32 to vector<16x512xf32>
    %11 = arith.cmpf ogt, %9, %10 : vector<16x512xf32>
    %cst_11 = arith.constant 2.000000e-01 : f32
    %12 = vector.broadcast %cst_11 : f32 to vector<16x512xf32>
    %13 = arith.mulf %12, %9 : vector<16x512xf32>
    %14 = arith.select %11, %9, %13 : vector<16x512xi1>, vector<16x512xf32>
    %15 = arith.truncf %14 : vector<16x512xf32> to vector<16x512xbf16>
    %c0_12 = arith.constant 0 : index
    %c0_13 = arith.constant 0 : index
    %16 = vector.load %arg6[%c0_12, %c0_13] : memref<512x512xbf16, #tpu.memory_space<vmem>>, vector<512x512xbf16>
    %cst_14 = arith.constant dense<0.000000e+00> : vector<16x512xf32>
    %17 = tpu.matmul %15, %16, %cst_14 {dimension_numbers = #tpu.dot_dimension_numbers<[1], [0], [0], [1], [0, 0, 1, 1], [], []>} : vector<16x512xbf16>, vector<512x512xbf16>, vector<16x512xf32> -> vector<16x512xf32>
    %c0_15 = arith.constant 0 : index
    %c0_16 = arith.constant 0 : index
    %18 = vector.load %arg7[%c0_15, %c0_16] : memref<1x512xf32, #tpu.memory_space<vmem>>, vector<1x512xf32>
    %19 = vector.broadcast %18 : vector<1x512xf32> to vector<16x512xf32>
    %20 = arith.addf %17, %19 : vector<16x512xf32>
    %cst_17 = arith.constant 0.000000e+00 : f32
    %21 = vector.broadcast %cst_17 : f32 to vector<16x512xf32>
    %22 = arith.cmpf ogt, %20, %21 : vector<16x512xf32>
    %cst_18 = arith.constant 2.000000e-01 : f32
    %23 = vector.broadcast %cst_18 : f32 to vector<16x512xf32>
    %24 = arith.mulf %23, %20 : vector<16x512xf32>
    %25 = arith.select %22, %20, %24 : vector<16x512xi1>, vector<16x512xf32>
    %26 = arith.truncf %25 : vector<16x512xf32> to vector<16x512xbf16>
    %c0_19 = arith.constant 0 : index
    %c0_20 = arith.constant 0 : index
    %27 = vector.load %arg8[%c0_19, %c0_20] : memref<512x512xbf16, #tpu.memory_space<vmem>>, vector<512x512xbf16>
    %cst_21 = arith.constant dense<0.000000e+00> : vector<16x512xf32>
    %28 = tpu.matmul %26, %27, %cst_21 {dimension_numbers = #tpu.dot_dimension_numbers<[1], [0], [0], [1], [0, 0, 1, 1], [], []>} : vector<16x512xbf16>, vector<512x512xbf16>, vector<16x512xf32> -> vector<16x512xf32>
    %c0_22 = arith.constant 0 : index
    %c0_23 = arith.constant 0 : index
    %29 = vector.load %arg9[%c0_22, %c0_23] : memref<1x512xf32, #tpu.memory_space<vmem>>, vector<1x512xf32>
    %30 = vector.broadcast %29 : vector<1x512xf32> to vector<16x512xf32>
    %31 = arith.addf %28, %30 : vector<16x512xf32>
    %cst_24 = arith.constant 0.000000e+00 : f32
    %32 = vector.broadcast %cst_24 : f32 to vector<16x512xf32>
    %33 = arith.cmpf ogt, %31, %32 : vector<16x512xf32>
    %cst_25 = arith.constant 2.000000e-01 : f32
    %34 = vector.broadcast %cst_25 : f32 to vector<16x512xf32>
    %35 = arith.mulf %34, %31 : vector<16x512xf32>
    %36 = arith.select %33, %31, %35 : vector<16x512xi1>, vector<16x512xf32>
    %37 = arith.truncf %36 : vector<16x512xf32> to vector<16x512xbf16>
    %c0_26 = arith.constant 0 : index
    %c0_27 = arith.constant 0 : index
    %38 = vector.load %arg10[%c0_26, %c0_27] : memref<512x1xbf16, #tpu.memory_space<vmem>>, vector<512x1xbf16>
    %cst_28 = arith.constant dense<0.000000e+00> : vector<16x1xf32>
    %39 = tpu.matmul %37, %38, %cst_28 {dimension_numbers = #tpu.dot_dimension_numbers<[1], [0], [0], [1], [0, 0, 1, 1], [], []>} : vector<16x512xbf16>, vector<512x1xbf16>, vector<16x1xf32> -> vector<16x1xf32>
    %c0_29 = arith.constant 0 : index
    %c0_30 = arith.constant 0 : index
    %40 = vector.load %arg11[%c0_29, %c0_30] : memref<1x1xf32, #tpu.memory_space<vmem>>, vector<1x1xf32>
    %41 = vector.broadcast %40 : vector<1x1xf32> to vector<16x1xf32>
    %42 = arith.addf %39, %41 : vector<16x1xf32>
    %43 = math.absf %42 : vector<16x1xf32>
    %cst_31 = arith.constant 0.000000e+00 : f32
    %44 = vector.broadcast %cst_31 : f32 to vector<16x1xf32>
    %45 = arith.subf %44, %43 : vector<16x1xf32>
    %46 = math.exp %45 : vector<16x1xf32>
    %cst_32 = arith.constant 0.000000e+00 : f32
    %47 = vector.broadcast %cst_32 : f32 to vector<16x1xf32>
    %48 = arith.cmpf oge, %42, %47 : vector<16x1xf32>
    %cst_33 = arith.constant 1.000000e+00 : f32
    %49 = vector.broadcast %cst_33 : f32 to vector<16x1xf32>
    %50 = arith.addf %49, %46 : vector<16x1xf32>
    %cst_34 = arith.constant 1.000000e+00 : f32
    %51 = vector.broadcast %cst_34 : f32 to vector<16x1xf32>
    %52 = arith.divf %51, %50 : vector<16x1xf32>
    %cst_35 = arith.constant 1.000000e+00 : f32
    %53 = vector.broadcast %cst_35 : f32 to vector<16x1xf32>
    %54 = arith.addf %53, %46 : vector<16x1xf32>
    %55 = arith.divf %46, %54 : vector<16x1xf32>
    %56 = arith.select %48, %52, %55 : vector<16x1xi1>, vector<16x1xf32>
    %c0_36 = arith.constant 0 : index
    %c0_37 = arith.constant 0 : index
    %57 = vector.load %arg12[%c0_36, %c0_37] : memref<16x1xf32, #tpu.memory_space<vmem>>, vector<16x1xf32>
    tpu.vector_store %arg12[%c0_36, %c0_37], %56 {strides = array<i32>} : memref<16x1xf32, #tpu.memory_space<vmem>>, vector<16x1xf32>,
    return
  }
  func.func @transform_0(%arg0: i32) -> (i32, i32) {
    %c0_i32 = arith.constant 0 : i32
    %c0_i32_0 = arith.constant 0 : i32
    return %arg0, %c0_i32 : i32, i32
  }
  func.func @transform_1(%arg0: i32) -> (i32, i32) {
    %c0_i32 = arith.constant 0 : i32
    %c0_i32_0 = arith.constant 0 : i32
    return %arg0, %c0_i32 : i32, i32
  }
  func.func @transform_2(%arg0: i32) -> (i32, i32) {
    %c0_i32 = arith.constant 0 : i32
    %c0_i32_0 = arith.constant 0 : i32
    %c0_i32_1 = arith.constant 0 : i32
    return %c0_i32, %c0_i32_0 : i32, i32
  }
  func.func @transform_3(%arg0: i32) -> (i32, i32) {
    %c0_i32 = arith.constant 0 : i32
    %c0_i32_0 = arith.constant 0 : i32
    %c0_i32_1 = arith.constant 0 : i32
    return %c0_i32, %c0_i32_0 : i32, i32
  }
  func.func @transform_4(%arg0: i32) -> (i32, i32) {
    %c0_i32 = arith.constant 0 : i32
    %c0_i32_0 = arith.constant 0 : i32
    %c0_i32_1 = arith.constant 0 : i32
    return %c0_i32, %c0_i32_0 : i32, i32
  }
  func.func @transform_5(%arg0: i32) -> (i32, i32) {
    %c0_i32 = arith.constant 0 : i32
    %c0_i32_0 = arith.constant 0 : i32
    %c0_i32_1 = arith.constant 0 : i32
    return %c0_i32, %c0_i32_0 : i32, i32
  }
  func.func @transform_6(%arg0: i32) -> (i32, i32) {
    %c0_i32 = arith.constant 0 : i32
    %c0_i32_0 = arith.constant 0 : i32
    %c0_i32_1 = arith.constant 0 : i32
    return %c0_i32, %c0_i32_0 : i32, i32
  }
  func.func @transform_7(%arg0: i32) -> (i32, i32) {
    %c0_i32 = arith.constant 0 : i32
    %c0_i32_0 = arith.constant 0 : i32
    %c0_i32_1 = arith.constant 0 : i32
    return %c0_i32, %c0_i32_0 : i32, i32
  }
  func.func @transform_8(%arg0: i32) -> (i32, i32) {
    %c0_i32 = arith.constant 0 : i32
    %c0_i32_0 = arith.constant 0 : i32
    %c0_i32_1 = arith.constant 0 : i32
    return %c0_i32, %c0_i32_0 : i32, i32
  }
  func.func @transform_9(%arg0: i32) -> (i32, i32) {
    %c0_i32 = arith.constant 0 : i32
    %c0_i32_0 = arith.constant 0 : i32
    %c0_i32_1 = arith.constant 0 : i32
    return %c0_i32, %c0_i32_0 : i32, i32
  }
  func.func @transform_10(%arg0: i32) -> (i32, i32) {
    %c0_i32 = arith.constant 0 : i32
    %c0_i32_0 = arith.constant 0 : i32
    %c0_i32_1 = arith.constant 0 : i32
    return %c0_i32, %c0_i32_0 : i32, i32
  }
  func.func @transform_11(%arg0: i32) -> (i32, i32) {
    %c0_i32 = arith.constant 0 : i32
    %c0_i32_0 = arith.constant 0 : i32
    return %arg0, %c0_i32 : i32, i32
  }
}

</mosaic_0001>

<llo_original>
// kernel: discriminator_forward.1
$region0: #{discriminator_forward.1}
  #allocation0 [shape = 'u32[]', space=smem, size = 0x4, offset = 0x4, fixed_abs, tag = 'smem constant byte address 0x4 - core index']
  #allocation1 [shape = 'u32[72,128]{1,0:T(1,128)}', space=vmem, size = 0x9000, scoped, tag = 'internal scratch']
  #allocation2 [shape = 'f32[1,1]{1,0:T(1,128)S(1)}', space=vmem, size = 0x200, scoped, tag = 'scoped memory for discriminator_forward.1']
  %s0 = inlined_call_operand.vmem [shape: bf16[16,128], index: 0, kind: input, shape index: {}]
  %s1 = inlined_call_operand.vmem [shape: bf16[16,2048], index: 1, kind: input, shape index: {}]
  %s2 = inlined_call_operand.hbm [shape: bf16[128,512], index: 2, kind: input, shape index: {}]
  %s3 = inlined_call_operand.hbm [shape: bf16[2048,512], index: 3, kind: input, shape index: {}]
  %s4 = inlined_call_operand.hbm [shape: f32[1,512], index: 4, kind: input, shape index: {}]
  %s5 = inlined_call_operand.hbm [shape: bf16[512,512], index: 5, kind: input, shape index: {}]
  %s6 = inlined_call_operand.hbm [shape: f32[1,512], index: 6, kind: input, shape index: {}]
  %s7 = inlined_call_operand.hbm [shape: bf16[512,512], index: 7, kind: input, shape index: {}]
  %s8 = inlined_call_operand.hbm [shape: f32[1,512], index: 8, kind: input, shape index: {}]
  %s9 = inlined_call_operand.vmem [shape: bf16[512,1], index: 9, kind: input, shape index: {}]
  %s10 = inlined_call_operand.<no memory space> [shape: f32[1,1], index: 10, kind: input, shape index: {}]
  %s11 = inlined_call_operand.vmem [shape: f32[16,1], index: 11, kind: output, shape index: {}]
  %s12 = sld [smem:[#allocation0]]
  $region82: #{discriminator_forward.1} parent=0
    _
  %s14 = ssub.s32 1, %s12
  %s15 = scalar_select 0, %s14, %s12
  %v16 = vstv %s10
  %17 = vst [vmem:[#allocation2] sm:$0x1] %v16
  $region1: #{discriminator_forward.1} parent=0
    #allocation3 [shape = 'u8[131072]{0}', space=vmem, size = 0x20000, scoped, tag = 'input window, operand 2, single buffered']
    #allocation4 [shape = 's32[1]{0}', space=sflag, size = 0x4, scoped, tag = 'scoped memory for discriminator_forward.1']
    #allocation5 [shape = 'u8[2097152]{0}', space=vmem, size = 0x200000, scoped, tag = 'input window, operand 3, single buffered']
    #allocation6 [shape = 's32[1]{0}', space=sflag, size = 0x4, scoped, tag = 'scoped memory for discriminator_forward.1']
    #allocation7 [shape = 'u8[2048]{0}', space=vmem, size = 0x800, scoped, tag = 'input window, operand 4, single buffered']
    #allocation8 [shape = 'u8[524288]{0}', space=vmem, size = 0x80000, scoped, tag = 'input window, operand 5, single buffered']
    #allocation9 [shape = 's32[1]{0}', space=sflag, size = 0x4, scoped, tag = 'scoped memory for discriminator_forward.1']
    #allocation10 [shape = 'u8[2048]{0}', space=vmem, size = 0x800, scoped, tag = 'input window, operand 6, single buffered']
    #allocation11 [shape = 'u8[524288]{0}', space=vmem, size = 0x80000, scoped, tag = 'input window, operand 7, single buffered']
    #allocation12 [shape = 's32[1]{0}', space=sflag, size = 0x4, scoped, tag = 'scoped memory for discriminator_forward.1']
    #allocation13 [shape = 'u8[2048]{0}', space=vmem, size = 0x800, scoped, tag = 'input window, operand 8, single buffered']
    %18 = vsyncpa [#allocation4], 0
    %19 = vsyncpa [#allocation6], 0
    %20 = vsyncpa [#allocation9], 0
    %21 = vsyncpa [#allocation12], 0
    // Predicated region
    $region2: #{discriminator_forward.1} parent=1 // pred_check
      _
    $region3: #{discriminator_forward.1} parent=1 // pred_check_branch
      %23 = sbr.rel (0) target = $region5
    $region4: #{discriminator_forward.1} parent=1 // pred_region
      _
    $region5: #{discriminator_forward.1} parent=1 // pred_fallthru
      _
    // Predicated region
    $region6: #{discriminator_forward.1} parent=1 // pred_check
      _
    $region7: #{discriminator_forward.1} parent=1 // pred_check_branch
      %25 = sbr.rel (0) target = $region9
    $region8: #{discriminator_forward.1} parent=1 // pred_region
      _
    $region9: #{discriminator_forward.1} parent=1 // pred_fallthru
      _
    // Predicated region
    $region10: #{discriminator_forward.1} parent=1 // pred_check
      _
    $region11: #{discriminator_forward.1} parent=1 // pred_check_branch
      %27 = sbr.rel (0) target = $region13
    $region12: #{discriminator_forward.1} parent=1 // pred_region
      %29 = vsyncadd [#allocation4], 0
      %s30 = sshll.u32 %s2, 4
      %s31 = int_to_ptr.hbm [resolvable:$true] %s30
      %s32 = sshll.u32 [#allocation3], 4
      %s33 = int_to_ptr.vmem [resolvable:$true] %s32
      %38 = dma.hbm_to_vmem [thread:$0]  %s31, 4096, %s33, [#allocation4], 256, 256, 16
    $region13: #{discriminator_forward.1} parent=1 // pred_fallthru
      _
    // Predicated region
    $region14: #{discriminator_forward.1} parent=1 // pred_check
      _
    $region15: #{discriminator_forward.1} parent=1 // pred_check_branch
      %40 = sbr.rel (0) target = $region17
    $region16: #{discriminator_forward.1} parent=1 // pred_region
      %42 = vsyncadd [#allocation6], 0
      %s43 = sshll.u32 %s3, 4
      %s44 = int_to_ptr.hbm [resolvable:$true] %s43
      %s45 = sshll.u32 [#allocation5], 4
      %s46 = int_to_ptr.vmem [resolvable:$true] %s45
      %51 = dma.hbm_to_vmem [thread:$0]  %s44, 65536, %s46, [#allocation6], 256, 256, 16
    $region17: #{discriminator_forward.1} parent=1 // pred_fallthru
      _
    // Predicated region
    $region18: #{discriminator_forward.1} parent=1 // pred_check
      _
    $region19: #{discriminator_forward.1} parent=1 // pred_check_branch
      %53 = sbr.rel (0) target = $region21
    $region20: #{discriminator_forward.1} parent=1 // pred_region
      %55 = vsyncadd [#allocation6], 0
      %s57 = sshll.u32 %s4, 4
      %s58 = int_to_ptr.hbm [resolvable:$true] %s57
      %s59 = sshll.u32 [#allocation7], 4
      %s60 = int_to_ptr.vmem [resolvable:$true] %s59
      %62 = dma.hbm_to_vmem [thread:$0]  %s58, 64, %s60, [#allocation6]
    $region21: #{discriminator_forward.1} parent=1 // pred_fallthru
      _
    // Predicated region
    $region22: #{discriminator_forward.1} parent=1 // pred_check
      _
    $region23: #{discriminator_forward.1} parent=1 // pred_check_branch
      %64 = sbr.rel (0) target = $region25
    $region24: #{discriminator_forward.1} parent=1 // pred_region
      %66 = vsyncadd [#allocation9], 0
      %s67 = sshll.u32 %s5, 4
      %s68 = int_to_ptr.hbm [resolvable:$true] %s67
      %s69 = sshll.u32 [#allocation8], 4
      %s70 = int_to_ptr.vmem [resolvable:$true] %s69
      %75 = dma.hbm_to_vmem [thread:$0]  %s68, 16384, %s70, [#allocation9], 256, 256, 16
    $region25: #{discriminator_forward.1} parent=1 // pred_fallthru
      _
    // Predicated region
    $region26: #{discriminator_forward.1} parent=1 // pred_check
      _
    $region27: #{discriminator_forward.1} parent=1 // pred_check_branch
      %77 = sbr.rel (0) target = $region29
    $region28: #{discriminator_forward.1} parent=1 // pred_region
      %79 = vsyncadd [#allocation9], 0
      %s81 = sshll.u32 %s6, 4
      %s82 = int_to_ptr.hbm [resolvable:$true] %s81
      %s83 = sshll.u32 [#allocation10], 4
      %s84 = int_to_ptr.vmem [resolvable:$true] %s83
      %86 = dma.hbm_to_vmem [thread:$0]  %s82, 64, %s84, [#allocation9]
    $region29: #{discriminator_forward.1} parent=1 // pred_fallthru
      _
    // Predicated region
    $region30: #{discriminator_forward.1} parent=1 // pred_check
      _
    $region31: #{discriminator_forward.1} parent=1 // pred_check_branch
      %88 = sbr.rel (0) target = $region33
    $region32: #{discriminator_forward.1} parent=1 // pred_region
      %90 = vsyncadd [#allocation12], 0
      %s91 = sshll.u32 %s7, 4
      %s92 = int_to_ptr.hbm [resolvable:$true] %s91
      %s93 = sshll.u32 [#allocation11], 4
      %s94 = int_to_ptr.vmem [resolvable:$true] %s93
      %99 = dma.hbm_to_vmem [thread:$0]  %s92, 16384, %s94, [#allocation12], 256, 256, 16
    $region33: #{discriminator_forward.1} parent=1 // pred_fallthru
      _
    // Predicated region
    $region34: #{discriminator_forward.1} parent=1 // pred_check
      _
    $region35: #{discriminator_forward.1} parent=1 // pred_check_branch
      %101 = sbr.rel (0) target = $region37
    $region36: #{discriminator_forward.1} parent=1 // pred_region
      %103 = vsyncadd [#allocation12], 0
      %s105 = sshll.u32 %s8, 4
      %s106 = int_to_ptr.hbm [resolvable:$true] %s105
      %s107 = sshll.u32 [#allocation13], 4
      %s108 = int_to_ptr.vmem [resolvable:$true] %s107
      %110 = dma.hbm_to_vmem [thread:$0]  %s106, 64, %s108, [#allocation12]
    $region37: #{discriminator_forward.1} parent=1 // pred_fallthru
      _
    // Predicated region
    $region38: #{discriminator_forward.1} parent=1 // pred_check
      _
    $region39: #{discriminator_forward.1} parent=1 // pred_check_branch
      %112 = sbr.rel (0) target = $region41
    $region40: #{discriminator_forward.1} parent=1 // pred_region
      _
    $region41: #{discriminator_forward.1} parent=1 // pred_fallthru
      _
    // Predicated region
    $region42: #{discriminator_forward.1} parent=1 // pred_check
      _
    $region43: #{discriminator_forward.1} parent=1 // pred_check_branch
      %114 = sbr.rel (0) target = $region45
    $region44: #{discriminator_forward.1} parent=1 // pred_region
      _
    $region45: #{discriminator_forward.1} parent=1 // pred_fallthru
      _
    // Predicated region
    $region46: #{discriminator_forward.1} parent=1 // pred_check
      _
    $region47: #{discriminator_forward.1} parent=1 // pred_check_branch
      %116 = sbr.rel (0) target = $region49
    $region48: #{discriminator_forward.1} parent=1 // pred_region
      %118 = dma.done [#allocation4], 4096
    $region49: #{discriminator_forward.1} parent=1 // pred_fallthru
      _
    // Predicated region
    $region50: #{discriminator_forward.1} parent=1 // pred_check
      _
    $region51: #{discriminator_forward.1} parent=1 // pred_check_branch
      %120 = sbr.rel (0) target = $region53
    $region52: #{discriminator_forward.1} parent=1 // pred_region
      %122 = dma.done [#allocation6], 65536
    $region53: #{discriminator_forward.1} parent=1 // pred_fallthru
      _
    // Predicated region
    $region54: #{discriminator_forward.1} parent=1 // pred_check
      _
    $region55: #{discriminator_forward.1} parent=1 // pred_check_branch
      %124 = sbr.rel (0) target = $region57
    $region56: #{discriminator_forward.1} parent=1 // pred_region
      %126 = dma.done [#allocation6], 64
    $region57: #{discriminator_forward.1} parent=1 // pred_fallthru
      _
    // Predicated region
    $region58: #{discriminator_forward.1} parent=1 // pred_check
      _
    $region59: #{discriminator_forward.1} parent=1 // pred_check_branch
      %128 = sbr.rel (0) target = $region61
    $region60: #{discriminator_forward.1} parent=1 // pred_region
      %130 = dma.done [#allocation9], 16384
    $region61: #{discriminator_forward.1} parent=1 // pred_fallthru
      _
    // Predicated region
    $region62: #{discriminator_forward.1} parent=1 // pred_check
      _
    $region63: #{discriminator_forward.1} parent=1 // pred_check_branch
      %132 = sbr.rel (0) target = $region65
    $region64: #{discriminator_forward.1} parent=1 // pred_region
      %134 = dma.done [#allocation9], 64
    $region65: #{discriminator_forward.1} parent=1 // pred_fallthru
      _
    // Predicated region
    $region66: #{discriminator_forward.1} parent=1 // pred_check
      _
    $region67: #{discriminator_forward.1} parent=1 // pred_check_branch
      %136 = sbr.rel (0) target = $region69
    $region68: #{discriminator_forward.1} parent=1 // pred_region
      %138 = dma.done [#allocation12], 16384
    $region69: #{discriminator_forward.1} parent=1 // pred_fallthru
      _
    // Predicated region
    $region70: #{discriminator_forward.1} parent=1 // pred_check
      _
    $region71: #{discriminator_forward.1} parent=1 // pred_check_branch
      %140 = sbr.rel (0) target = $region73
    $region72: #{discriminator_forward.1} parent=1 // pred_region
      %142 = dma.done [#allocation12], 64
    $region73: #{discriminator_forward.1} parent=1 // pred_fallthru
      _
    %v143 = vld [vmem:[%s1] sm:$0xff]
    %v144 = vld [vmem:[%s1 + $0x8] sm:$0xff]
    %v145 = vld [vmem:[%s1 + $0x10] sm:$0xff]
    %v146 = vld [vmem:[%s1 + $0x18] sm:$0xff]
    %v147 = vld [vmem:[%s1 + $0x20] sm:$0xff]
    %v148 = vld [vmem:[%s1 + $0x28] sm:$0xff]
    %v149 = vld [vmem:[%s1 + $0x30] sm:$0xff]
    %v150 = vld [vmem:[%s1 + $0x38] sm:$0xff]
    %v151 = vld [vmem:[%s1 + $0x40] sm:$0xff]
    %v152 = vld [vmem:[%s1 + $0x48] sm:$0xff]
    %v153 = vld [vmem:[%s1 + $0x50] sm:$0xff]
    %v154 = vld [vmem:[%s1 + $0x58] sm:$0xff]
    %v155 = vld [vmem:[%s1 + $0x60] sm:$0xff]
    %v156 = vld [vmem:[%s1 + $0x68] sm:$0xff]
    %v157 = vld [vmem:[%s1 + $0x70] sm:$0xff]
    %v158 = vld [vmem:[%s1 + $0x78] sm:$0xff]
    %v159 = vld [vmem:[#allocation5] sm:$0xff]
    %v160 = vld [vmem:[#allocation5 + $0x8] sm:$0xff]
    %v161 = vld [vmem:[#allocation5 + $0x10] sm:$0xff]
    %v162 = vld [vmem:[#allocation5 + $0x18] sm:$0xff]
    %v163 = vld [vmem:[#allocation5 + $0x20] sm:$0xff]
    %v164 = vld [vmem:[#allocation5 + $0x28] sm:$0xff]
    %v165 = vld [vmem:[#allocation5 + $0x30] sm:$0xff]
    %v166 = vld [vmem:[#allocation5 + $0x38] sm:$0xff]
    %v167 = vld [vmem:[#allocation5 + $0x40] sm:$0xff]
    %v168 = vld [vmem:[#allocation5 + $0x48] sm:$0xff]
    %v169 = vld [vmem:[#allocation5 + $0x50] sm:$0xff]
    %v170 = vld [vmem:[#allocation5 + $0x58] sm:$0xff]
    %v171 = vld [vmem:[#allocation5 + $0x60] sm:$0xff]
    %v172 = vld [vmem:[#allocation5 + $0x68] sm:$0xff]
    %v173 = vld [vmem:[#allocation5 + $0x70] sm:$0xff]
    %v174 = vld [vmem:[#allocation5 + $0x78] sm:$0xff]
    %v175 = vld [vmem:[#allocation5 + $0x80] sm:$0xff]
    %v176 = vld [vmem:[#allocation5 + $0x88] sm:$0xff]
    %v177 = vld [vmem:[#allocation5 + $0x90] sm:$0xff]
    %v178 = vld [vmem:[#allocation5 + $0x98] sm:$0xff]
    %v179 = vld [vmem:[#allocation5 + $0xa0] sm:$0xff]
    %v180 = vld [vmem:[#allocation5 + $0xa8] sm:$0xff]
    %v181 = vld [vmem:[#allocation5 + $0xb0] sm:$0xff]
    %v182 = vld [vmem:[#allocation5 + $0xb8] sm:$0xff]
    %v183 = vld [vmem:[#allocation5 + $0xc0] sm:$0xff]
    %v184 = vld [vmem:[#allocation5 + $0xc8] sm:$0xff]
    %v185 = vld [vmem:[#allocation5 + $0xd0] sm:$0xff]
    %v186 = vld [vmem:[#allocation5 + $0xd8] sm:$0xff]
    %v187 = vld [vmem:[#allocation5 + $0xe0] sm:$0xff]
    %v188 = vld [vmem:[#allocation5 + $0xe8] sm:$0xff]
    %v189 = vld [vmem:[#allocation5 + $0xf0] sm:$0xff]
    %v190 = vld [vmem:[#allocation5 + $0xf8] sm:$0xff]
    %v191 = vld [vmem:[#allocation5 + $0x100] sm:$0xff]
    %v192 = vld [vmem:[#allocation5 + $0x108] sm:$0xff]
    %v193 = vld [vmem:[#allocation5 + $0x110] sm:$0xff]
    %v194 = vld [vmem:[#allocation5 + $0x118] sm:$0xff]
    %v195 = vld [vmem:[#allocation5 + $0x120] sm:$0xff]
    %v196 = vld [vmem:[#allocation5 + $0x128] sm:$0xff]
    %v197 = vld [vmem:[#allocation5 + $0x130] sm:$0xff]
    %v198 = vld [vmem:[#allocation5 + $0x138] sm:$0xff]
    %v199 = vld [vmem:[#allocation5 + $0x140] sm:$0xff]
    %v200 = vld [vmem:[#allocation5 + $0x148] sm:$0xff]
    %v201 = vld [vmem:[#allocation5 + $0x150] sm:$0xff]
    %v202 = vld [vmem:[#allocation5 + $0x158] sm:$0xff]
    %v203 = vld [vmem:[#allocation5 + $0x160] sm:$0xff]
    %v204 = vld [vmem:[#allocation5 + $0x168] sm:$0xff]
    %v205 = vld [vmem:[#allocation5 + $0x170] sm:$0xff]
    %v206 = vld [vmem:[#allocation5 + $0x178] sm:$0xff]
    %v207 = vld [vmem:[#allocation5 + $0x180] sm:$0xff]
    %v208 = vld [vmem:[#allocation5 + $0x188] sm:$0xff]
    %v209 = vld [vmem:[#allocation5 + $0x190] sm:$0xff]
    %v210 = vld [vmem:[#allocation5 + $0x198] sm:$0xff]
    %v211 = vld [vmem:[#allocation5 + $0x1a0] sm:$0xff]
    %v212 = vld [vmem:[#allocation5 + $0x1a8] sm:$0xff]
    %v213 = vld [vmem:[#allocation5 + $0x1b0] sm:$0xff]
    %v214 = vld [vmem:[#allocation5 + $0x1b8] sm:$0xff]
    %v215 = vld [vmem:[#allocation5 + $0x1c0] sm:$0xff]
    %v216 = vld [vmem:[#allocation5 + $0x1c8] sm:$0xff]
    %v217 = vld [vmem:[#allocation5 + $0x1d0] sm:$0xff]
    %v218 = vld [vmem:[#allocation5 + $0x1d8] sm:$0xff]
    %v219 = vld [vmem:[#allocation5 + $0x1e0] sm:$0xff]
    %v220 = vld [vmem:[#allocation5 + $0x1e8] sm:$0xff]
    %v221 = vld [vmem:[#allocation5 + $0x1f0] sm:$0xff]
    %v222 = vld [vmem:[#allocation5 + $0x1f8] sm:$0xff]
    %v223 = vld [vmem:[#allocation5 + $0x200] sm:$0xff]
    %v224 = vld [vmem:[#allocation5 + $0x208] sm:$0xff]
    %v225 = vld [vmem:[#allocation5 + $0x210] sm:$0xff]
    %v226 = vld [vmem:[#allocation5 + $0x218] sm:$0xff]
    %v227 = vld [vmem:[#allocation5 + $0x220] sm:$0xff]
    %v228 = vld [vmem:[#allocation5 + $0x228] sm:$0xff]
    %v229 = vld [vmem:[#allocation5 + $0x230] sm:$0xff]
    %v230 = vld [vmem:[#allocation5 + $0x238] sm:$0xff]
    %v231 = vld [vmem:[#allocation5 + $0x240] sm:$0xff]
    %v232 = vld [vmem:[#allocation5 + $0x248] sm:$0xff]
    %v233 = vld [vmem:[#allocation5 + $0x250] sm:$0xff]
    %v234 = vld [vmem:[#allocation5 + $0x258] sm:$0xff]
    %v235 = vld [vmem:[#allocation5 + $0x260] sm:$0xff]
    %v236 = vld [vmem:[#allocation5 + $0x268] sm:$0xff]
    %v237 = vld [vmem:[#allocation5 + $0x270] sm:$0xff]
    %v238 = vld [vmem:[#allocation5 + $0x278] sm:$0xff]
    %v239 = vld [vmem:[#allocation5 + $0x280] sm:$0xff]
    %v240 = vld [vmem:[#allocation5 + $0x288] sm:$0xff]
    %v241 = vld [vmem:[#allocation5 + $0x290] sm:$0xff]
    %v242 = vld [vmem:[#allocation5 + $0x298] sm:$0xff]
    %v243 = vld [vmem:[#allocation5 + $0x2a0] sm:$0xff]
    %v244 = vld [vmem:[#allocation5 + $0x2a8] sm:$0xff]
    %v245 = vld [vmem:[#allocation5 + $0x2b0] sm:$0xff]
    %v246 = vld [vmem:[#allocation5 + $0x2b8] sm:$0xff]
    %v247 = vld [vmem:[#allocation5 + $0x2c0] sm:$0xff]
    %v248 = vld [vmem:[#allocation5 + $0x2c8] sm:$0xff]
    %v249 = vld [vmem:[#allocation5 + $0x2d0] sm:$0xff]
    %v250 = vld [vmem:[#allocation5 + $0x2d8] sm:$0xff]
    %v251 = vld [vmem:[#allocation5 + $0x2e0] sm:$0xff]
    %v252 = vld [vmem:[#allocation5 + $0x2e8] sm:$0xff]
    %v253 = vld [vmem:[#allocation5 + $0x2f0] sm:$0xff]
    %v254 = vld [vmem:[#allocation5 + $0x2f8] sm:$0xff]
    %v255 = vld [vmem:[#allocation5 + $0x300] sm:$0xff]
    %v256 = vld [vmem:[#allocation5 + $0x308] sm:$0xff]
    %v257 = vld [vmem:[#allocation5 + $0x310] sm:$0xff]
    %v258 = vld [vmem:[#allocation5 + $0x318] sm:$0xff]
    %v259 = vld [vmem:[#allocation5 + $0x320] sm:$0xff]
    %v260 = vld [vmem:[#allocation5 + $0x328] sm:$0xff]
    %v261 = vld [vmem:[#allocation5 + $0x330] sm:$0xff]
    %v262 = vld [vmem:[#allocation5 + $0x338] sm:$0xff]
    %v263 = vld [vmem:[#allocation5 + $0x340] sm:$0xff]
    %v264 = vld [vmem:[#allocation5 + $0x348] sm:$0xff]
    %v265 = vld [vmem:[#allocation5 + $0x350] sm:$0xff]
    %v266 = vld [vmem:[#allocation5 + $0x358] sm:$0xff]
    %v267 = vld [vmem:[#allocation5 + $0x360] sm:$0xff]
    %v268 = vld [vmem:[#allocation5 + $0x368] sm:$0xff]
    %v269 = vld [vmem:[#allocation5 + $0x370] sm:$0xff]
    %v270 = vld [vmem:[#allocation5 + $0x378] sm:$0xff]
    %v271 = vld [vmem:[#allocation5 + $0x380] sm:$0xff]
    %v272 = vld [vmem:[#allocation5 + $0x388] sm:$0xff]
    %v273 = vld [vmem:[#allocation5 + $0x390] sm:$0xff]
    %v274 = vld [vmem:[#allocation5 + $0x398] sm:$0xff]
    %v275 = vld [vmem:[#allocation5 + $0x3a0] sm:$0xff]
    %v276 = vld [vmem:[#allocation5 + $0x3a8] sm:$0xff]
    %v277 = vld [vmem:[#allocation5 + $0x3b0] sm:$0xff]
    %v278 = vld [vmem:[#allocation5 + $0x3b8] sm:$0xff]
    %v279 = vld [vmem:[#allocation5 + $0x3c0] sm:$0xff]
    %v280 = vld [vmem:[#allocation5 + $0x3c8] sm:$0xff]
    %v281 = vld [vmem:[#allocation5 + $0x3d0] sm:$0xff]
    %v282 = vld [vmem:[#allocation5 + $0x3d8] sm:$0xff]
    %v283 = vld [vmem:[#allocation5 + $0x3e0] sm:$0xff]
    %v284 = vld [vmem:[#allocation5 + $0x3e8] sm:$0xff]
    %v285 = vld [vmem:[#allocation5 + $0x3f0] sm:$0xff]
    %v286 = vld [vmem:[#allocation5 + $0x3f8] sm:$0xff]
    %v287 = vld [vmem:[#allocation5 + $0x400] sm:$0xff]
    %v288 = vld [vmem:[#allocation5 + $0x408] sm:$0xff]
    %v289 = vld [vmem:[#allocation5 + $0x410] sm:$0xff]
    %v290 = vld [vmem:[#allocation5 + $0x418] sm:$0xff]
    %v291 = vld [vmem:[#allocation5 + $0x420] sm:$0xff]
    %v292 = vld [vmem:[#allocation5 + $0x428] sm:$0xff]
    %v293 = vld [vmem:[#allocation5 + $0x430] sm:$0xff]
    %v294 = vld [vmem:[#allocation5 + $0x438] sm:$0xff]
    %v295 = vld [vmem:[#allocation5 + $0x440] sm:$0xff]
    %v296 = vld [vmem:[#allocation5 + $0x448] sm:$0xff]
    %v297 = vld [vmem:[#allocation5 + $0x450] sm:$0xff]
    %v298 = vld [vmem:[#allocation5 + $0x458] sm:$0xff]
    %v299 = vld [vmem:[#allocation5 + $0x460] sm:$0xff]
    %v300 = vld [vmem:[#allocation5 + $0x468] sm:$0xff]
    %v301 = vld [vmem:[#allocation5 + $0x470] sm:$0xff]
    %v302 = vld [vmem:[#allocation5 + $0x478] sm:$0xff]
    %v303 = vld [vmem:[#allocation5 + $0x480] sm:$0xff]
    %v304 = vld [vmem:[#allocation5 + $0x488] sm:$0xff]
    %v305 = vld [vmem:[#allocation5 + $0x490] sm:$0xff]
    %v306 = vld [vmem:[#allocation5 + $0x498] sm:$0xff]
    %v307 = vld [vmem:[#allocation5 + $0x4a0] sm:$0xff]
    %v308 = vld [vmem:[#allocation5 + $0x4a8] sm:$0xff]
    %v309 = vld [vmem:[#allocation5 + $0x4b0] sm:$0xff]
    %v310 = vld [vmem:[#allocation5 + $0x4b8] sm:$0xff]
    %v311 = vld [vmem:[#allocation5 + $0x4c0] sm:$0xff]
    %v312 = vld [vmem:[#allocation5 + $0x4c8] sm:$0xff]
    %v313 = vld [vmem:[#allocation5 + $0x4d0] sm:$0xff]
    %v314 = vld [vmem:[#allocation5 + $0x4d8] sm:$0xff]
    %v315 = vld [vmem:[#allocation5 + $0x4e0] sm:$0xff]
    %v316 = vld [vmem:[#allocation5 + $0x4e8] sm:$0xff]
    %v317 = vld [vmem:[#allocation5 + $0x4f0] sm:$0xff]
    %v318 = vld [vmem:[#allocation5 + $0x4f8] sm:$0xff]
    %v319 = vld [vmem:[#allocation5 + $0x500] sm:$0xff]
    %v320 = vld [vmem:[#allocation5 + $0x508] sm:$0xff]
    %v321 = vld [vmem:[#allocation5 + $0x510] sm:$0xff]
    %v322 = vld [vmem:[#allocation5 + $0x518] sm:$0xff]
    %v323 = vld [vmem:[#allocation5 + $0x520] sm:$0xff]
    %v324 = vld [vmem:[#allocation5 + $0x528] sm:$0xff]
    %v325 = vld [vmem:[#allocation5 + $0x530] sm:$0xff]
    %v326 = vld [vmem:[#allocation5 + $0x538] sm:$0xff]
    %v327 = vld [vmem:[#allocation5 + $0x540] sm:$0xff]
    %v328 = vld [vmem:[#allocation5 + $0x548] sm:$0xff]
    %v329 = vld [vmem:[#allocation5 + $0x550] sm:$0xff]
    %v330 = vld [vmem:[#allocation5 + $0x558] sm:$0xff]
    %v331 = vld [vmem:[#allocation5 + $0x560] sm:$0xff]
    %v332 = vld [vmem:[#allocation5 + $0x568] sm:$0xff]
    %v333 = vld [vmem:[#allocation5 + $0x570] sm:$0xff]
    %v334 = vld [vmem:[#allocation5 + $0x578] sm:$0xff]
    %v335 = vld [vmem:[#allocation5 + $0x580] sm:$0xff]
    %v336 = vld [vmem:[#allocation5 + $0x588] sm:$0xff]
    %v337 = vld [vmem:[#allocation5 + $0x590] sm:$0xff]
    %v338 = vld [vmem:[#allocation5 + $0x598] sm:$0xff]
    %v339 = vld [vmem:[#allocation5 + $0x5a0] sm:$0xff]
    %v340 = vld [vmem:[#allocation5 + $0x5a8] sm:$0xff]
    %v341 = vld [vmem:[#allocation5 + $0x5b0] sm:$0xff]
    %v342 = vld [vmem:[#allocation5 + $0x5b8] sm:$0xff]
    %v343 = vld [vmem:[#allocation5 + $0x5c0] sm:$0xff]
    %v344 = vld [vmem:[#allocation5 + $0x5c8] sm:$0xff]
    %v345 = vld [vmem:[#allocation5 + $0x5d0] sm:$0xff]
    %v346 = vld [vmem:[#allocation5 + $0x5d8] sm:$0xff]
    %v347 = vld [vmem:[#allocation5 + $0x5e0] sm:$0xff]
    %v348 = vld [vmem:[#allocation5 + $0x5e8] sm:$0xff]
    %v349 = vld [vmem:[#allocation5 + $0x5f0] sm:$0xff]
    %v350 = vld [vmem:[#allocation5 + $0x5f8] sm:$0xff]
    %v351 = vld [vmem:[#allocation5 + $0x600] sm:$0xff]
    %v352 = vld [vmem:[#allocation5 + $0x608] sm:$0xff]
    %v353 = vld [vmem:[#allocation5 + $0x610] sm:$0xff]
    %v354 = vld [vmem:[#allocation5 + $0x618] sm:$0xff]
    %v355 = vld [vmem:[#allocation5 + $0x620] sm:$0xff]
    %v356 = vld [vmem:[#allocation5 + $0x628] sm:$0xff]
    %v357 = vld [vmem:[#allocation5 + $0x630] sm:$0xff]
    %v358 = vld [vmem:[#allocation5 + $0x638] sm:$0xff]
    %v359 = vld [vmem:[#allocation5 + $0x640] sm:$0xff]
    %v360 = vld [vmem:[#allocation5 + $0x648] sm:$0xff]
    %v361 = vld [vmem:[#allocation5 + $0x650] sm:$0xff]
    %v362 = vld [vmem:[#allocation5 + $0x658] sm:$0xff]
    %v363 = vld [vmem:[#allocation5 + $0x660] sm:$0xff]
    %v364 = vld [vmem:[#allocation5 + $0x668] sm:$0xff]
    %v365 = vld [vmem:[#allocation5 + $0x670] sm:$0xff]
    %v366 = vld [vmem:[#allocation5 + $0x678] sm:$0xff]
    %v367 = vld [vmem:[#allocation5 + $0x680] sm:$0xff]
    %v368 = vld [vmem:[#allocation5 + $0x688] sm:$0xff]
    %v369 = vld [vmem:[#allocation5 + $0x690] sm:$0xff]
    %v370 = vld [vmem:[#allocation5 + $0x698] sm:$0xff]
    %v371 = vld [vmem:[#allocation5 + $0x6a0] sm:$0xff]
    %v372 = vld [vmem:[#allocation5 + $0x6a8] sm:$0xff]
    %v373 = vld [vmem:[#allocation5 + $0x6b0] sm:$0xff]
    %v374 = vld [vmem:[#allocation5 + $0x6b8] sm:$0xff]
    %v375 = vld [vmem:[#allocation5 + $0x6c0] sm:$0xff]
    %v376 = vld [vmem:[#allocation5 + $0x6c8] sm:$0xff]
    %v377 = vld [vmem:[#allocation5 + $0x6d0] sm:$0xff]
    %v378 = vld [vmem:[#allocation5 + $0x6d8] sm:$0xff]
    %v379 = vld [vmem:[#allocation5 + $0x6e0] sm:$0xff]
    %v380 = vld [vmem:[#allocation5 + $0x6e8] sm:$0xff]
    %v381 = vld [vmem:[#allocation5 + $0x6f0] sm:$0xff]
    %v382 = vld [vmem:[#allocation5 + $0x6f8] sm:$0xff]
    %v383 = vld [vmem:[#allocation5 + $0x700] sm:$0xff]
    %v384 = vld [vmem:[#allocation5 + $0x708] sm:$0xff]
    %v385 = vld [vmem:[#allocation5 + $0x710] sm:$0xff]
    %v386 = vld [vmem:[#allocation5 + $0x718] sm:$0xff]
    %v387 = vld [vmem:[#allocation5 + $0x720] sm:$0xff]
    %v388 = vld [vmem:[#allocation5 + $0x728] sm:$0xff]
    %v389 = vld [vmem:[#allocation5 + $0x730] sm:$0xff]
    %v390 = vld [vmem:[#allocation5 + $0x738] sm:$0xff]
    %v391 = vld [vmem:[#allocation5 + $0x740] sm:$0xff]
    %v392 = vld [vmem:[#allocation5 + $0x748] sm:$0xff]
    %v393 = vld [vmem:[#allocation5 + $0x750] sm:$0xff]
    %v394 = vld [vmem:[#allocation5 + $0x758] sm:$0xff]
    %v395 = vld [vmem:[#allocation5 + $0x760] sm:$0xff]
    %v396 = vld [vmem:[#allocation5 + $0x768] sm:$0xff]
    %v397 = vld [vmem:[#allocation5 + $0x770] sm:$0xff]
    %v398 = vld [vmem:[#allocation5 + $0x778] sm:$0xff]
    %v399 = vld [vmem:[#allocation5 + $0x780] sm:$0xff]
    %v400 = vld [vmem:[#allocation5 + $0x788] sm:$0xff]
    %v401 = vld [vmem:[#allocation5 + $0x790] sm:$0xff]
    %v402 = vld [vmem:[#allocation5 + $0x798] sm:$0xff]
    %v403 = vld [vmem:[#allocation5 + $0x7a0] sm:$0xff]
    %v404 = vld [vmem:[#allocation5 + $0x7a8] sm:$0xff]
    %v405 = vld [vmem:[#allocation5 + $0x7b0] sm:$0xff]
    %v406 = vld [vmem:[#allocation5 + $0x7b8] sm:$0xff]
    %v407 = vld [vmem:[#allocation5 + $0x7c0] sm:$0xff]
    %v408 = vld [vmem:[#allocation5 + $0x7c8] sm:$0xff]
    %v409 = vld [vmem:[#allocation5 + $0x7d0] sm:$0xff]
    %v410 = vld [vmem:[#allocation5 + $0x7d8] sm:$0xff]
    %v411 = vld [vmem:[#allocation5 + $0x7e0] sm:$0xff]
    %v412 = vld [vmem:[#allocation5 + $0x7e8] sm:$0xff]
    %v413 = vld [vmem:[#allocation5 + $0x7f0] sm:$0xff]
    %v414 = vld [vmem:[#allocation5 + $0x7f8] sm:$0xff]
    %v415 = vld [vmem:[#allocation5 + $0x800] sm:$0xff]
    %v416 = vld [vmem:[#allocation5 + $0x808] sm:$0xff]
    %v417 = vld [vmem:[#allocation5 + $0x810] sm:$0xff]
    %v418 = vld [vmem:[#allocation5 + $0x818] sm:$0xff]
    %v419 = vld [vmem:[#allocation5 + $0x820] sm:$0xff]
    %v420 = vld [vmem:[#allocation5 + $0x828] sm:$0xff]
    %v421 = vld [vmem:[#allocation5 + $0x830] sm:$0xff]
    %v422 = vld [vmem:[#allocation5 + $0x838] sm:$0xff]
    %v423 = vld [vmem:[#allocation5 + $0x840] sm:$0xff]
    %v424 = vld [vmem:[#allocation5 + $0x848] sm:$0xff]
    %v425 = vld [vmem:[#allocation5 + $0x850] sm:$0xff]
    %v426 = vld [vmem:[#allocation5 + $0x858] sm:$0xff]
    %v427 = vld [vmem:[#allocation5 + $0x860] sm:$0xff]
    %v428 = vld [vmem:[#allocation5 + $0x868] sm:$0xff]
    %v429 = vld [vmem:[#allocation5 + $0x870] sm:$0xff]
    %v430 = vld [vmem:[#allocation5 + $0x878] sm:$0xff]
    %v431 = vld [vmem:[#allocation5 + $0x880] sm:$0xff]
    %v432 = vld [vmem:[#allocation5 + $0x888] sm:$0xff]
    %v433 = vld [vmem:[#allocation5 + $0x890] sm:$0xff]
    %v434 = vld [vmem:[#allocation5 + $0x898] sm:$0xff]
    %v435 = vld [vmem:[#allocation5 + $0x8a0] sm:$0xff]
    %v436 = vld [vmem:[#allocation5 + $0x8a8] sm:$0xff]
    %v437 = vld [vmem:[#allocation5 + $0x8b0] sm:$0xff]
    %v438 = vld [vmem:[#allocation5 + $0x8b8] sm:$0xff]
    %v439 = vld [vmem:[#allocation5 + $0x8c0] sm:$0xff]
    %v440 = vld [vmem:[#allocation5 + $0x8c8] sm:$0xff]
    %v441 = vld [vmem:[#allocation5 + $0x8d0] sm:$0xff]
    %v442 = vld [vmem:[#allocation5 + $0x8d8] sm:$0xff]
    %v443 = vld [vmem:[#allocation5 + $0x8e0] sm:$0xff]
    %v444 = vld [vmem:[#allocation5 + $0x8e8] sm:$0xff]
    %v445 = vld [vmem:[#allocation5 + $0x8f0] sm:$0xff]
    %v446 = vld [vmem:[#allocation5 + $0x8f8] sm:$0xff]
    %v447 = vld [vmem:[#allocation5 + $0x900] sm:$0xff]
    %v448 = vld [vmem:[#allocation5 + $0x908] sm:$0xff]
    %v449 = vld [vmem:[#allocation5 + $0x910] sm:$0xff]
    %v450 = vld [vmem:[#allocation5 + $0x918] sm:$0xff]
    %v451 = vld [vmem:[#allocation5 + $0x920] sm:$0xff]
    %v452 = vld [vmem:[#allocation5 + $0x928] sm:$0xff]
    %v453 = vld [vmem:[#allocation5 + $0x930] sm:$0xff]
    %v454 = vld [vmem:[#allocation5 + $0x938] sm:$0xff]
    %v455 = vld [vmem:[#allocation5 + $0x940] sm:$0xff]
    %v456 = vld [vmem:[#allocation5 + $0x948] sm:$0xff]
    %v457 = vld [vmem:[#allocation5 + $0x950] sm:$0xff]
    %v458 = vld [vmem:[#allocation5 + $0x958] sm:$0xff]
    %v459 = vld [vmem:[#allocation5 + $0x960] sm:$0xff]
    %v460 = vld [vmem:[#allocation5 + $0x968] sm:$0xff]
    %v461 = vld [vmem:[#allocation5 + $0x970] sm:$0xff]
    %v462 = vld [vmem:[#allocation5 + $0x978] sm:$0xff]
    %v463 = vld [vmem:[#allocation5 + $0x980] sm:$0xff]
    %v464 = vld [vmem:[#allocation5 + $0x988] sm:$0xff]
    %v465 = vld [vmem:[#allocation5 + $0x990] sm:$0xff]
    %v466 = vld [vmem:[#allocation5 + $0x998] sm:$0xff]
    %v467 = vld [vmem:[#allocation5 + $0x9a0] sm:$0xff]
    %v468 = vld [vmem:[#allocation5 + $0x9a8] sm:$0xff]
    %v469 = vld [vmem:[#allocation5 + $0x9b0] sm:$0xff]
    %v470 = vld [vmem:[#allocation5 + $0x9b8] sm:$0xff]
    %v471 = vld [vmem:[#allocation5 + $0x9c0] sm:$0xff]
    %v472 = vld [vmem:[#allocation5 + $0x9c8] sm:$0xff]
    %v473 = vld [vmem:[#allocation5 + $0x9d0] sm:$0xff]
    %v474 = vld [vmem:[#allocation5 + $0x9d8] sm:$0xff]
    %v475 = vld [vmem:[#allocation5 + $0x9e0] sm:$0xff]
    %v476 = vld [vmem:[#allocation5 + $0x9e8] sm:$0xff]
    %v477 = vld [vmem:[#allocation5 + $0x9f0] sm:$0xff]
    %v478 = vld [vmem:[#allocation5 + $0x9f8] sm:$0xff]
    %v479 = vld [vmem:[#allocation5 + $0xa00] sm:$0xff]
    %v480 = vld [vmem:[#allocation5 + $0xa08] sm:$0xff]
    %v481 = vld [vmem:[#allocation5 + $0xa10] sm:$0xff]
    %v482 = vld [vmem:[#allocation5 + $0xa18] sm:$0xff]
    %v483 = vld [vmem:[#allocation5 + $0xa20] sm:$0xff]
    %v484 = vld [vmem:[#allocation5 + $0xa28] sm:$0xff]
    %v485 = vld [vmem:[#allocation5 + $0xa30] sm:$0xff]
    %v486 = vld [vmem:[#allocation5 + $0xa38] sm:$0xff]
    %v487 = vld [vmem:[#allocation5 + $0xa40] sm:$0xff]
    %v488 = vld [vmem:[#allocation5 + $0xa48] sm:$0xff]
    %v489 = vld [vmem:[#allocation5 + $0xa50] sm:$0xff]
    %v490 = vld [vmem:[#allocation5 + $0xa58] sm:$0xff]
    %v491 = vld [vmem:[#allocation5 + $0xa60] sm:$0xff]
    %v492 = vld [vmem:[#allocation5 + $0xa68] sm:$0xff]
    %v493 = vld [vmem:[#allocation5 + $0xa70] sm:$0xff]
    %v494 = vld [vmem:[#allocation5 + $0xa78] sm:$0xff]
    %v495 = vld [vmem:[#allocation5 + $0xa80] sm:$0xff]
    %v496 = vld [vmem:[#allocation5 + $0xa88] sm:$0xff]
    %v497 = vld [vmem:[#allocation5 + $0xa90] sm:$0xff]
    %v498 = vld [vmem:[#allocation5 + $0xa98] sm:$0xff]
    %v499 = vld [vmem:[#allocation5 + $0xaa0] sm:$0xff]
    %v500 = vld [vmem:[#allocation5 + $0xaa8] sm:$0xff]
    %v501 = vld [vmem:[#allocation5 + $0xab0] sm:$0xff]
    %v502 = vld [vmem:[#allocation5 + $0xab8] sm:$0xff]
    %v503 = vld [vmem:[#allocation5 + $0xac0] sm:$0xff]
    %v504 = vld [vmem:[#allocation5 + $0xac8] sm:$0xff]
    %v505 = vld [vmem:[#allocation5 + $0xad0] sm:$0xff]
    %v506 = vld [vmem:[#allocation5 + $0xad8] sm:$0xff]
    %v507 = vld [vmem:[#allocation5 + $0xae0] sm:$0xff]
    %v508 = vld [vmem:[#allocation5 + $0xae8] sm:$0xff]
    %v509 = vld [vmem:[#allocation5 + $0xaf0] sm:$0xff]
    %v510 = vld [vmem:[#allocation5 + $0xaf8] sm:$0xff]
    %v511 = vld [vmem:[#allocation5 + $0xb00] sm:$0xff]
    %v512 = vld [vmem:[#allocation5 + $0xb08] sm:$0xff]
    %v513 = vld [vmem:[#allocation5 + $0xb10] sm:$0xff]
    %v514 = vld [vmem:[#allocation5 + $0xb18] sm:$0xff]
    %v515 = vld [vmem:[#allocation5 + $0xb20] sm:$0xff]
    %v516 = vld [vmem:[#allocation5 + $0xb28] sm:$0xff]
    %v517 = vld [vmem:[#allocation5 + $0xb30] sm:$0xff]
    %v518 = vld [vmem:[#allocation5 + $0xb38] sm:$0xff]
    %v519 = vld [vmem:[#allocation5 + $0xb40] sm:$0xff]
    %v520 = vld [vmem:[#allocation5 + $0xb48] sm:$0xff]
    %v521 = vld [vmem:[#allocation5 + $0xb50] sm:$0xff]
    %v522 = vld [vmem:[#allocation5 + $0xb58] sm:$0xff]
    %v523 = vld [vmem:[#allocation5 + $0xb60] sm:$0xff]
    %v524 = vld [vmem:[#allocation5 + $0xb68] sm:$0xff]
    %v525 = vld [vmem:[#allocation5 + $0xb70] sm:$0xff]
    %v526 = vld [vmem:[#allocation5 + $0xb78] sm:$0xff]
    %v527 = vld [vmem:[#allocation5 + $0xb80] sm:$0xff]
    %v528 = vld [vmem:[#allocation5 + $0xb88] sm:$0xff]
    %v529 = vld [vmem:[#allocation5 + $0xb90] sm:$0xff]
    %v530 = vld [vmem:[#allocation5 + $0xb98] sm:$0xff]
    %v531 = vld [vmem:[#allocation5 + $0xba0] sm:$0xff]
    %v532 = vld [vmem:[#allocation5 + $0xba8] sm:$0xff]
    %v533 = vld [vmem:[#allocation5 + $0xbb0] sm:$0xff]
    %v534 = vld [vmem:[#allocation5 + $0xbb8] sm:$0xff]
    %v535 = vld [vmem:[#allocation5 + $0xbc0] sm:$0xff]
    %v536 = vld [vmem:[#allocation5 + $0xbc8] sm:$0xff]
    %v537 = vld [vmem:[#allocation5 + $0xbd0] sm:$0xff]
    %v538 = vld [vmem:[#allocation5 + $0xbd8] sm:$0xff]
    %v539 = vld [vmem:[#allocation5 + $0xbe0] sm:$0xff]
    %v540 = vld [vmem:[#allocation5 + $0xbe8] sm:$0xff]
    %v541 = vld [vmem:[#allocation5 + $0xbf0] sm:$0xff]
    %v542 = vld [vmem:[#allocation5 + $0xbf8] sm:$0xff]
    %v543 = vld [vmem:[#allocation5 + $0xc00] sm:$0xff]
    %v544 = vld [vmem:[#allocation5 + $0xc08] sm:$0xff]
    %v545 = vld [vmem:[#allocation5 + $0xc10] sm:$0xff]
    %v546 = vld [vmem:[#allocation5 + $0xc18] sm:$0xff]
    %v547 = vld [vmem:[#allocation5 + $0xc20] sm:$0xff]
    %v548 = vld [vmem:[#allocation5 + $0xc28] sm:$0xff]
    %v549 = vld [vmem:[#allocation5 + $0xc30] sm:$0xff]
    %v550 = vld [vmem:[#allocation5 + $0xc38] sm:$0xff]
    %v551 = vld [vmem:[#allocation5 + $0xc40] sm:$0xff]
    %v552 = vld [vmem:[#allocation5 + $0xc48] sm:$0xff]
    %v553 = vld [vmem:[#allocation5 + $0xc50] sm:$0xff]
    %v554 = vld [vmem:[#allocation5 + $0xc58] sm:$0xff]
    %v555 = vld [vmem:[#allocation5 + $0xc60] sm:$0xff]
    %v556 = vld [vmem:[#allocation5 + $0xc68] sm:$0xff]
    %v557 = vld [vmem:[#allocation5 + $0xc70] sm:$0xff]
    %v558 = vld [vmem:[#allocation5 + $0xc78] sm:$0xff]
    %v559 = vld [vmem:[#allocation5 + $0xc80] sm:$0xff]
    %v560 = vld [vmem:[#allocation5 + $0xc88] sm:$0xff]
    %v561 = vld [vmem:[#allocation5 + $0xc90] sm:$0xff]
    %v562 = vld [vmem:[#allocation5 + $0xc98] sm:$0xff]
    %v563 = vld [vmem:[#allocation5 + $0xca0] sm:$0xff]
    %v564 = vld [vmem:[#allocation5 + $0xca8] sm:$0xff]
    %v565 = vld [vmem:[#allocation5 + $0xcb0] sm:$0xff]
    %v566 = vld [vmem:[#allocation5 + $0xcb8] sm:$0xff]
    %v567 = vld [vmem:[#allocation5 + $0xcc0] sm:$0xff]
    %v568 = vld [vmem:[#allocation5 + $0xcc8] sm:$0xff]
    %v569 = vld [vmem:[#allocation5 + $0xcd0] sm:$0xff]
    %v570 = vld [vmem:[#allocation5 + $0xcd8] sm:$0xff]
    %v571 = vld [vmem:[#allocation5 + $0xce0] sm:$0xff]
    %v572 = vld [vmem:[#allocation5 + $0xce8] sm:$0xff]
    %v573 = vld [vmem:[#allocation5 + $0xcf0] sm:$0xff]
    %v574 = vld [vmem:[#allocation5 + $0xcf8] sm:$0xff]
    %v575 = vld [vmem:[#allocation5 + $0xd00] sm:$0xff]
    %v576 = vld [vmem:[#allocation5 + $0xd08] sm:$0xff]
    %v577 = vld [vmem:[#allocation5 + $0xd10] sm:$0xff]
    %v578 = vld [vmem:[#allocation5 + $0xd18] sm:$0xff]
    %v579 = vld [vmem:[#allocation5 + $0xd20] sm:$0xff]
    %v580 = vld [vmem:[#allocation5 + $0xd28] sm:$0xff]
    %v581 = vld [vmem:[#allocation5 + $0xd30] sm:$0xff]
    %v582 = vld [vmem:[#allocation5 + $0xd38] sm:$0xff]
    %v583 = vld [vmem:[#allocation5 + $0xd40] sm:$0xff]
    %v584 = vld [vmem:[#allocation5 + $0xd48] sm:$0xff]
    %v585 = vld [vmem:[#allocation5 + $0xd50] sm:$0xff]
    %v586 = vld [vmem:[#allocation5 + $0xd58] sm:$0xff]
    %v587 = vld [vmem:[#allocation5 + $0xd60] sm:$0xff]
    %v588 = vld [vmem:[#allocation5 + $0xd68] sm:$0xff]
    %v589 = vld [vmem:[#allocation5 + $0xd70] sm:$0xff]
    %v590 = vld [vmem:[#allocation5 + $0xd78] sm:$0xff]
    %v591 = vld [vmem:[#allocation5 + $0xd80] sm:$0xff]
    %v592 = vld [vmem:[#allocation5 + $0xd88] sm:$0xff]
    %v593 = vld [vmem:[#allocation5 + $0xd90] sm:$0xff]
    %v594 = vld [vmem:[#allocation5 + $0xd98] sm:$0xff]
    %v595 = vld [vmem:[#allocation5 + $0xda0] sm:$0xff]
    %v596 = vld [vmem:[#allocation5 + $0xda8] sm:$0xff]
    %v597 = vld [vmem:[#allocation5 + $0xdb0] sm:$0xff]
    %v598 = vld [vmem:[#allocation5 + $0xdb8] sm:$0xff]
    %v599 = vld [vmem:[#allocation5 + $0xdc0] sm:$0xff]
    %v600 = vld [vmem:[#allocation5 + $0xdc8] sm:$0xff]
    %v601 = vld [vmem:[#allocation5 + $0xdd0] sm:$0xff]
    %v602 = vld [vmem:[#allocation5 + $0xdd8] sm:$0xff]
    %v603 = vld [vmem:[#allocation5 + $0xde0] sm:$0xff]
    %v604 = vld [vmem:[#allocation5 + $0xde8] sm:$0xff]
    %v605 = vld [vmem:[#allocation5 + $0xdf0] sm:$0xff]
    %v606 = vld [vmem:[#allocation5 + $0xdf8] sm:$0xff]
    %v607 = vld [vmem:[#allocation5 + $0xe00] sm:$0xff]
    %v608 = vld [vmem:[#allocation5 + $0xe08] sm:$0xff]
    %v609 = vld [vmem:[#allocation5 + $0xe10] sm:$0xff]
    %v610 = vld [vmem:[#allocation5 + $0xe18] sm:$0xff]
    %v611 = vld [vmem:[#allocation5 + $0xe20] sm:$0xff]
    %v612 = vld [vmem:[#allocation5 + $0xe28] sm:$0xff]
    %v613 = vld [vmem:[#allocation5 + $0xe30] sm:$0xff]
    %v614 = vld [vmem:[#allocation5 + $0xe38] sm:$0xff]
    %v615 = vld [vmem:[#allocation5 + $0xe40] sm:$0xff]
    %v616 = vld [vmem:[#allocation5 + $0xe48] sm:$0xff]
    %v617 = vld [vmem:[#allocation5 + $0xe50] sm:$0xff]
    %v618 = vld [vmem:[#allocation5 + $0xe58] sm:$0xff]
    %v619 = vld [vmem:[#allocation5 + $0xe60] sm:$0xff]
    %v620 = vld [vmem:[#allocation5 + $0xe68] sm:$0xff]
    %v621 = vld [vmem:[#allocation5 + $0xe70] sm:$0xff]
    %v622 = vld [vmem:[#allocation5 + $0xe78] sm:$0xff]
    %v623 = vld [vmem:[#allocation5 + $0xe80] sm:$0xff]
    %v624 = vld [vmem:[#allocation5 + $0xe88] sm:$0xff]
    %v625 = vld [vmem:[#allocation5 + $0xe90] sm:$0xff]
    %v626 = vld [vmem:[#allocation5 + $0xe98] sm:$0xff]
    %v627 = vld [vmem:[#allocation5 + $0xea0] sm:$0xff]
    %v628 = vld [vmem:[#allocation5 + $0xea8] sm:$0xff]
    %v629 = vld [vmem:[#allocation5 + $0xeb0] sm:$0xff]
    %v630 = vld [vmem:[#allocation5 + $0xeb8] sm:$0xff]
    %v631 = vld [vmem:[#allocation5 + $0xec0] sm:$0xff]
    %v632 = vld [vmem:[#allocation5 + $0xec8] sm:$0xff]
    %v633 = vld [vmem:[#allocation5 + $0xed0] sm:$0xff]
    %v634 = vld [vmem:[#allocation5 + $0xed8] sm:$0xff]
    %v635 = vld [vmem:[#allocation5 + $0xee0] sm:$0xff]
    %v636 = vld [vmem:[#allocation5 + $0xee8] sm:$0xff]
    %v637 = vld [vmem:[#allocation5 + $0xef0] sm:$0xff]
    %v638 = vld [vmem:[#allocation5 + $0xef8] sm:$0xff]
    %v639 = vld [vmem:[#allocation5 + $0xf00] sm:$0xff]
    %v640 = vld [vmem:[#allocation5 + $0xf08] sm:$0xff]
    %v641 = vld [vmem:[#allocation5 + $0xf10] sm:$0xff]
    %v642 = vld [vmem:[#allocation5 + $0xf18] sm:$0xff]
    %v643 = vld [vmem:[#allocation5 + $0xf20] sm:$0xff]
    %v644 = vld [vmem:[#allocation5 + $0xf28] sm:$0xff]
    %v645 = vld [vmem:[#allocation5 + $0xf30] sm:$0xff]
    %v646 = vld [vmem:[#allocation5 + $0xf38] sm:$0xff]
    %v647 = vld [vmem:[#allocation5 + $0xf40] sm:$0xff]
    %v648 = vld [vmem:[#allocation5 + $0xf48] sm:$0xff]
    %v649 = vld [vmem:[#allocation5 + $0xf50] sm:$0xff]
    %v650 = vld [vmem:[#allocation5 + $0xf58] sm:$0xff]
    %v651 = vld [vmem:[#allocation5 + $0xf60] sm:$0xff]
    %v652 = vld [vmem:[#allocation5 + $0xf68] sm:$0xff]
    %v653 = vld [vmem:[#allocation5 + $0xf70] sm:$0xff]
    %v654 = vld [vmem:[#allocation5 + $0xf78] sm:$0xff]
    %v655 = vld [vmem:[#allocation5 + $0xf80] sm:$0xff]
    %v656 = vld [vmem:[#allocation5 + $0xf88] sm:$0xff]
    %v657 = vld [vmem:[#allocation5 + $0xf90] sm:$0xff]
    %v658 = vld [vmem:[#allocation5 + $0xf98] sm:$0xff]
    %v659 = vld [vmem:[#allocation5 + $0xfa0] sm:$0xff]
    %v660 = vld [vmem:[#allocation5 + $0xfa8] sm:$0xff]
    %v661 = vld [vmem:[#allocation5 + $0xfb0] sm:$0xff]
    %v662 = vld [vmem:[#allocation5 + $0xfb8] sm:$0xff]
    %v663 = vld [vmem:[#allocation5 + $0xfc0] sm:$0xff]
    %v664 = vld [vmem:[#allocation5 + $0xfc8] sm:$0xff]
    %v665 = vld [vmem:[#allocation5 + $0xfd0] sm:$0xff]
    %v666 = vld [vmem:[#allocation5 + $0xfd8] sm:$0xff]
    %v667 = vld [vmem:[#allocation5 + $0xfe0] sm:$0xff]
    %v668 = vld [vmem:[#allocation5 + $0xfe8] sm:$0xff]
    %v669 = vld [vmem:[#allocation5 + $0xff0] sm:$0xff]
    %v670 = vld [vmem:[#allocation5 + $0xff8] sm:$0xff]
    %v671 = vld [vmem:[%s0] sm:$0xf]
    %v672 = vld [vmem:[%s0 + $0x4] sm:$0xf]
    %v673 = vld [vmem:[#allocation3] sm:$0xff]
    %v674 = vld [vmem:[#allocation3 + $0x8] sm:$0xff]
    %v675 = vld [vmem:[#allocation3 + $0x10] sm:$0xff]
    %v676 = vld [vmem:[#allocation3 + $0x18] sm:$0xff]
    %v677 = vld [vmem:[#allocation3 + $0x20] sm:$0xff]
    %v678 = vld [vmem:[#allocation3 + $0x28] sm:$0xff]
    %v679 = vld [vmem:[#allocation3 + $0x30] sm:$0xff]
    %v680 = vld [vmem:[#allocation3 + $0x38] sm:$0xff]
    %v681 = vld [vmem:[#allocation3 + $0x40] sm:$0xff]
    %v682 = vld [vmem:[#allocation3 + $0x48] sm:$0xff]
    %v683 = vld [vmem:[#allocation3 + $0x50] sm:$0xff]
    %v684 = vld [vmem:[#allocation3 + $0x58] sm:$0xff]
    %v685 = vld [vmem:[#allocation3 + $0x60] sm:$0xff]
    %v686 = vld [vmem:[#allocation3 + $0x68] sm:$0xff]
    %v687 = vld [vmem:[#allocation3 + $0x70] sm:$0xff]
    %v688 = vld [vmem:[#allocation3 + $0x78] sm:$0xff]
    %v689 = vld [vmem:[#allocation3 + $0x80] sm:$0xff]
    %v690 = vld [vmem:[#allocation3 + $0x88] sm:$0xff]
    %v691 = vld [vmem:[#allocation3 + $0x90] sm:$0xff]
    %v692 = vld [vmem:[#allocation3 + $0x98] sm:$0xff]
    %v693 = vld [vmem:[#allocation3 + $0xa0] sm:$0xff]
    %v694 = vld [vmem:[#allocation3 + $0xa8] sm:$0xff]
    %v695 = vld [vmem:[#allocation3 + $0xb0] sm:$0xff]
    %v696 = vld [vmem:[#allocation3 + $0xb8] sm:$0xff]
    %v697 = vld [vmem:[#allocation3 + $0xc0] sm:$0xff]
    %v698 = vld [vmem:[#allocation3 + $0xc8] sm:$0xff]
    %v699 = vld [vmem:[#allocation3 + $0xd0] sm:$0xff]
    %v700 = vld [vmem:[#allocation3 + $0xd8] sm:$0xff]
    %v701 = vld [vmem:[#allocation3 + $0xe0] sm:$0xff]
    %v702 = vld [vmem:[#allocation3 + $0xe8] sm:$0xff]
    %v703 = vld [vmem:[#allocation3 + $0xf0] sm:$0xff]
    %v704 = vld [vmem:[#allocation3 + $0xf8] sm:$0xff]
    %v707 = vunpack.c.l.b16 %v671
    %v708 = vunpack.c.l.b16 %v672
    %v709 = vpack.c.b16 %v708, %v707
    %v743 = vunpack.c.l.b16 %v673
    %v744 = vunpack.c.h.b16 %v673
    %v745 = vunpack.c.l.b16 %v674
    %v746 = vunpack.c.h.b16 %v674
    %v747 = vunpack.c.l.b16 %v675
    %v748 = vunpack.c.h.b16 %v675
    %v749 = vunpack.c.l.b16 %v676
    %v750 = vunpack.c.h.b16 %v676
    %v751 = vunpack.c.l.b16 %v677
    %v752 = vunpack.c.h.b16 %v677
    %v753 = vunpack.c.l.b16 %v678
    %v754 = vunpack.c.h.b16 %v678
    %v755 = vunpack.c.l.b16 %v679
    %v756 = vunpack.c.h.b16 %v679
    %v757 = vunpack.c.l.b16 %v680
    %v758 = vunpack.c.h.b16 %v680
    %v759 = vunpack.c.l.b16 %v681
    %v760 = vunpack.c.h.b16 %v681
    %v761 = vunpack.c.l.b16 %v682
    %v762 = vunpack.c.h.b16 %v682
    %v763 = vunpack.c.l.b16 %v683
    %v764 = vunpack.c.h.b16 %v683
    %v765 = vunpack.c.l.b16 %v684
    %v766 = vunpack.c.h.b16 %v684
    %v767 = vunpack.c.l.b16 %v685
    %v768 = vunpack.c.h.b16 %v685
    %v769 = vunpack.c.l.b16 %v686
    %v770 = vunpack.c.h.b16 %v686
    %v771 = vunpack.c.l.b16 %v687
    %v772 = vunpack.c.h.b16 %v687
    %v773 = vunpack.c.l.b16 %v688
    %v774 = vunpack.c.h.b16 %v688
    %v775 = vunpack.c.l.b16 %v689
    %v776 = vunpack.c.h.b16 %v689
    %v777 = vunpack.c.l.b16 %v690
    %v778 = vunpack.c.h.b16 %v690
    %v779 = vunpack.c.l.b16 %v691
    %v780 = vunpack.c.h.b16 %v691
    %v781 = vunpack.c.l.b16 %v692
    %v782 = vunpack.c.h.b16 %v692
    %v783 = vunpack.c.l.b16 %v693
    %v784 = vunpack.c.h.b16 %v693
    %v785 = vunpack.c.l.b16 %v694
    %v786 = vunpack.c.h.b16 %v694
    %v787 = vunpack.c.l.b16 %v695
    %v788 = vunpack.c.h.b16 %v695
    %v789 = vunpack.c.l.b16 %v696
    %v790 = vunpack.c.h.b16 %v696
    %v791 = vunpack.c.l.b16 %v697
    %v792 = vunpack.c.h.b16 %v697
    %v793 = vunpack.c.l.b16 %v698
    %v794 = vunpack.c.h.b16 %v698
    %v795 = vunpack.c.l.b16 %v699
    %v796 = vunpack.c.h.b16 %v699
    %v797 = vunpack.c.l.b16 %v700
    %v798 = vunpack.c.h.b16 %v700
    %v799 = vunpack.c.l.b16 %v701
    %v800 = vunpack.c.h.b16 %v701
    %v801 = vunpack.c.l.b16 %v702
    %v802 = vunpack.c.h.b16 %v702
    %v803 = vunpack.c.l.b16 %v703
    %v804 = vunpack.c.h.b16 %v703
    %v805 = vunpack.c.l.b16 %v704
    %v806 = vunpack.c.h.b16 %v704
    %v807 = vpack.c.b16 %v747, %v743
    %v808 = vpack.c.b16 %v748, %v744
    %v809 = vpack.c.b16 %v749, %v745
    %v810 = vpack.c.b16 %v750, %v746
    %v811 = vpack.c.b16 %v755, %v751
    %v812 = vpack.c.b16 %v756, %v752
    %v813 = vpack.c.b16 %v757, %v753
    %v814 = vpack.c.b16 %v758, %v754
    %v815 = vpack.c.b16 %v763, %v759
    %v816 = vpack.c.b16 %v764, %v760
    %v817 = vpack.c.b16 %v765, %v761
    %v818 = vpack.c.b16 %v766, %v762
    %v819 = vpack.c.b16 %v771, %v767
    %v820 = vpack.c.b16 %v772, %v768
    %v821 = vpack.c.b16 %v773, %v769
    %v822 = vpack.c.b16 %v774, %v770
    %v823 = vpack.c.b16 %v779, %v775
    %v824 = vpack.c.b16 %v780, %v776
    %v825 = vpack.c.b16 %v781, %v777
    %v826 = vpack.c.b16 %v782, %v778
    %v827 = vpack.c.b16 %v787, %v783
    %v828 = vpack.c.b16 %v788, %v784
    %v829 = vpack.c.b16 %v789, %v785
    %v830 = vpack.c.b16 %v790, %v786
    %v831 = vpack.c.b16 %v795, %v791
    %v832 = vpack.c.b16 %v796, %v792
    %v833 = vpack.c.b16 %v797, %v793
    %v834 = vpack.c.b16 %v798, %v794
    %v835 = vpack.c.b16 %v803, %v799
    %v836 = vpack.c.b16 %v804, %v800
    %v837 = vpack.c.b16 %v805, %v801
    %v838 = vpack.c.b16 %v806, %v802
    %871 = vmatpush.bf16.msra.mxu0 %v835
    %872 = vmatpush.bf16.msra.mxu0 %v831
    %873 = vmatpush.bf16.msra.mxu0 %v827
    %874 = vmatpush.bf16.msra.mxu0 %v823
    %875 = vmatpush.bf16.msra.mxu0 %v819
    %876 = vmatpush.bf16.msra.mxu0 %v815
    %877 = vmatpush.bf16.msra.mxu0 %v811
    %878 = vmatpush.bf16.msra.mxu0 %v807
    %879 = vmatmul.bf16.gmra.mxu0 %v709
    %v880 = vpop.f32.mrf.mxu0
    %v881 = vadd.f32 0.0, %v880
    %v882 = vpop.f32.mrf.mxu0
    %v883 = vadd.f32 0.0, %v882
    %884 = vdwg.mxu0
    %885 = vmatpush.bf16.msra.mxu0 %v836
    %886 = vmatpush.bf16.msra.mxu0 %v832
    %887 = vmatpush.bf16.msra.mxu0 %v828
    %888 = vmatpush.bf16.msra.mxu0 %v824
    %889 = vmatpush.bf16.msra.mxu0 %v820
    %890 = vmatpush.bf16.msra.mxu0 %v816
    %891 = vmatpush.bf16.msra.mxu0 %v812
    %892 = vmatpush.bf16.msra.mxu0 %v808
    %893 = vmatmul.bf16.gmra.mxu0 %v709
    %v894 = vpop.f32.mrf.mxu0
    %v895 = vadd.f32 0.0, %v894
    %v896 = vpop.f32.mrf.mxu0
    %v897 = vadd.f32 0.0, %v896
    %898 = vdwg.mxu0
    %899 = vmatpush.bf16.msra.mxu0 %v837
    %900 = vmatpush.bf16.msra.mxu0 %v833
    %901 = vmatpush.bf16.msra.mxu0 %v829
    %902 = vmatpush.bf16.msra.mxu0 %v825
    %903 = vmatpush.bf16.msra.mxu0 %v821
    %904 = vmatpush.bf16.msra.mxu0 %v817
    %905 = vmatpush.bf16.msra.mxu0 %v813
    %906 = vmatpush.bf16.msra.mxu0 %v809
    %907 = vmatmul.bf16.gmra.mxu0 %v709
    %v908 = vpop.f32.mrf.mxu0
    %v909 = vadd.f32 0.0, %v908
    %v910 = vpop.f32.mrf.mxu0
    %v911 = vadd.f32 0.0, %v910
    %912 = vdwg.mxu0
    %913 = vmatpush.bf16.msra.mxu0 %v838
    %914 = vmatpush.bf16.msra.mxu0 %v834
    %915 = vmatpush.bf16.msra.mxu0 %v830
    %916 = vmatpush.bf16.msra.mxu0 %v826
    %917 = vmatpush.bf16.msra.mxu0 %v822
    %918 = vmatpush.bf16.msra.mxu0 %v818
    %919 = vmatpush.bf16.msra.mxu0 %v814
    %920 = vmatpush.bf16.msra.mxu0 %v810
    %921 = vmatmul.bf16.gmra.mxu0 %v709
    %v922 = vpop.f32.mrf.mxu0
    %v923 = vadd.f32 0.0, %v922
    %v924 = vpop.f32.mrf.mxu0
    %v925 = vadd.f32 0.0, %v924
    %926 = vdwg.mxu0
    %v943 = vunpack.c.l.b16 %v143
    %v944 = vunpack.c.h.b16 %v143
    %v945 = vunpack.c.l.b16 %v144
    %v946 = vunpack.c.h.b16 %v144
    %v947 = vunpack.c.l.b16 %v145
    %v948 = vunpack.c.h.b16 %v145
    %v949 = vunpack.c.l.b16 %v146
    %v950 = vunpack.c.h.b16 %v146
    %v951 = vunpack.c.l.b16 %v147
    %v952 = vunpack.c.h.b16 %v147
    %v953 = vunpack.c.l.b16 %v148
    %v954 = vunpack.c.h.b16 %v148
    %v955 = vunpack.c.l.b16 %v149
    %v956 = vunpack.c.h.b16 %v149
    %v957 = vunpack.c.l.b16 %v150
    %v958 = vunpack.c.h.b16 %v150
    %v959 = vunpack.c.l.b16 %v151
    %v960 = vunpack.c.h.b16 %v151
    %v961 = vunpack.c.l.b16 %v152
    %v962 = vunpack.c.h.b16 %v152
    %v963 = vunpack.c.l.b16 %v153
    %v964 = vunpack.c.h.b16 %v153
    %v965 = vunpack.c.l.b16 %v154
    %v966 = vunpack.c.h.b16 %v154
    %v967 = vunpack.c.l.b16 %v155
    %v968 = vunpack.c.h.b16 %v155
    %v969 = vunpack.c.l.b16 %v156
    %v970 = vunpack.c.h.b16 %v156
    %v971 = vunpack.c.l.b16 %v157
    %v972 = vunpack.c.h.b16 %v157
    %v973 = vunpack.c.l.b16 %v158
    %v974 = vunpack.c.h.b16 %v158
    %v975 = vpack.c.b16 %v959, %v943
    %v976 = vpack.c.b16 %v960, %v944
    %v977 = vpack.c.b16 %v961, %v945
    %v978 = vpack.c.b16 %v962, %v946
    %v979 = vpack.c.b16 %v963, %v947
    %v980 = vpack.c.b16 %v964, %v948
    %v981 = vpack.c.b16 %v965, %v949
    %v982 = vpack.c.b16 %v966, %v950
    %v983 = vpack.c.b16 %v967, %v951
    %v984 = vpack.c.b16 %v968, %v952
    %v985 = vpack.c.b16 %v969, %v953
    %v986 = vpack.c.b16 %v970, %v954
    %v987 = vpack.c.b16 %v971, %v955
    %v988 = vpack.c.b16 %v972, %v956
    %v989 = vpack.c.b16 %v973, %v957
    %v990 = vpack.c.b16 %v974, %v958
    %v1519 = vunpack.c.l.b16 %v159
    %v1520 = vunpack.c.h.b16 %v159
    %v1521 = vunpack.c.l.b16 %v160
    %v1522 = vunpack.c.h.b16 %v160
    %v1523 = vunpack.c.l.b16 %v161
    %v1524 = vunpack.c.h.b16 %v161
    %v1525 = vunpack.c.l.b16 %v162
    %v1526 = vunpack.c.h.b16 %v162
    %v1527 = vunpack.c.l.b16 %v163
    %v1528 = vunpack.c.h.b16 %v163
    %v1529 = vunpack.c.l.b16 %v164
    %v1530 = vunpack.c.h.b16 %v164
    %v1531 = vunpack.c.l.b16 %v165
    %v1532 = vunpack.c.h.b16 %v165
    %v1533 = vunpack.c.l.b16 %v166
    %v1534 = vunpack.c.h.b16 %v166
    %v1535 = vunpack.c.l.b16 %v167
    %v1536 = vunpack.c.h.b16 %v167
    %v1537 = vunpack.c.l.b16 %v168
    %v1538 = vunpack.c.h.b16 %v168
    %v1539 = vunpack.c.l.b16 %v169
    %v1540 = vunpack.c.h.b16 %v169
    %v1541 = vunpack.c.l.b16 %v170
    %v1542 = vunpack.c.h.b16 %v170
    %v1543 = vunpack.c.l.b16 %v171
    %v1544 = vunpack.c.h.b16 %v171
    %v1545 = vunpack.c.l.b16 %v172
    %v1546 = vunpack.c.h.b16 %v172
    %v1547 = vunpack.c.l.b16 %v173
    %v1548 = vunpack.c.h.b16 %v173
    %v1549 = vunpack.c.l.b16 %v174
    %v1550 = vunpack.c.h.b16 %v174
    %v1551 = vunpack.c.l.b16 %v175
    %v1552 = vunpack.c.h.b16 %v175
    %v1553 = vunpack.c.l.b16 %v176
    %v1554 = vunpack.c.h.b16 %v176
    %v1555 = vunpack.c.l.b16 %v177
    %v1556 = vunpack.c.h.b16 %v177
    %v1557 = vunpack.c.l.b16 %v178
    %v1558 = vunpack.c.h.b16 %v178
    %v1559 = vunpack.c.l.b16 %v179
    %v1560 = vunpack.c.h.b16 %v179
    %v1561 = vunpack.c.l.b16 %v180
    %v1562 = vunpack.c.h.b16 %v180
    %v1563 = vunpack.c.l.b16 %v181
    %v1564 = vunpack.c.h.b16 %v181
    %v1565 = vunpack.c.l.b16 %v182
    %v1566 = vunpack.c.h.b16 %v182
    %v1567 = vunpack.c.l.b16 %v183
    %v1568 = vunpack.c.h.b16 %v183
    %v1569 = vunpack.c.l.b16 %v184
    %v1570 = vunpack.c.h.b16 %v184
    %v1571 = vunpack.c.l.b16 %v185
    %v1572 = vunpack.c.h.b16 %v185
    %v1573 = vunpack.c.l.b16 %v186
    %v1574 = vunpack.c.h.b16 %v186
    %v1575 = vunpack.c.l.b16 %v187
    %v1576 = vunpack.c.h.b16 %v187
    %v1577 = vunpack.c.l.b16 %v188
    %v1578 = vunpack.c.h.b16 %v188
    %v1579 = vunpack.c.l.b16 %v189
    %v1580 = vunpack.c.h.b16 %v189
    %v1581 = vunpack.c.l.b16 %v190
    %v1582 = vunpack.c.h.b16 %v190
    %v1583 = vunpack.c.l.b16 %v191
    %v1584 = vunpack.c.h.b16 %v191
    %v1585 = vunpack.c.l.b16 %v192
    %v1586 = vunpack.c.h.b16 %v192
    %v1587 = vunpack.c.l.b16 %v193
    %v1588 = vunpack.c.h.b16 %v193
    %v1589 = vunpack.c.l.b16 %v194
    %v1590 = vunpack.c.h.b16 %v194
    %v1591 = vunpack.c.l.b16 %v195
    %v1592 = vunpack.c.h.b16 %v195
    %v1593 = vunpack.c.l.b16 %v196
    %v1594 = vunpack.c.h.b16 %v196
    %v1595 = vunpack.c.l.b16 %v197
    %v1596 = vunpack.c.h.b16 %v197
    %v1597 = vunpack.c.l.b16 %v198
    %v1598 = vunpack.c.h.b16 %v198
    %v1599 = vunpack.c.l.b16 %v199
    %v1600 = vunpack.c.h.b16 %v199
    %v1601 = vunpack.c.l.b16 %v200
    %v1602 = vunpack.c.h.b16 %v200
    %v1603 = vunpack.c.l.b16 %v201
    %v1604 = vunpack.c.h.b16 %v201
    %v1605 = vunpack.c.l.b16 %v202
    %v1606 = vunpack.c.h.b16 %v202
    %v1607 = vunpack.c.l.b16 %v203
    %v1608 = vunpack.c.h.b16 %v203
    %v1609 = vunpack.c.l.b16 %v204
    %v1610 = vunpack.c.h.b16 %v204
    %v1611 = vunpack.c.l.b16 %v205
    %v1612 = vunpack.c.h.b16 %v205
    %v1613 = vunpack.c.l.b16 %v206
    %v1614 = vunpack.c.h.b16 %v206
    %v1615 = vunpack.c.l.b16 %v207
    %v1616 = vunpack.c.h.b16 %v207
    %v1617 = vunpack.c.l.b16 %v208
    %v1618 = vunpack.c.h.b16 %v208
    %v1619 = vunpack.c.l.b16 %v209
    %v1620 = vunpack.c.h.b16 %v209
    %v1621 = vunpack.c.l.b16 %v210
    %v1622 = vunpack.c.h.b16 %v210
    %v1623 = vunpack.c.l.b16 %v211
    %v1624 = vunpack.c.h.b16 %v211
    %v1625 = vunpack.c.l.b16 %v212
    %v1626 = vunpack.c.h.b16 %v212
    %v1627 = vunpack.c.l.b16 %v213
    %v1628 = vunpack.c.h.b16 %v213
    %v1629 = vunpack.c.l.b16 %v214
    %v1630 = vunpack.c.h.b16 %v214
    %v1631 = vunpack.c.l.b16 %v215
    %v1632 = vunpack.c.h.b16 %v215
    %v1633 = vunpack.c.l.b16 %v216
    %v1634 = vunpack.c.h.b16 %v216
    %v1635 = vunpack.c.l.b16 %v217
    %v1636 = vunpack.c.h.b16 %v217
    %v1637 = vunpack.c.l.b16 %v218
    %v1638 = vunpack.c.h.b16 %v218
    %v1639 = vunpack.c.l.b16 %v219
    %v1640 = vunpack.c.h.b16 %v219
    %v1641 = vunpack.c.l.b16 %v220
    %v1642 = vunpack.c.h.b16 %v220
    %v1643 = vunpack.c.l.b16 %v221
    %v1644 = vunpack.c.h.b16 %v221
    %v1645 = vunpack.c.l.b16 %v222
    %v1646 = vunpack.c.h.b16 %v222
    %v1647 = vunpack.c.l.b16 %v223
    %v1648 = vunpack.c.h.b16 %v223
    %v1649 = vunpack.c.l.b16 %v224
    %v1650 = vunpack.c.h.b16 %v224
    %v1651 = vunpack.c.l.b16 %v225
    %v1652 = vunpack.c.h.b16 %v225
    %v1653 = vunpack.c.l.b16 %v226
    %v1654 = vunpack.c.h.b16 %v226
    %v1655 = vunpack.c.l.b16 %v227
    %v1656 = vunpack.c.h.b16 %v227
    %v1657 = vunpack.c.l.b16 %v228
    %v1658 = vunpack.c.h.b16 %v228
    %v1659 = vunpack.c.l.b16 %v229
    %v1660 = vunpack.c.h.b16 %v229
    %v1661 = vunpack.c.l.b16 %v230
    %v1662 = vunpack.c.h.b16 %v230
    %v1663 = vunpack.c.l.b16 %v231
    %v1664 = vunpack.c.h.b16 %v231
    %v1665 = vunpack.c.l.b16 %v232
    %v1666 = vunpack.c.h.b16 %v232
    %v1667 = vunpack.c.l.b16 %v233
    %v1668 = vunpack.c.h.b16 %v233
    %v1669 = vunpack.c.l.b16 %v234
    %v1670 = vunpack.c.h.b16 %v234
    %v1671 = vunpack.c.l.b16 %v235
    %v1672 = vunpack.c.h.b16 %v235
    %v1673 = vunpack.c.l.b16 %v236
    %v1674 = vunpack.c.h.b16 %v236
    %v1675 = vunpack.c.l.b16 %v237
    %v1676 = vunpack.c.h.b16 %v237
    %v1677 = vunpack.c.l.b16 %v238
    %v1678 = vunpack.c.h.b16 %v238
    %v1679 = vunpack.c.l.b16 %v239
    %v1680 = vunpack.c.h.b16 %v239
    %v1681 = vunpack.c.l.b16 %v240
    %v1682 = vunpack.c.h.b16 %v240
    %v1683 = vunpack.c.l.b16 %v241
    %v1684 = vunpack.c.h.b16 %v241
    %v1685 = vunpack.c.l.b16 %v242
    %v1686 = vunpack.c.h.b16 %v242
    %v1687 = vunpack.c.l.b16 %v243
    %v1688 = vunpack.c.h.b16 %v243
    %v1689 = vunpack.c.l.b16 %v244
    %v1690 = vunpack.c.h.b16 %v244
    %v1691 = vunpack.c.l.b16 %v245
    %v1692 = vunpack.c.h.b16 %v245
    %v1693 = vunpack.c.l.b16 %v246
    %v1694 = vunpack.c.h.b16 %v246
    %v1695 = vunpack.c.l.b16 %v247
    %v1696 = vunpack.c.h.b16 %v247
    %v1697 = vunpack.c.l.b16 %v248
    %v1698 = vunpack.c.h.b16 %v248
    %v1699 = vunpack.c.l.b16 %v249
    %v1700 = vunpack.c.h.b16 %v249
    %v1701 = vunpack.c.l.b16 %v250
    %v1702 = vunpack.c.h.b16 %v250
    %v1703 = vunpack.c.l.b16 %v251
    %v1704 = vunpack.c.h.b16 %v251
    %v1705 = vunpack.c.l.b16 %v252
    %v1706 = vunpack.c.h.b16 %v252
    %v1707 = vunpack.c.l.b16 %v253
    %v1708 = vunpack.c.h.b16 %v253
    %v1709 = vunpack.c.l.b16 %v254
    %v1710 = vunpack.c.h.b16 %v254
    %v1711 = vunpack.c.l.b16 %v255
    %v1712 = vunpack.c.h.b16 %v255
    %v1713 = vunpack.c.l.b16 %v256
    %v1714 = vunpack.c.h.b16 %v256
    %v1715 = vunpack.c.l.b16 %v257
    %v1716 = vunpack.c.h.b16 %v257
    %v1717 = vunpack.c.l.b16 %v258
    %v1718 = vunpack.c.h.b16 %v258
    %v1719 = vunpack.c.l.b16 %v259
    %v1720 = vunpack.c.h.b16 %v259
    %v1721 = vunpack.c.l.b16 %v260
    %v1722 = vunpack.c.h.b16 %v260
    %v1723 = vunpack.c.l.b16 %v261
    %v1724 = vunpack.c.h.b16 %v261
    %v1725 = vunpack.c.l.b16 %v262
    %v1726 = vunpack.c.h.b16 %v262
    %v1727 = vunpack.c.l.b16 %v263
    %v1728 = vunpack.c.h.b16 %v263
    %v1729 = vunpack.c.l.b16 %v264
    %v1730 = vunpack.c.h.b16 %v264
    %v1731 = vunpack.c.l.b16 %v265
    %v1732 = vunpack.c.h.b16 %v265
    %v1733 = vunpack.c.l.b16 %v266
    %v1734 = vunpack.c.h.b16 %v266
    %v1735 = vunpack.c.l.b16 %v267
    %v1736 = vunpack.c.h.b16 %v267
    %v1737 = vunpack.c.l.b16 %v268
    %v1738 = vunpack.c.h.b16 %v268
    %v1739 = vunpack.c.l.b16 %v269
    %v1740 = vunpack.c.h.b16 %v269
    %v1741 = vunpack.c.l.b16 %v270
    %v1742 = vunpack.c.h.b16 %v270
    %v1743 = vunpack.c.l.b16 %v271
    %v1744 = vunpack.c.h.b16 %v271
    %v1745 = vunpack.c.l.b16 %v272
    %v1746 = vunpack.c.h.b16 %v272
    %v1747 = vunpack.c.l.b16 %v273
    %v1748 = vunpack.c.h.b16 %v273
    %v1749 = vunpack.c.l.b16 %v274
    %v1750 = vunpack.c.h.b16 %v274
    %v1751 = vunpack.c.l.b16 %v275
    %v1752 = vunpack.c.h.b16 %v275
    %v1753 = vunpack.c.l.b16 %v276
    %v1754 = vunpack.c.h.b16 %v276
    %v1755 = vunpack.c.l.b16 %v277
    %v1756 = vunpack.c.h.b16 %v277
    %v1757 = vunpack.c.l.b16 %v278
    %v1758 = vunpack.c.h.b16 %v278
    %v1759 = vunpack.c.l.b16 %v279
    %v1760 = vunpack.c.h.b16 %v279
    %v1761 = vunpack.c.l.b16 %v280
    %v1762 = vunpack.c.h.b16 %v280
    %v1763 = vunpack.c.l.b16 %v281
    %v1764 = vunpack.c.h.b16 %v281
    %v1765 = vunpack.c.l.b16 %v282
    %v1766 = vunpack.c.h.b16 %v282
    %v1767 = vunpack.c.l.b16 %v283
    %v1768 = vunpack.c.h.b16 %v283
    %v1769 = vunpack.c.l.b16 %v284
    %v1770 = vunpack.c.h.b16 %v284
    %v1771 = vunpack.c.l.b16 %v285
    %v1772 = vunpack.c.h.b16 %v285
    %v1773 = vunpack.c.l.b16 %v286
    %v1774 = vunpack.c.h.b16 %v286
    %v1775 = vunpack.c.l.b16 %v287
    %v1776 = vunpack.c.h.b16 %v287
    %v1777 = vunpack.c.l.b16 %v288
    %v1778 = vunpack.c.h.b16 %v288
    %v1779 = vunpack.c.l.b16 %v289
    %v1780 = vunpack.c.h.b16 %v289
    %v1781 = vunpack.c.l.b16 %v290
    %v1782 = vunpack.c.h.b16 %v290
    %v1783 = vunpack.c.l.b16 %v291
    %v1784 = vunpack.c.h.b16 %v291
    %v1785 = vunpack.c.l.b16 %v292
    %v1786 = vunpack.c.h.b16 %v292
    %v1787 = vunpack.c.l.b16 %v293
    %v1788 = vunpack.c.h.b16 %v293
    %v1789 = vunpack.c.l.b16 %v294
    %v1790 = vunpack.c.h.b16 %v294
    %v1791 = vunpack.c.l.b16 %v295
    %v1792 = vunpack.c.h.b16 %v295
    %v1793 = vunpack.c.l.b16 %v296
    %v1794 = vunpack.c.h.b16 %v296
    %v1795 = vunpack.c.l.b16 %v297
    %v1796 = vunpack.c.h.b16 %v297
    %v1797 = vunpack.c.l.b16 %v298
    %v1798 = vunpack.c.h.b16 %v298
    %v1799 = vunpack.c.l.b16 %v299
    %v1800 = vunpack.c.h.b16 %v299
    %v1801 = vunpack.c.l.b16 %v300
    %v1802 = vunpack.c.h.b16 %v300
    %v1803 = vunpack.c.l.b16 %v301
    %v1804 = vunpack.c.h.b16 %v301
    %v1805 = vunpack.c.l.b16 %v302
    %v1806 = vunpack.c.h.b16 %v302
    %v1807 = vunpack.c.l.b16 %v303
    %v1808 = vunpack.c.h.b16 %v303
    %v1809 = vunpack.c.l.b16 %v304
    %v1810 = vunpack.c.h.b16 %v304
    %v1811 = vunpack.c.l.b16 %v305
    %v1812 = vunpack.c.h.b16 %v305
    %v1813 = vunpack.c.l.b16 %v306
    %v1814 = vunpack.c.h.b16 %v306
    %v1815 = vunpack.c.l.b16 %v307
    %v1816 = vunpack.c.h.b16 %v307
    %v1817 = vunpack.c.l.b16 %v308
    %v1818 = vunpack.c.h.b16 %v308
    %v1819 = vunpack.c.l.b16 %v309
    %v1820 = vunpack.c.h.b16 %v309
    %v1821 = vunpack.c.l.b16 %v310
    %v1822 = vunpack.c.h.b16 %v310
    %v1823 = vunpack.c.l.b16 %v311
    %v1824 = vunpack.c.h.b16 %v311
    %v1825 = vunpack.c.l.b16 %v312
    %v1826 = vunpack.c.h.b16 %v312
    %v1827 = vunpack.c.l.b16 %v313
    %v1828 = vunpack.c.h.b16 %v313
    %v1829 = vunpack.c.l.b16 %v314
    %v1830 = vunpack.c.h.b16 %v314
    %v1831 = vunpack.c.l.b16 %v315
    %v1832 = vunpack.c.h.b16 %v315
    %v1833 = vunpack.c.l.b16 %v316
    %v1834 = vunpack.c.h.b16 %v316
    %v1835 = vunpack.c.l.b16 %v317
    %v1836 = vunpack.c.h.b16 %v317
    %v1837 = vunpack.c.l.b16 %v318
    %v1838 = vunpack.c.h.b16 %v318
    %v1839 = vunpack.c.l.b16 %v319
    %v1840 = vunpack.c.h.b16 %v319
    %v1841 = vunpack.c.l.b16 %v320
    %v1842 = vunpack.c.h.b16 %v320
    %v1843 = vunpack.c.l.b16 %v321
    %v1844 = vunpack.c.h.b16 %v321
    %v1845 = vunpack.c.l.b16 %v322
    %v1846 = vunpack.c.h.b16 %v322
    %v1847 = vunpack.c.l.b16 %v323
    %v1848 = vunpack.c.h.b16 %v323
    %v1849 = vunpack.c.l.b16 %v324
    %v1850 = vunpack.c.h.b16 %v324
    %v1851 = vunpack.c.l.b16 %v325
    %v1852 = vunpack.c.h.b16 %v325
    %v1853 = vunpack.c.l.b16 %v326
    %v1854 = vunpack.c.h.b16 %v326
    %v1855 = vunpack.c.l.b16 %v327
    %v1856 = vunpack.c.h.b16 %v327
    %v1857 = vunpack.c.l.b16 %v328
    %v1858 = vunpack.c.h.b16 %v328
    %v1859 = vunpack.c.l.b16 %v329
    %v1860 = vunpack.c.h.b16 %v329
    %v1861 = vunpack.c.l.b16 %v330
    %v1862 = vunpack.c.h.b16 %v330
    %v1863 = vunpack.c.l.b16 %v331
    %v1864 = vunpack.c.h.b16 %v331
    %v1865 = vunpack.c.l.b16 %v332
    %v1866 = vunpack.c.h.b16 %v332
    %v1867 = vunpack.c.l.b16 %v333
    %v1868 = vunpack.c.h.b16 %v333
    %v1869 = vunpack.c.l.b16 %v334
    %v1870 = vunpack.c.h.b16 %v334
    %v1871 = vunpack.c.l.b16 %v335
    %v1872 = vunpack.c.h.b16 %v335
    %v1873 = vunpack.c.l.b16 %v336
    %v1874 = vunpack.c.h.b16 %v336
    %v1875 = vunpack.c.l.b16 %v337
    %v1876 = vunpack.c.h.b16 %v337
    %v1877 = vunpack.c.l.b16 %v338
    %v1878 = vunpack.c.h.b16 %v338
    %v1879 = vunpack.c.l.b16 %v339
    %v1880 = vunpack.c.h.b16 %v339
    %v1881 = vunpack.c.l.b16 %v340
    %v1882 = vunpack.c.h.b16 %v340
    %v1883 = vunpack.c.l.b16 %v341
    %v1884 = vunpack.c.h.b16 %v341
    %v1885 = vunpack.c.l.b16 %v342
    %v1886 = vunpack.c.h.b16 %v342
    %v1887 = vunpack.c.l.b16 %v343
    %v1888 = vunpack.c.h.b16 %v343
    %v1889 = vunpack.c.l.b16 %v344
    %v1890 = vunpack.c.h.b16 %v344
    %v1891 = vunpack.c.l.b16 %v345
    %v1892 = vunpack.c.h.b16 %v345
    %v1893 = vunpack.c.l.b16 %v346
    %v1894 = vunpack.c.h.b16 %v346
    %v1895 = vunpack.c.l.b16 %v347
    %v1896 = vunpack.c.h.b16 %v347
    %v1897 = vunpack.c.l.b16 %v348
    %v1898 = vunpack.c.h.b16 %v348
    %v1899 = vunpack.c.l.b16 %v349
    %v1900 = vunpack.c.h.b16 %v349
    %v1901 = vunpack.c.l.b16 %v350
    %v1902 = vunpack.c.h.b16 %v350
    %v1903 = vunpack.c.l.b16 %v351
    %v1904 = vunpack.c.h.b16 %v351
    %v1905 = vunpack.c.l.b16 %v352
    %v1906 = vunpack.c.h.b16 %v352
    %v1907 = vunpack.c.l.b16 %v353
    %v1908 = vunpack.c.h.b16 %v353
    %v1909 = vunpack.c.l.b16 %v354
    %v1910 = vunpack.c.h.b16 %v354
    %v1911 = vunpack.c.l.b16 %v355
    %v1912 = vunpack.c.h.b16 %v355
    %v1913 = vunpack.c.l.b16 %v356
    %v1914 = vunpack.c.h.b16 %v356
    %v1915 = vunpack.c.l.b16 %v357
    %v1916 = vunpack.c.h.b16 %v357
    %v1917 = vunpack.c.l.b16 %v358
    %v1918 = vunpack.c.h.b16 %v358
    %v1919 = vunpack.c.l.b16 %v359
    %v1920 = vunpack.c.h.b16 %v359
    %v1921 = vunpack.c.l.b16 %v360
    %v1922 = vunpack.c.h.b16 %v360
    %v1923 = vunpack.c.l.b16 %v361
    %v1924 = vunpack.c.h.b16 %v361
    %v1925 = vunpack.c.l.b16 %v362
    %v1926 = vunpack.c.h.b16 %v362
    %v1927 = vunpack.c.l.b16 %v363
    %v1928 = vunpack.c.h.b16 %v363
    %v1929 = vunpack.c.l.b16 %v364
    %v1930 = vunpack.c.h.b16 %v364
    %v1931 = vunpack.c.l.b16 %v365
    %v1932 = vunpack.c.h.b16 %v365
    %v1933 = vunpack.c.l.b16 %v366
    %v1934 = vunpack.c.h.b16 %v366
    %v1935 = vunpack.c.l.b16 %v367
    %v1936 = vunpack.c.h.b16 %v367
    %v1937 = vunpack.c.l.b16 %v368
    %v1938 = vunpack.c.h.b16 %v368
    %v1939 = vunpack.c.l.b16 %v369
    %v1940 = vunpack.c.h.b16 %v369
    %v1941 = vunpack.c.l.b16 %v370
    %v1942 = vunpack.c.h.b16 %v370
    %v1943 = vunpack.c.l.b16 %v371
    %v1944 = vunpack.c.h.b16 %v371
    %v1945 = vunpack.c.l.b16 %v372
    %v1946 = vunpack.c.h.b16 %v372
    %v1947 = vunpack.c.l.b16 %v373
    %v1948 = vunpack.c.h.b16 %v373
    %v1949 = vunpack.c.l.b16 %v374
    %v1950 = vunpack.c.h.b16 %v374
    %v1951 = vunpack.c.l.b16 %v375
    %v1952 = vunpack.c.h.b16 %v375
    %v1953 = vunpack.c.l.b16 %v376
    %v1954 = vunpack.c.h.b16 %v376
    %v1955 = vunpack.c.l.b16 %v377
    %v1956 = vunpack.c.h.b16 %v377
    %v1957 = vunpack.c.l.b16 %v378
    %v1958 = vunpack.c.h.b16 %v378
    %v1959 = vunpack.c.l.b16 %v379
    %v1960 = vunpack.c.h.b16 %v379
    %v1961 = vunpack.c.l.b16 %v380
    %v1962 = vunpack.c.h.b16 %v380
    %v1963 = vunpack.c.l.b16 %v381
    %v1964 = vunpack.c.h.b16 %v381
    %v1965 = vunpack.c.l.b16 %v382
    %v1966 = vunpack.c.h.b16 %v382
    %v1967 = vunpack.c.l.b16 %v383
    %v1968 = vunpack.c.h.b16 %v383
    %v1969 = vunpack.c.l.b16 %v384
    %v1970 = vunpack.c.h.b16 %v384
    %v1971 = vunpack.c.l.b16 %v385
    %v1972 = vunpack.c.h.b16 %v385
    %v1973 = vunpack.c.l.b16 %v386
    %v1974 = vunpack.c.h.b16 %v386
    %v1975 = vunpack.c.l.b16 %v387
    %v1976 = vunpack.c.h.b16 %v387
    %v1977 = vunpack.c.l.b16 %v388
    %v1978 = vunpack.c.h.b16 %v388
    %v1979 = vunpack.c.l.b16 %v389
    %v1980 = vunpack.c.h.b16 %v389
    %v1981 = vunpack.c.l.b16 %v390
    %v1982 = vunpack.c.h.b16 %v390
    %v1983 = vunpack.c.l.b16 %v391
    %v1984 = vunpack.c.h.b16 %v391
    %v1985 = vunpack.c.l.b16 %v392
    %v1986 = vunpack.c.h.b16 %v392
    %v1987 = vunpack.c.l.b16 %v393
    %v1988 = vunpack.c.h.b16 %v393
    %v1989 = vunpack.c.l.b16 %v394
    %v1990 = vunpack.c.h.b16 %v394
    %v1991 = vunpack.c.l.b16 %v395
    %v1992 = vunpack.c.h.b16 %v395
    %v1993 = vunpack.c.l.b16 %v396
    %v1994 = vunpack.c.h.b16 %v396
    %v1995 = vunpack.c.l.b16 %v397
    %v1996 = vunpack.c.h.b16 %v397
    %v1997 = vunpack.c.l.b16 %v398
    %v1998 = vunpack.c.h.b16 %v398
    %v1999 = vunpack.c.l.b16 %v399
    %v2000 = vunpack.c.h.b16 %v399
    %v2001 = vunpack.c.l.b16 %v400
    %v2002 = vunpack.c.h.b16 %v400
    %v2003 = vunpack.c.l.b16 %v401
    %v2004 = vunpack.c.h.b16 %v401
    %v2005 = vunpack.c.l.b16 %v402
    %v2006 = vunpack.c.h.b16 %v402
    %v2007 = vunpack.c.l.b16 %v403
    %v2008 = vunpack.c.h.b16 %v403
    %v2009 = vunpack.c.l.b16 %v404
    %v2010 = vunpack.c.h.b16 %v404
    %v2011 = vunpack.c.l.b16 %v405
    %v2012 = vunpack.c.h.b16 %v405
    %v2013 = vunpack.c.l.b16 %v406
    %v2014 = vunpack.c.h.b16 %v406
    %v2015 = vunpack.c.l.b16 %v407
    %v2016 = vunpack.c.h.b16 %v407
    %v2017 = vunpack.c.l.b16 %v408
    %v2018 = vunpack.c.h.b16 %v408
    %v2019 = vunpack.c.l.b16 %v409
    %v2020 = vunpack.c.h.b16 %v409
    %v2021 = vunpack.c.l.b16 %v410
    %v2022 = vunpack.c.h.b16 %v410
    %v2023 = vunpack.c.l.b16 %v411
    %v2024 = vunpack.c.h.b16 %v411
    %v2025 = vunpack.c.l.b16 %v412
    %v2026 = vunpack.c.h.b16 %v412
    %v2027 = vunpack.c.l.b16 %v413
    %v2028 = vunpack.c.h.b16 %v413
    %v2029 = vunpack.c.l.b16 %v414
    %v2030 = vunpack.c.h.b16 %v414
    %v2031 = vunpack.c.l.b16 %v415
    %v2032 = vunpack.c.h.b16 %v415
    %v2033 = vunpack.c.l.b16 %v416
    %v2034 = vunpack.c.h.b16 %v416
    %v2035 = vunpack.c.l.b16 %v417
    %v2036 = vunpack.c.h.b16 %v417
    %v2037 = vunpack.c.l.b16 %v418
    %v2038 = vunpack.c.h.b16 %v418
    %v2039 = vunpack.c.l.b16 %v419
    %v2040 = vunpack.c.h.b16 %v419
    %v2041 = vunpack.c.l.b16 %v420
    %v2042 = vunpack.c.h.b16 %v420
    %v2043 = vunpack.c.l.b16 %v421
    %v2044 = vunpack.c.h.b16 %v421
    %v2045 = vunpack.c.l.b16 %v422
    %v2046 = vunpack.c.h.b16 %v422
    %v2047 = vunpack.c.l.b16 %v423
    %v2048 = vunpack.c.h.b16 %v423
    %v2049 = vunpack.c.l.b16 %v424
    %v2050 = vunpack.c.h.b16 %v424
    %v2051 = vunpack.c.l.b16 %v425
    %v2052 = vunpack.c.h.b16 %v425
    %v2053 = vunpack.c.l.b16 %v426
    %v2054 = vunpack.c.h.b16 %v426
    %v2055 = vunpack.c.l.b16 %v427
    %v2056 = vunpack.c.h.b16 %v427
    %v2057 = vunpack.c.l.b16 %v428
    %v2058 = vunpack.c.h.b16 %v428
    %v2059 = vunpack.c.l.b16 %v429
    %v2060 = vunpack.c.h.b16 %v429
    %v2061 = vunpack.c.l.b16 %v430
    %v2062 = vunpack.c.h.b16 %v430
    %v2063 = vunpack.c.l.b16 %v431
    %v2064 = vunpack.c.h.b16 %v431
    %v2065 = vunpack.c.l.b16 %v432
    %v2066 = vunpack.c.h.b16 %v432
    %v2067 = vunpack.c.l.b16 %v433
    %v2068 = vunpack.c.h.b16 %v433
    %v2069 = vunpack.c.l.b16 %v434
    %v2070 = vunpack.c.h.b16 %v434
    %v2071 = vunpack.c.l.b16 %v435
    %v2072 = vunpack.c.h.b16 %v435
    %v2073 = vunpack.c.l.b16 %v436
    %v2074 = vunpack.c.h.b16 %v436
    %v2075 = vunpack.c.l.b16 %v437
    %v2076 = vunpack.c.h.b16 %v437
    %v2077 = vunpack.c.l.b16 %v438
    %v2078 = vunpack.c.h.b16 %v438
    %v2079 = vunpack.c.l.b16 %v439
    %v2080 = vunpack.c.h.b16 %v439
    %v2081 = vunpack.c.l.b16 %v440
    %v2082 = vunpack.c.h.b16 %v440
    %v2083 = vunpack.c.l.b16 %v441
    %v2084 = vunpack.c.h.b16 %v441
    %v2085 = vunpack.c.l.b16 %v442
    %v2086 = vunpack.c.h.b16 %v442
    %v2087 = vunpack.c.l.b16 %v443
    %v2088 = vunpack.c.h.b16 %v443
    %v2089 = vunpack.c.l.b16 %v444
    %v2090 = vunpack.c.h.b16 %v444
    %v2091 = vunpack.c.l.b16 %v445
    %v2092 = vunpack.c.h.b16 %v445
    %v2093 = vunpack.c.l.b16 %v446
    %v2094 = vunpack.c.h.b16 %v446
    %v2095 = vunpack.c.l.b16 %v447
    %v2096 = vunpack.c.h.b16 %v447
    %v2097 = vunpack.c.l.b16 %v448
    %v2098 = vunpack.c.h.b16 %v448
    %v2099 = vunpack.c.l.b16 %v449
    %v2100 = vunpack.c.h.b16 %v449
    %v2101 = vunpack.c.l.b16 %v450
    %v2102 = vunpack.c.h.b16 %v450
    %v2103 = vunpack.c.l.b16 %v451
    %v2104 = vunpack.c.h.b16 %v451
    %v2105 = vunpack.c.l.b16 %v452
    %v2106 = vunpack.c.h.b16 %v452
    %v2107 = vunpack.c.l.b16 %v453
    %v2108 = vunpack.c.h.b16 %v453
    %v2109 = vunpack.c.l.b16 %v454
    %v2110 = vunpack.c.h.b16 %v454
    %v2111 = vunpack.c.l.b16 %v455
    %v2112 = vunpack.c.h.b16 %v455
    %v2113 = vunpack.c.l.b16 %v456
    %v2114 = vunpack.c.h.b16 %v456
    %v2115 = vunpack.c.l.b16 %v457
    %v2116 = vunpack.c.h.b16 %v457
    %v2117 = vunpack.c.l.b16 %v458
    %v2118 = vunpack.c.h.b16 %v458
    %v2119 = vunpack.c.l.b16 %v459
    %v2120 = vunpack.c.h.b16 %v459
    %v2121 = vunpack.c.l.b16 %v460
    %v2122 = vunpack.c.h.b16 %v460
    %v2123 = vunpack.c.l.b16 %v461
    %v2124 = vunpack.c.h.b16 %v461
    %v2125 = vunpack.c.l.b16 %v462
    %v2126 = vunpack.c.h.b16 %v462
    %v2127 = vunpack.c.l.b16 %v463
    %v2128 = vunpack.c.h.b16 %v463
    %v2129 = vunpack.c.l.b16 %v464
    %v2130 = vunpack.c.h.b16 %v464
    %v2131 = vunpack.c.l.b16 %v465
    %v2132 = vunpack.c.h.b16 %v465
    %v2133 = vunpack.c.l.b16 %v466
    %v2134 = vunpack.c.h.b16 %v466
    %v2135 = vunpack.c.l.b16 %v467
    %v2136 = vunpack.c.h.b16 %v467
    %v2137 = vunpack.c.l.b16 %v468
    %v2138 = vunpack.c.h.b16 %v468
    %v2139 = vunpack.c.l.b16 %v469
    %v2140 = vunpack.c.h.b16 %v469
    %v2141 = vunpack.c.l.b16 %v470
    %v2142 = vunpack.c.h.b16 %v470
    %v2143 = vunpack.c.l.b16 %v471
    %v2144 = vunpack.c.h.b16 %v471
    %v2145 = vunpack.c.l.b16 %v472
    %v2146 = vunpack.c.h.b16 %v472
    %v2147 = vunpack.c.l.b16 %v473
    %v2148 = vunpack.c.h.b16 %v473
    %v2149 = vunpack.c.l.b16 %v474
    %v2150 = vunpack.c.h.b16 %v474
    %v2151 = vunpack.c.l.b16 %v475
    %v2152 = vunpack.c.h.b16 %v475
    %v2153 = vunpack.c.l.b16 %v476
    %v2154 = vunpack.c.h.b16 %v476
    %v2155 = vunpack.c.l.b16 %v477
    %v2156 = vunpack.c.h.b16 %v477
    %v2157 = vunpack.c.l.b16 %v478
    %v2158 = vunpack.c.h.b16 %v478
    %v2159 = vunpack.c.l.b16 %v479
    %v2160 = vunpack.c.h.b16 %v479
    %v2161 = vunpack.c.l.b16 %v480
    %v2162 = vunpack.c.h.b16 %v480
    %v2163 = vunpack.c.l.b16 %v481
    %v2164 = vunpack.c.h.b16 %v481
    %v2165 = vunpack.c.l.b16 %v482
    %v2166 = vunpack.c.h.b16 %v482
    %v2167 = vunpack.c.l.b16 %v483
    %v2168 = vunpack.c.h.b16 %v483
    %v2169 = vunpack.c.l.b16 %v484
    %v2170 = vunpack.c.h.b16 %v484
    %v2171 = vunpack.c.l.b16 %v485
    %v2172 = vunpack.c.h.b16 %v485
    %v2173 = vunpack.c.l.b16 %v486
    %v2174 = vunpack.c.h.b16 %v486
    %v2175 = vunpack.c.l.b16 %v487
    %v2176 = vunpack.c.h.b16 %v487
    %v2177 = vunpack.c.l.b16 %v488
    %v2178 = vunpack.c.h.b16 %v488
    %v2179 = vunpack.c.l.b16 %v489
    %v2180 = vunpack.c.h.b16 %v489
    %v2181 = vunpack.c.l.b16 %v490
    %v2182 = vunpack.c.h.b16 %v490
    %v2183 = vunpack.c.l.b16 %v491
    %v2184 = vunpack.c.h.b16 %v491
    %v2185 = vunpack.c.l.b16 %v492
    %v2186 = vunpack.c.h.b16 %v492
    %v2187 = vunpack.c.l.b16 %v493
    %v2188 = vunpack.c.h.b16 %v493
    %v2189 = vunpack.c.l.b16 %v494
    %v2190 = vunpack.c.h.b16 %v494
    %v2191 = vunpack.c.l.b16 %v495
    %v2192 = vunpack.c.h.b16 %v495
    %v2193 = vunpack.c.l.b16 %v496
    %v2194 = vunpack.c.h.b16 %v496
    %v2195 = vunpack.c.l.b16 %v497
    %v2196 = vunpack.c.h.b16 %v497
    %v2197 = vunpack.c.l.b16 %v498
    %v2198 = vunpack.c.h.b16 %v498
    %v2199 = vunpack.c.l.b16 %v499
    %v2200 = vunpack.c.h.b16 %v499
    %v2201 = vunpack.c.l.b16 %v500
    %v2202 = vunpack.c.h.b16 %v500
    %v2203 = vunpack.c.l.b16 %v501
    %v2204 = vunpack.c.h.b16 %v501
    %v2205 = vunpack.c.l.b16 %v502
    %v2206 = vunpack.c.h.b16 %v502
    %v2207 = vunpack.c.l.b16 %v503
    %v2208 = vunpack.c.h.b16 %v503
    %v2209 = vunpack.c.l.b16 %v504
    %v2210 = vunpack.c.h.b16 %v504
    %v2211 = vunpack.c.l.b16 %v505
    %v2212 = vunpack.c.h.b16 %v505
    %v2213 = vunpack.c.l.b16 %v506
    %v2214 = vunpack.c.h.b16 %v506
    %v2215 = vunpack.c.l.b16 %v507
    %v2216 = vunpack.c.h.b16 %v507
    %v2217 = vunpack.c.l.b16 %v508
    %v2218 = vunpack.c.h.b16 %v508
    %v2219 = vunpack.c.l.b16 %v509
    %v2220 = vunpack.c.h.b16 %v509
    %v2221 = vunpack.c.l.b16 %v510
    %v2222 = vunpack.c.h.b16 %v510
    %v2223 = vunpack.c.l.b16 %v511
    %v2224 = vunpack.c.h.b16 %v511
    %v2225 = vunpack.c.l.b16 %v512
    %v2226 = vunpack.c.h.b16 %v512
    %v2227 = vunpack.c.l.b16 %v513
    %v2228 = vunpack.c.h.b16 %v513
    %v2229 = vunpack.c.l.b16 %v514
    %v2230 = vunpack.c.h.b16 %v514
    %v2231 = vunpack.c.l.b16 %v515
    %v2232 = vunpack.c.h.b16 %v515
    %v2233 = vunpack.c.l.b16 %v516
    %v2234 = vunpack.c.h.b16 %v516
    %v2235 = vunpack.c.l.b16 %v517
    %v2236 = vunpack.c.h.b16 %v517
    %v2237 = vunpack.c.l.b16 %v518
    %v2238 = vunpack.c.h.b16 %v518
    %v2239 = vunpack.c.l.b16 %v519
    %v2240 = vunpack.c.h.b16 %v519
    %v2241 = vunpack.c.l.b16 %v520
    %v2242 = vunpack.c.h.b16 %v520
    %v2243 = vunpack.c.l.b16 %v521
    %v2244 = vunpack.c.h.b16 %v521
    %v2245 = vunpack.c.l.b16 %v522
    %v2246 = vunpack.c.h.b16 %v522
    %v2247 = vunpack.c.l.b16 %v523
    %v2248 = vunpack.c.h.b16 %v523
    %v2249 = vunpack.c.l.b16 %v524
    %v2250 = vunpack.c.h.b16 %v524
    %v2251 = vunpack.c.l.b16 %v525
    %v2252 = vunpack.c.h.b16 %v525
    %v2253 = vunpack.c.l.b16 %v526
    %v2254 = vunpack.c.h.b16 %v526
    %v2255 = vunpack.c.l.b16 %v527
    %v2256 = vunpack.c.h.b16 %v527
    %v2257 = vunpack.c.l.b16 %v528
    %v2258 = vunpack.c.h.b16 %v528
    %v2259 = vunpack.c.l.b16 %v529
    %v2260 = vunpack.c.h.b16 %v529
    %v2261 = vunpack.c.l.b16 %v530
    %v2262 = vunpack.c.h.b16 %v530
    %v2263 = vunpack.c.l.b16 %v531
    %v2264 = vunpack.c.h.b16 %v531
    %v2265 = vunpack.c.l.b16 %v532
    %v2266 = vunpack.c.h.b16 %v532
    %v2267 = vunpack.c.l.b16 %v533
    %v2268 = vunpack.c.h.b16 %v533
    %v2269 = vunpack.c.l.b16 %v534
    %v2270 = vunpack.c.h.b16 %v534
    %v2271 = vunpack.c.l.b16 %v535
    %v2272 = vunpack.c.h.b16 %v535
    %v2273 = vunpack.c.l.b16 %v536
    %v2274 = vunpack.c.h.b16 %v536
    %v2275 = vunpack.c.l.b16 %v537
    %v2276 = vunpack.c.h.b16 %v537
    %v2277 = vunpack.c.l.b16 %v538
    %v2278 = vunpack.c.h.b16 %v538
    %v2279 = vunpack.c.l.b16 %v539
    %v2280 = vunpack.c.h.b16 %v539
    %v2281 = vunpack.c.l.b16 %v540
    %v2282 = vunpack.c.h.b16 %v540
    %v2283 = vunpack.c.l.b16 %v541
    %v2284 = vunpack.c.h.b16 %v541
    %v2285 = vunpack.c.l.b16 %v542
    %v2286 = vunpack.c.h.b16 %v542
    %v2287 = vunpack.c.l.b16 %v543
    %v2288 = vunpack.c.h.b16 %v543
    %v2289 = vunpack.c.l.b16 %v544
    %v2290 = vunpack.c.h.b16 %v544
    %v2291 = vunpack.c.l.b16 %v545
    %v2292 = vunpack.c.h.b16 %v545
    %v2293 = vunpack.c.l.b16 %v546
    %v2294 = vunpack.c.h.b16 %v546
    %v2295 = vunpack.c.l.b16 %v547
    %v2296 = vunpack.c.h.b16 %v547
    %v2297 = vunpack.c.l.b16 %v548
    %v2298 = vunpack.c.h.b16 %v548
    %v2299 = vunpack.c.l.b16 %v549
    %v2300 = vunpack.c.h.b16 %v549
    %v2301 = vunpack.c.l.b16 %v550
    %v2302 = vunpack.c.h.b16 %v550
    %v2303 = vunpack.c.l.b16 %v551
    %v2304 = vunpack.c.h.b16 %v551
    %v2305 = vunpack.c.l.b16 %v552
    %v2306 = vunpack.c.h.b16 %v552
    %v2307 = vunpack.c.l.b16 %v553
    %v2308 = vunpack.c.h.b16 %v553
    %v2309 = vunpack.c.l.b16 %v554
    %v2310 = vunpack.c.h.b16 %v554
    %v2311 = vunpack.c.l.b16 %v555
    %v2312 = vunpack.c.h.b16 %v555
    %v2313 = vunpack.c.l.b16 %v556
    %v2314 = vunpack.c.h.b16 %v556
    %v2315 = vunpack.c.l.b16 %v557
    %v2316 = vunpack.c.h.b16 %v557
    %v2317 = vunpack.c.l.b16 %v558
    %v2318 = vunpack.c.h.b16 %v558
    %v2319 = vunpack.c.l.b16 %v559
    %v2320 = vunpack.c.h.b16 %v559
    %v2321 = vunpack.c.l.b16 %v560
    %v2322 = vunpack.c.h.b16 %v560
    %v2323 = vunpack.c.l.b16 %v561
    %v2324 = vunpack.c.h.b16 %v561
    %v2325 = vunpack.c.l.b16 %v562
    %v2326 = vunpack.c.h.b16 %v562
    %v2327 = vunpack.c.l.b16 %v563
    %v2328 = vunpack.c.h.b16 %v563
    %v2329 = vunpack.c.l.b16 %v564
    %v2330 = vunpack.c.h.b16 %v564
    %v2331 = vunpack.c.l.b16 %v565
    %v2332 = vunpack.c.h.b16 %v565
    %v2333 = vunpack.c.l.b16 %v566
    %v2334 = vunpack.c.h.b16 %v566
    %v2335 = vunpack.c.l.b16 %v567
    %v2336 = vunpack.c.h.b16 %v567
    %v2337 = vunpack.c.l.b16 %v568
    %v2338 = vunpack.c.h.b16 %v568
    %v2339 = vunpack.c.l.b16 %v569
    %v2340 = vunpack.c.h.b16 %v569
    %v2341 = vunpack.c.l.b16 %v570
    %v2342 = vunpack.c.h.b16 %v570
    %v2343 = vunpack.c.l.b16 %v571
    %v2344 = vunpack.c.h.b16 %v571
    %v2345 = vunpack.c.l.b16 %v572
    %v2346 = vunpack.c.h.b16 %v572
    %v2347 = vunpack.c.l.b16 %v573
    %v2348 = vunpack.c.h.b16 %v573
    %v2349 = vunpack.c.l.b16 %v574
    %v2350 = vunpack.c.h.b16 %v574
    %v2351 = vunpack.c.l.b16 %v575
    %v2352 = vunpack.c.h.b16 %v575
    %v2353 = vunpack.c.l.b16 %v576
    %v2354 = vunpack.c.h.b16 %v576
    %v2355 = vunpack.c.l.b16 %v577
    %v2356 = vunpack.c.h.b16 %v577
    %v2357 = vunpack.c.l.b16 %v578
    %v2358 = vunpack.c.h.b16 %v578
    %v2359 = vunpack.c.l.b16 %v579
    %v2360 = vunpack.c.h.b16 %v579
    %v2361 = vunpack.c.l.b16 %v580
    %v2362 = vunpack.c.h.b16 %v580
    %v2363 = vunpack.c.l.b16 %v581
    %v2364 = vunpack.c.h.b16 %v581
    %v2365 = vunpack.c.l.b16 %v582
    %v2366 = vunpack.c.h.b16 %v582
    %v2367 = vunpack.c.l.b16 %v583
    %v2368 = vunpack.c.h.b16 %v583
    %v2369 = vunpack.c.l.b16 %v584
    %v2370 = vunpack.c.h.b16 %v584
    %v2371 = vunpack.c.l.b16 %v585
    %v2372 = vunpack.c.h.b16 %v585
    %v2373 = vunpack.c.l.b16 %v586
    %v2374 = vunpack.c.h.b16 %v586
    %v2375 = vunpack.c.l.b16 %v587
    %v2376 = vunpack.c.h.b16 %v587
    %v2377 = vunpack.c.l.b16 %v588
    %v2378 = vunpack.c.h.b16 %v588
    %v2379 = vunpack.c.l.b16 %v589
    %v2380 = vunpack.c.h.b16 %v589
    %v2381 = vunpack.c.l.b16 %v590
    %v2382 = vunpack.c.h.b16 %v590
    %v2383 = vunpack.c.l.b16 %v591
    %v2384 = vunpack.c.h.b16 %v591
    %v2385 = vunpack.c.l.b16 %v592
    %v2386 = vunpack.c.h.b16 %v592
    %v2387 = vunpack.c.l.b16 %v593
    %v2388 = vunpack.c.h.b16 %v593
    %v2389 = vunpack.c.l.b16 %v594
    %v2390 = vunpack.c.h.b16 %v594
    %v2391 = vunpack.c.l.b16 %v595
    %v2392 = vunpack.c.h.b16 %v595
    %v2393 = vunpack.c.l.b16 %v596
    %v2394 = vunpack.c.h.b16 %v596
    %v2395 = vunpack.c.l.b16 %v597
    %v2396 = vunpack.c.h.b16 %v597
    %v2397 = vunpack.c.l.b16 %v598
    %v2398 = vunpack.c.h.b16 %v598
    %v2399 = vunpack.c.l.b16 %v599
    %v2400 = vunpack.c.h.b16 %v599
    %v2401 = vunpack.c.l.b16 %v600
    %v2402 = vunpack.c.h.b16 %v600
    %v2403 = vunpack.c.l.b16 %v601
    %v2404 = vunpack.c.h.b16 %v601
    %v2405 = vunpack.c.l.b16 %v602
    %v2406 = vunpack.c.h.b16 %v602
    %v2407 = vunpack.c.l.b16 %v603
    %v2408 = vunpack.c.h.b16 %v603
    %v2409 = vunpack.c.l.b16 %v604
    %v2410 = vunpack.c.h.b16 %v604
    %v2411 = vunpack.c.l.b16 %v605
    %v2412 = vunpack.c.h.b16 %v605
    %v2413 = vunpack.c.l.b16 %v606
    %v2414 = vunpack.c.h.b16 %v606
    %v2415 = vunpack.c.l.b16 %v607
    %v2416 = vunpack.c.h.b16 %v607
    %v2417 = vunpack.c.l.b16 %v608
    %v2418 = vunpack.c.h.b16 %v608
    %v2419 = vunpack.c.l.b16 %v609
    %v2420 = vunpack.c.h.b16 %v609
    %v2421 = vunpack.c.l.b16 %v610
    %v2422 = vunpack.c.h.b16 %v610
    %v2423 = vunpack.c.l.b16 %v611
    %v2424 = vunpack.c.h.b16 %v611
    %v2425 = vunpack.c.l.b16 %v612
    %v2426 = vunpack.c.h.b16 %v612
    %v2427 = vunpack.c.l.b16 %v613
    %v2428 = vunpack.c.h.b16 %v613
    %v2429 = vunpack.c.l.b16 %v614
    %v2430 = vunpack.c.h.b16 %v614
    %v2431 = vunpack.c.l.b16 %v615
    %v2432 = vunpack.c.h.b16 %v615
    %v2433 = vunpack.c.l.b16 %v616
    %v2434 = vunpack.c.h.b16 %v616
    %v2435 = vunpack.c.l.b16 %v617
    %v2436 = vunpack.c.h.b16 %v617
    %v2437 = vunpack.c.l.b16 %v618
    %v2438 = vunpack.c.h.b16 %v618
    %v2439 = vunpack.c.l.b16 %v619
    %v2440 = vunpack.c.h.b16 %v619
    %v2441 = vunpack.c.l.b16 %v620
    %v2442 = vunpack.c.h.b16 %v620
    %v2443 = vunpack.c.l.b16 %v621
    %v2444 = vunpack.c.h.b16 %v621
    %v2445 = vunpack.c.l.b16 %v622
    %v2446 = vunpack.c.h.b16 %v622
    %v2447 = vunpack.c.l.b16 %v623
    %v2448 = vunpack.c.h.b16 %v623
    %v2449 = vunpack.c.l.b16 %v624
    %v2450 = vunpack.c.h.b16 %v624
    %v2451 = vunpack.c.l.b16 %v625
    %v2452 = vunpack.c.h.b16 %v625
    %v2453 = vunpack.c.l.b16 %v626
    %v2454 = vunpack.c.h.b16 %v626
    %v2455 = vunpack.c.l.b16 %v627
    %v2456 = vunpack.c.h.b16 %v627
    %v2457 = vunpack.c.l.b16 %v628
    %v2458 = vunpack.c.h.b16 %v628
    %v2459 = vunpack.c.l.b16 %v629
    %v2460 = vunpack.c.h.b16 %v629
    %v2461 = vunpack.c.l.b16 %v630
    %v2462 = vunpack.c.h.b16 %v630
    %v2463 = vunpack.c.l.b16 %v631
    %v2464 = vunpack.c.h.b16 %v631
    %v2465 = vunpack.c.l.b16 %v632
    %v2466 = vunpack.c.h.b16 %v632
    %v2467 = vunpack.c.l.b16 %v633
    %v2468 = vunpack.c.h.b16 %v633
    %v2469 = vunpack.c.l.b16 %v634
    %v2470 = vunpack.c.h.b16 %v634
    %v2471 = vunpack.c.l.b16 %v635
    %v2472 = vunpack.c.h.b16 %v635
    %v2473 = vunpack.c.l.b16 %v636
    %v2474 = vunpack.c.h.b16 %v636
    %v2475 = vunpack.c.l.b16 %v637
    %v2476 = vunpack.c.h.b16 %v637
    %v2477 = vunpack.c.l.b16 %v638
    %v2478 = vunpack.c.h.b16 %v638
    %v2479 = vunpack.c.l.b16 %v639
    %v2480 = vunpack.c.h.b16 %v639
    %v2481 = vunpack.c.l.b16 %v640
    %v2482 = vunpack.c.h.b16 %v640
    %v2483 = vunpack.c.l.b16 %v641
    %v2484 = vunpack.c.h.b16 %v641
    %v2485 = vunpack.c.l.b16 %v642
    %v2486 = vunpack.c.h.b16 %v642
    %v2487 = vunpack.c.l.b16 %v643
    %v2488 = vunpack.c.h.b16 %v643
    %v2489 = vunpack.c.l.b16 %v644
    %v2490 = vunpack.c.h.b16 %v644
    %v2491 = vunpack.c.l.b16 %v645
    %v2492 = vunpack.c.h.b16 %v645
    %v2493 = vunpack.c.l.b16 %v646
    %v2494 = vunpack.c.h.b16 %v646
    %v2495 = vunpack.c.l.b16 %v647
    %v2496 = vunpack.c.h.b16 %v647
    %v2497 = vunpack.c.l.b16 %v648
    %v2498 = vunpack.c.h.b16 %v648
    %v2499 = vunpack.c.l.b16 %v649
    %v2500 = vunpack.c.h.b16 %v649
    %v2501 = vunpack.c.l.b16 %v650
    %v2502 = vunpack.c.h.b16 %v650
    %v2503 = vunpack.c.l.b16 %v651
    %v2504 = vunpack.c.h.b16 %v651
    %v2505 = vunpack.c.l.b16 %v652
    %v2506 = vunpack.c.h.b16 %v652
    %v2507 = vunpack.c.l.b16 %v653
    %v2508 = vunpack.c.h.b16 %v653
    %v2509 = vunpack.c.l.b16 %v654
    %v2510 = vunpack.c.h.b16 %v654
    %v2511 = vunpack.c.l.b16 %v655
    %v2512 = vunpack.c.h.b16 %v655
    %v2513 = vunpack.c.l.b16 %v656
    %v2514 = vunpack.c.h.b16 %v656
    %v2515 = vunpack.c.l.b16 %v657
    %v2516 = vunpack.c.h.b16 %v657
    %v2517 = vunpack.c.l.b16 %v658
    %v2518 = vunpack.c.h.b16 %v658
    %v2519 = vunpack.c.l.b16 %v659
    %v2520 = vunpack.c.h.b16 %v659
    %v2521 = vunpack.c.l.b16 %v660
    %v2522 = vunpack.c.h.b16 %v660
    %v2523 = vunpack.c.l.b16 %v661
    %v2524 = vunpack.c.h.b16 %v661
    %v2525 = vunpack.c.l.b16 %v662
    %v2526 = vunpack.c.h.b16 %v662
    %v2527 = vunpack.c.l.b16 %v663
    %v2528 = vunpack.c.h.b16 %v663
    %v2529 = vunpack.c.l.b16 %v664
    %v2530 = vunpack.c.h.b16 %v664
    %v2531 = vunpack.c.l.b16 %v665
    %v2532 = vunpack.c.h.b16 %v665
    %v2533 = vunpack.c.l.b16 %v666
    %v2534 = vunpack.c.h.b16 %v666
    %v2535 = vunpack.c.l.b16 %v667
    %v2536 = vunpack.c.h.b16 %v667
    %v2537 = vunpack.c.l.b16 %v668
    %v2538 = vunpack.c.h.b16 %v668
    %v2539 = vunpack.c.l.b16 %v669
    %v2540 = vunpack.c.h.b16 %v669
    %v2541 = vunpack.c.l.b16 %v670
    %v2542 = vunpack.c.h.b16 %v670
    %v2543 = vpack.c.b16 %v1523, %v1519
    %v2544 = vpack.c.b16 %v1524, %v1520
    %v2545 = vpack.c.b16 %v1525, %v1521
    %v2546 = vpack.c.b16 %v1526, %v1522
    %v2547 = vpack.c.b16 %v1531, %v1527
    %v2548 = vpack.c.b16 %v1532, %v1528
    %v2549 = vpack.c.b16 %v1533, %v1529
    %v2550 = vpack.c.b16 %v1534, %v1530
    %v2551 = vpack.c.b16 %v1539, %v1535
    %v2552 = vpack.c.b16 %v1540, %v1536
    %v2553 = vpack.c.b16 %v1541, %v1537
    %v2554 = vpack.c.b16 %v1542, %v1538
    %v2555 = vpack.c.b16 %v1547, %v1543
    %v2556 = vpack.c.b16 %v1548, %v1544
    %v2557 = vpack.c.b16 %v1549, %v1545
    %v2558 = vpack.c.b16 %v1550, %v1546
    %v2559 = vpack.c.b16 %v1555, %v1551
    %v2560 = vpack.c.b16 %v1556, %v1552
    %v2561 = vpack.c.b16 %v1557, %v1553
    %v2562 = vpack.c.b16 %v1558, %v1554
    %v2563 = vpack.c.b16 %v1563, %v1559
    %v2564 = vpack.c.b16 %v1564, %v1560
    %v2565 = vpack.c.b16 %v1565, %v1561
    %v2566 = vpack.c.b16 %v1566, %v1562
    %v2567 = vpack.c.b16 %v1571, %v1567
    %v2568 = vpack.c.b16 %v1572, %v1568
    %v2569 = vpack.c.b16 %v1573, %v1569
    %v2570 = vpack.c.b16 %v1574, %v1570
    %v2571 = vpack.c.b16 %v1579, %v1575
    %v2572 = vpack.c.b16 %v1580, %v1576
    %v2573 = vpack.c.b16 %v1581, %v1577
    %v2574 = vpack.c.b16 %v1582, %v1578
    %v2575 = vpack.c.b16 %v1587, %v1583
    %v2576 = vpack.c.b16 %v1588, %v1584
    %v2577 = vpack.c.b16 %v1589, %v1585
    %v2578 = vpack.c.b16 %v1590, %v1586
    %v2579 = vpack.c.b16 %v1595, %v1591
    %v2580 = vpack.c.b16 %v1596, %v1592
    %v2581 = vpack.c.b16 %v1597, %v1593
    %v2582 = vpack.c.b16 %v1598, %v1594
    %v2583 = vpack.c.b16 %v1603, %v1599
    %v2584 = vpack.c.b16 %v1604, %v1600
    %v2585 = vpack.c.b16 %v1605, %v1601
    %v2586 = vpack.c.b16 %v1606, %v1602
    %v2587 = vpack.c.b16 %v1611, %v1607
    %v2588 = vpack.c.b16 %v1612, %v1608
    %v2589 = vpack.c.b16 %v1613, %v1609
    %v2590 = vpack.c.b16 %v1614, %v1610
    %v2591 = vpack.c.b16 %v1619, %v1615
    %v2592 = vpack.c.b16 %v1620, %v1616
    %v2593 = vpack.c.b16 %v1621, %v1617
    %v2594 = vpack.c.b16 %v1622, %v1618
    %v2595 = vpack.c.b16 %v1627, %v1623
    %v2596 = vpack.c.b16 %v1628, %v1624
    %v2597 = vpack.c.b16 %v1629, %v1625
    %v2598 = vpack.c.b16 %v1630, %v1626
    %v2599 = vpack.c.b16 %v1635, %v1631
    %v2600 = vpack.c.b16 %v1636, %v1632
    %v2601 = vpack.c.b16 %v1637, %v1633
    %v2602 = vpack.c.b16 %v1638, %v1634
    %v2603 = vpack.c.b16 %v1643, %v1639
    %v2604 = vpack.c.b16 %v1644, %v1640
    %v2605 = vpack.c.b16 %v1645, %v1641
    %v2606 = vpack.c.b16 %v1646, %v1642
    %v2607 = vpack.c.b16 %v1651, %v1647
    %v2608 = vpack.c.b16 %v1652, %v1648
    %v2609 = vpack.c.b16 %v1653, %v1649
    %v2610 = vpack.c.b16 %v1654, %v1650
    %v2611 = vpack.c.b16 %v1659, %v1655
    %v2612 = vpack.c.b16 %v1660, %v1656
    %v2613 = vpack.c.b16 %v1661, %v1657
    %v2614 = vpack.c.b16 %v1662, %v1658
    %v2615 = vpack.c.b16 %v1667, %v1663
    %v2616 = vpack.c.b16 %v1668, %v1664
    %v2617 = vpack.c.b16 %v1669, %v1665
    %v2618 = vpack.c.b16 %v1670, %v1666
    %v2619 = vpack.c.b16 %v1675, %v1671
    %v2620 = vpack.c.b16 %v1676, %v1672
    %v2621 = vpack.c.b16 %v1677, %v1673
    %v2622 = vpack.c.b16 %v1678, %v1674
    %v2623 = vpack.c.b16 %v1683, %v1679
    %v2624 = vpack.c.b16 %v1684, %v1680
    %v2625 = vpack.c.b16 %v1685, %v1681
    %v2626 = vpack.c.b16 %v1686, %v1682
    %v2627 = vpack.c.b16 %v1691, %v1687
    %v2628 = vpack.c.b16 %v1692, %v1688
    %v2629 = vpack.c.b16 %v1693, %v1689
    %v2630 = vpack.c.b16 %v1694, %v1690
    %v2631 = vpack.c.b16 %v1699, %v1695
    %v2632 = vpack.c.b16 %v1700, %v1696
    %v2633 = vpack.c.b16 %v1701, %v1697
    %v2634 = vpack.c.b16 %v1702, %v1698
    %v2635 = vpack.c.b16 %v1707, %v1703
    %v2636 = vpack.c.b16 %v1708, %v1704
    %v2637 = vpack.c.b16 %v1709, %v1705
    %v2638 = vpack.c.b16 %v1710, %v1706
    %v2639 = vpack.c.b16 %v1715, %v1711
    %v2640 = vpack.c.b16 %v1716, %v1712
    %v2641 = vpack.c.b16 %v1717, %v1713
    %v2642 = vpack.c.b16 %v1718, %v1714
    %v2643 = vpack.c.b16 %v1723, %v1719
    %v2644 = vpack.c.b16 %v1724, %v1720
    %v2645 = vpack.c.b16 %v1725, %v1721
    %v2646 = vpack.c.b16 %v1726, %v1722
    %v2647 = vpack.c.b16 %v1731, %v1727
    %v2648 = vpack.c.b16 %v1732, %v1728
    %v2649 = vpack.c.b16 %v1733, %v1729
    %v2650 = vpack.c.b16 %v1734, %v1730
    %v2651 = vpack.c.b16 %v1739, %v1735
    %v2652 = vpack.c.b16 %v1740, %v1736
    %v2653 = vpack.c.b16 %v1741, %v1737
    %v2654 = vpack.c.b16 %v1742, %v1738
    %v2655 = vpack.c.b16 %v1747, %v1743
    %v2656 = vpack.c.b16 %v1748, %v1744
    %v2657 = vpack.c.b16 %v1749, %v1745
    %v2658 = vpack.c.b16 %v1750, %v1746
    %v2659 = vpack.c.b16 %v1755, %v1751
    %v2660 = vpack.c.b16 %v1756, %v1752
    %v2661 = vpack.c.b16 %v1757, %v1753
    %v2662 = vpack.c.b16 %v1758, %v1754
    %v2663 = vpack.c.b16 %v1763, %v1759
    %v2664 = vpack.c.b16 %v1764, %v1760
    %v2665 = vpack.c.b16 %v1765, %v1761
    %v2666 = vpack.c.b16 %v1766, %v1762
    %v2667 = vpack.c.b16 %v1771, %v1767
    %v2668 = vpack.c.b16 %v1772, %v1768
    %v2669 = vpack.c.b16 %v1773, %v1769
    %v2670 = vpack.c.b16 %v1774, %v1770
    %v2671 = vpack.c.b16 %v1779, %v1775
    %v2672 = vpack.c.b16 %v1780, %v1776
    %v2673 = vpack.c.b16 %v1781, %v1777
    %v2674 = vpack.c.b16 %v1782, %v1778
    %v2675 = vpack.c.b16 %v1787, %v1783
    %v2676 = vpack.c.b16 %v1788, %v1784
    %v2677 = vpack.c.b16 %v1789, %v1785
    %v2678 = vpack.c.b16 %v1790, %v1786
    %v2679 = vpack.c.b16 %v1795, %v1791
    %v2680 = vpack.c.b16 %v1796, %v1792
    %v2681 = vpack.c.b16 %v1797, %v1793
    %v2682 = vpack.c.b16 %v1798, %v1794
    %v2683 = vpack.c.b16 %v1803, %v1799
    %v2684 = vpack.c.b16 %v1804, %v1800
    %v2685 = vpack.c.b16 %v1805, %v1801
    %v2686 = vpack.c.b16 %v1806, %v1802
    %v2687 = vpack.c.b16 %v1811, %v1807
    %v2688 = vpack.c.b16 %v1812, %v1808
    %v2689 = vpack.c.b16 %v1813, %v1809
    %v2690 = vpack.c.b16 %v1814, %v1810
    %v2691 = vpack.c.b16 %v1819, %v1815
    %v2692 = vpack.c.b16 %v1820, %v1816
    %v2693 = vpack.c.b16 %v1821, %v1817
    %v2694 = vpack.c.b16 %v1822, %v1818
    %v2695 = vpack.c.b16 %v1827, %v1823
    %v2696 = vpack.c.b16 %v1828, %v1824
    %v2697 = vpack.c.b16 %v1829, %v1825
    %v2698 = vpack.c.b16 %v1830, %v1826
    %v2699 = vpack.c.b16 %v1835, %v1831
    %v2700 = vpack.c.b16 %v1836, %v1832
    %v2701 = vpack.c.b16 %v1837, %v1833
    %v2702 = vpack.c.b16 %v1838, %v1834
    %v2703 = vpack.c.b16 %v1843, %v1839
    %v2704 = vpack.c.b16 %v1844, %v1840
    %v2705 = vpack.c.b16 %v1845, %v1841
    %v2706 = vpack.c.b16 %v1846, %v1842
    %v2707 = vpack.c.b16 %v1851, %v1847
    %v2708 = vpack.c.b16 %v1852, %v1848
    %v2709 = vpack.c.b16 %v1853, %v1849
    %v2710 = vpack.c.b16 %v1854, %v1850
    %v2711 = vpack.c.b16 %v1859, %v1855
    %v2712 = vpack.c.b16 %v1860, %v1856
    %v2713 = vpack.c.b16 %v1861, %v1857
    %v2714 = vpack.c.b16 %v1862, %v1858
    %v2715 = vpack.c.b16 %v1867, %v1863
    %v2716 = vpack.c.b16 %v1868, %v1864
    %v2717 = vpack.c.b16 %v1869, %v1865
    %v2718 = vpack.c.b16 %v1870, %v1866
    %v2719 = vpack.c.b16 %v1875, %v1871
    %v2720 = vpack.c.b16 %v1876, %v1872
    %v2721 = vpack.c.b16 %v1877, %v1873
    %v2722 = vpack.c.b16 %v1878, %v1874
    %v2723 = vpack.c.b16 %v1883, %v1879
    %v2724 = vpack.c.b16 %v1884, %v1880
    %v2725 = vpack.c.b16 %v1885, %v1881
    %v2726 = vpack.c.b16 %v1886, %v1882
    %v2727 = vpack.c.b16 %v1891, %v1887
    %v2728 = vpack.c.b16 %v1892, %v1888
    %v2729 = vpack.c.b16 %v1893, %v1889
    %v2730 = vpack.c.b16 %v1894, %v1890
    %v2731 = vpack.c.b16 %v1899, %v1895
    %v2732 = vpack.c.b16 %v1900, %v1896
    %v2733 = vpack.c.b16 %v1901, %v1897
    %v2734 = vpack.c.b16 %v1902, %v1898
    %v2735 = vpack.c.b16 %v1907, %v1903
    %v2736 = vpack.c.b16 %v1908, %v1904
    %v2737 = vpack.c.b16 %v1909, %v1905
    %v2738 = vpack.c.b16 %v1910, %v1906
    %v2739 = vpack.c.b16 %v1915, %v1911
    %v2740 = vpack.c.b16 %v1916, %v1912
    %v2741 = vpack.c.b16 %v1917, %v1913
    %v2742 = vpack.c.b16 %v1918, %v1914
    %v2743 = vpack.c.b16 %v1923, %v1919
    %v2744 = vpack.c.b16 %v1924, %v1920
    %v2745 = vpack.c.b16 %v1925, %v1921
    %v2746 = vpack.c.b16 %v1926, %v1922
    %v2747 = vpack.c.b16 %v1931, %v1927
    %v2748 = vpack.c.b16 %v1932, %v1928
    %v2749 = vpack.c.b16 %v1933, %v1929
    %v2750 = vpack.c.b16 %v1934, %v1930
    %v2751 = vpack.c.b16 %v1939, %v1935
    %v2752 = vpack.c.b16 %v1940, %v1936
    %v2753 = vpack.c.b16 %v1941, %v1937
    %v2754 = vpack.c.b16 %v1942, %v1938
    %v2755 = vpack.c.b16 %v1947, %v1943
    %v2756 = vpack.c.b16 %v1948, %v1944
    %v2757 = vpack.c.b16 %v1949, %v1945
    %v2758 = vpack.c.b16 %v1950, %v1946
    %v2759 = vpack.c.b16 %v1955, %v1951
    %v2760 = vpack.c.b16 %v1956, %v1952
    %v2761 = vpack.c.b16 %v1957, %v1953
    %v2762 = vpack.c.b16 %v1958, %v1954
    %v2763 = vpack.c.b16 %v1963, %v1959
    %v2764 = vpack.c.b16 %v1964, %v1960
    %v2765 = vpack.c.b16 %v1965, %v1961
    %v2766 = vpack.c.b16 %v1966, %v1962
    %v2767 = vpack.c.b16 %v1971, %v1967
    %v2768 = vpack.c.b16 %v1972, %v1968
    %v2769 = vpack.c.b16 %v1973, %v1969
    %v2770 = vpack.c.b16 %v1974, %v1970
    %v2771 = vpack.c.b16 %v1979, %v1975
    %v2772 = vpack.c.b16 %v1980, %v1976
    %v2773 = vpack.c.b16 %v1981, %v1977
    %v2774 = vpack.c.b16 %v1982, %v1978
    %v2775 = vpack.c.b16 %v1987, %v1983
    %v2776 = vpack.c.b16 %v1988, %v1984
    %v2777 = vpack.c.b16 %v1989, %v1985
    %v2778 = vpack.c.b16 %v1990, %v1986
    %v2779 = vpack.c.b16 %v1995, %v1991
    %v2780 = vpack.c.b16 %v1996, %v1992
    %v2781 = vpack.c.b16 %v1997, %v1993
    %v2782 = vpack.c.b16 %v1998, %v1994
    %v2783 = vpack.c.b16 %v2003, %v1999
    %v2784 = vpack.c.b16 %v2004, %v2000
    %v2785 = vpack.c.b16 %v2005, %v2001
    %v2786 = vpack.c.b16 %v2006, %v2002
    %v2787 = vpack.c.b16 %v2011, %v2007
    %v2788 = vpack.c.b16 %v2012, %v2008
    %v2789 = vpack.c.b16 %v2013, %v2009
    %v2790 = vpack.c.b16 %v2014, %v2010
    %v2791 = vpack.c.b16 %v2019, %v2015
    %v2792 = vpack.c.b16 %v2020, %v2016
    %v2793 = vpack.c.b16 %v2021, %v2017
    %v2794 = vpack.c.b16 %v2022, %v2018
    %v2795 = vpack.c.b16 %v2027, %v2023
    %v2796 = vpack.c.b16 %v2028, %v2024
    %v2797 = vpack.c.b16 %v2029, %v2025
    %v2798 = vpack.c.b16 %v2030, %v2026
    %v2799 = vpack.c.b16 %v2035, %v2031
    %v2800 = vpack.c.b16 %v2036, %v2032
    %v2801 = vpack.c.b16 %v2037, %v2033
    %v2802 = vpack.c.b16 %v2038, %v2034
    %v2803 = vpack.c.b16 %v2043, %v2039
    %v2804 = vpack.c.b16 %v2044, %v2040
    %v2805 = vpack.c.b16 %v2045, %v2041
    %v2806 = vpack.c.b16 %v2046, %v2042
    %v2807 = vpack.c.b16 %v2051, %v2047
    %v2808 = vpack.c.b16 %v2052, %v2048
    %v2809 = vpack.c.b16 %v2053, %v2049
    %v2810 = vpack.c.b16 %v2054, %v2050
    %v2811 = vpack.c.b16 %v2059, %v2055
    %v2812 = vpack.c.b16 %v2060, %v2056
    %v2813 = vpack.c.b16 %v2061, %v2057
    %v2814 = vpack.c.b16 %v2062, %v2058
    %v2815 = vpack.c.b16 %v2067, %v2063
    %v2816 = vpack.c.b16 %v2068, %v2064
    %v2817 = vpack.c.b16 %v2069, %v2065
    %v2818 = vpack.c.b16 %v2070, %v2066
    %v2819 = vpack.c.b16 %v2075, %v2071
    %v2820 = vpack.c.b16 %v2076, %v2072
    %v2821 = vpack.c.b16 %v2077, %v2073
    %v2822 = vpack.c.b16 %v2078, %v2074
    %v2823 = vpack.c.b16 %v2083, %v2079
    %v2824 = vpack.c.b16 %v2084, %v2080
    %v2825 = vpack.c.b16 %v2085, %v2081
    %v2826 = vpack.c.b16 %v2086, %v2082
    %v2827 = vpack.c.b16 %v2091, %v2087
    %v2828 = vpack.c.b16 %v2092, %v2088
    %v2829 = vpack.c.b16 %v2093, %v2089
    %v2830 = vpack.c.b16 %v2094, %v2090
    %v2831 = vpack.c.b16 %v2099, %v2095
    %v2832 = vpack.c.b16 %v2100, %v2096
    %v2833 = vpack.c.b16 %v2101, %v2097
    %v2834 = vpack.c.b16 %v2102, %v2098
    %v2835 = vpack.c.b16 %v2107, %v2103
    %v2836 = vpack.c.b16 %v2108, %v2104
    %v2837 = vpack.c.b16 %v2109, %v2105
    %v2838 = vpack.c.b16 %v2110, %v2106
    %v2839 = vpack.c.b16 %v2115, %v2111
    %v2840 = vpack.c.b16 %v2116, %v2112
    %v2841 = vpack.c.b16 %v2117, %v2113
    %v2842 = vpack.c.b16 %v2118, %v2114
    %v2843 = vpack.c.b16 %v2123, %v2119
    %v2844 = vpack.c.b16 %v2124, %v2120
    %v2845 = vpack.c.b16 %v2125, %v2121
    %v2846 = vpack.c.b16 %v2126, %v2122
    %v2847 = vpack.c.b16 %v2131, %v2127
    %v2848 = vpack.c.b16 %v2132, %v2128
    %v2849 = vpack.c.b16 %v2133, %v2129
    %v2850 = vpack.c.b16 %v2134, %v2130
    %v2851 = vpack.c.b16 %v2139, %v2135
    %v2852 = vpack.c.b16 %v2140, %v2136
    %v2853 = vpack.c.b16 %v2141, %v2137
    %v2854 = vpack.c.b16 %v2142, %v2138
    %v2855 = vpack.c.b16 %v2147, %v2143
    %v2856 = vpack.c.b16 %v2148, %v2144
    %v2857 = vpack.c.b16 %v2149, %v2145
    %v2858 = vpack.c.b16 %v2150, %v2146
    %v2859 = vpack.c.b16 %v2155, %v2151
    %v2860 = vpack.c.b16 %v2156, %v2152
    %v2861 = vpack.c.b16 %v2157, %v2153
    %v2862 = vpack.c.b16 %v2158, %v2154
    %v2863 = vpack.c.b16 %v2163, %v2159
    %v2864 = vpack.c.b16 %v2164, %v2160
    %v2865 = vpack.c.b16 %v2165, %v2161
    %v2866 = vpack.c.b16 %v2166, %v2162
    %v2867 = vpack.c.b16 %v2171, %v2167
    %v2868 = vpack.c.b16 %v2172, %v2168
    %v2869 = vpack.c.b16 %v2173, %v2169
    %v2870 = vpack.c.b16 %v2174, %v2170
    %v2871 = vpack.c.b16 %v2179, %v2175
    %v2872 = vpack.c.b16 %v2180, %v2176
    %v2873 = vpack.c.b16 %v2181, %v2177
    %v2874 = vpack.c.b16 %v2182, %v2178
    %v2875 = vpack.c.b16 %v2187, %v2183
    %v2876 = vpack.c.b16 %v2188, %v2184
    %v2877 = vpack.c.b16 %v2189, %v2185
    %v2878 = vpack.c.b16 %v2190, %v2186
    %v2879 = vpack.c.b16 %v2195, %v2191
    %v2880 = vpack.c.b16 %v2196, %v2192
    %v2881 = vpack.c.b16 %v2197, %v2193
    %v2882 = vpack.c.b16 %v2198, %v2194
    %v2883 = vpack.c.b16 %v2203, %v2199
    %v2884 = vpack.c.b16 %v2204, %v2200
    %v2885 = vpack.c.b16 %v2205, %v2201
    %v2886 = vpack.c.b16 %v2206, %v2202
    %v2887 = vpack.c.b16 %v2211, %v2207
    %v2888 = vpack.c.b16 %v2212, %v2208
    %v2889 = vpack.c.b16 %v2213, %v2209
    %v2890 = vpack.c.b16 %v2214, %v2210
    %v2891 = vpack.c.b16 %v2219, %v2215
    %v2892 = vpack.c.b16 %v2220, %v2216
    %v2893 = vpack.c.b16 %v2221, %v2217
    %v2894 = vpack.c.b16 %v2222, %v2218
    %v2895 = vpack.c.b16 %v2227, %v2223
    %v2896 = vpack.c.b16 %v2228, %v2224
    %v2897 = vpack.c.b16 %v2229, %v2225
    %v2898 = vpack.c.b16 %v2230, %v2226
    %v2899 = vpack.c.b16 %v2235, %v2231
    %v2900 = vpack.c.b16 %v2236, %v2232
    %v2901 = vpack.c.b16 %v2237, %v2233
    %v2902 = vpack.c.b16 %v2238, %v2234
    %v2903 = vpack.c.b16 %v2243, %v2239
    %v2904 = vpack.c.b16 %v2244, %v2240
    %v2905 = vpack.c.b16 %v2245, %v2241
    %v2906 = vpack.c.b16 %v2246, %v2242
    %v2907 = vpack.c.b16 %v2251, %v2247
    %v2908 = vpack.c.b16 %v2252, %v2248
    %v2909 = vpack.c.b16 %v2253, %v2249
    %v2910 = vpack.c.b16 %v2254, %v2250
    %v2911 = vpack.c.b16 %v2259, %v2255
    %v2912 = vpack.c.b16 %v2260, %v2256
    %v2913 = vpack.c.b16 %v2261, %v2257
    %v2914 = vpack.c.b16 %v2262, %v2258
    %v2915 = vpack.c.b16 %v2267, %v2263
    %v2916 = vpack.c.b16 %v2268, %v2264
    %v2917 = vpack.c.b16 %v2269, %v2265
    %v2918 = vpack.c.b16 %v2270, %v2266
    %v2919 = vpack.c.b16 %v2275, %v2271
    %v2920 = vpack.c.b16 %v2276, %v2272
    %v2921 = vpack.c.b16 %v2277, %v2273
    %v2922 = vpack.c.b16 %v2278, %v2274
    %v2923 = vpack.c.b16 %v2283, %v2279
    %v2924 = vpack.c.b16 %v2284, %v2280
    %v2925 = vpack.c.b16 %v2285, %v2281
    %v2926 = vpack.c.b16 %v2286, %v2282
    %v2927 = vpack.c.b16 %v2291, %v2287
    %v2928 = vpack.c.b16 %v2292, %v2288
    %v2929 = vpack.c.b16 %v2293, %v2289
    %v2930 = vpack.c.b16 %v2294, %v2290
    %v2931 = vpack.c.b16 %v2299, %v2295
    %v2932 = vpack.c.b16 %v2300, %v2296
    %v2933 = vpack.c.b16 %v2301, %v2297
    %v2934 = vpack.c.b16 %v2302, %v2298
    %v2935 = vpack.c.b16 %v2307, %v2303
    %v2936 = vpack.c.b16 %v2308, %v2304
    %v2937 = vpack.c.b16 %v2309, %v2305
    %v2938 = vpack.c.b16 %v2310, %v2306
    %v2939 = vpack.c.b16 %v2315, %v2311
    %v2940 = vpack.c.b16 %v2316, %v2312
    %v2941 = vpack.c.b16 %v2317, %v2313
    %v2942 = vpack.c.b16 %v2318, %v2314
    %v2943 = vpack.c.b16 %v2323, %v2319
    %v2944 = vpack.c.b16 %v2324, %v2320
    %v2945 = vpack.c.b16 %v2325, %v2321
    %v2946 = vpack.c.b16 %v2326, %v2322
    %v2947 = vpack.c.b16 %v2331, %v2327
    %v2948 = vpack.c.b16 %v2332, %v2328
    %v2949 = vpack.c.b16 %v2333, %v2329
    %v2950 = vpack.c.b16 %v2334, %v2330
    %v2951 = vpack.c.b16 %v2339, %v2335
    %v2952 = vpack.c.b16 %v2340, %v2336
    %v2953 = vpack.c.b16 %v2341, %v2337
    %v2954 = vpack.c.b16 %v2342, %v2338
    %v2955 = vpack.c.b16 %v2347, %v2343
    %v2956 = vpack.c.b16 %v2348, %v2344
    %v2957 = vpack.c.b16 %v2349, %v2345
    %v2958 = vpack.c.b16 %v2350, %v2346
    %v2959 = vpack.c.b16 %v2355, %v2351
    %v2960 = vpack.c.b16 %v2356, %v2352
    %v2961 = vpack.c.b16 %v2357, %v2353
    %v2962 = vpack.c.b16 %v2358, %v2354
    %v2963 = vpack.c.b16 %v2363, %v2359
    %v2964 = vpack.c.b16 %v2364, %v2360
    %v2965 = vpack.c.b16 %v2365, %v2361
    %v2966 = vpack.c.b16 %v2366, %v2362
    %v2967 = vpack.c.b16 %v2371, %v2367
    %v2968 = vpack.c.b16 %v2372, %v2368
    %v2969 = vpack.c.b16 %v2373, %v2369
    %v2970 = vpack.c.b16 %v2374, %v2370
    %v2971 = vpack.c.b16 %v2379, %v2375
    %v2972 = vpack.c.b16 %v2380, %v2376
    %v2973 = vpack.c.b16 %v2381, %v2377
    %v2974 = vpack.c.b16 %v2382, %v2378
    %v2975 = vpack.c.b16 %v2387, %v2383
    %v2976 = vpack.c.b16 %v2388, %v2384
    %v2977 = vpack.c.b16 %v2389, %v2385
    %v2978 = vpack.c.b16 %v2390, %v2386
    %v2979 = vpack.c.b16 %v2395, %v2391
    %v2980 = vpack.c.b16 %v2396, %v2392
    %v2981 = vpack.c.b16 %v2397, %v2393
    %v2982 = vpack.c.b16 %v2398, %v2394
    %v2983 = vpack.c.b16 %v2403, %v2399
    %v2984 = vpack.c.b16 %v2404, %v2400
    %v2985 = vpack.c.b16 %v2405, %v2401
    %v2986 = vpack.c.b16 %v2406, %v2402
    %v2987 = vpack.c.b16 %v2411, %v2407
    %v2988 = vpack.c.b16 %v2412, %v2408
    %v2989 = vpack.c.b16 %v2413, %v2409
    %v2990 = vpack.c.b16 %v2414, %v2410
    %v2991 = vpack.c.b16 %v2419, %v2415
    %v2992 = vpack.c.b16 %v2420, %v2416
    %v2993 = vpack.c.b16 %v2421, %v2417
    %v2994 = vpack.c.b16 %v2422, %v2418
    %v2995 = vpack.c.b16 %v2427, %v2423
    %v2996 = vpack.c.b16 %v2428, %v2424
    %v2997 = vpack.c.b16 %v2429, %v2425
    %v2998 = vpack.c.b16 %v2430, %v2426
    %v2999 = vpack.c.b16 %v2435, %v2431
    %v3000 = vpack.c.b16 %v2436, %v2432
    %v3001 = vpack.c.b16 %v2437, %v2433
    %v3002 = vpack.c.b16 %v2438, %v2434
    %v3003 = vpack.c.b16 %v2443, %v2439
    %v3004 = vpack.c.b16 %v2444, %v2440
    %v3005 = vpack.c.b16 %v2445, %v2441
    %v3006 = vpack.c.b16 %v2446, %v2442
    %v3007 = vpack.c.b16 %v2451, %v2447
    %v3008 = vpack.c.b16 %v2452, %v2448
    %v3009 = vpack.c.b16 %v2453, %v2449
    %v3010 = vpack.c.b16 %v2454, %v2450
    %v3011 = vpack.c.b16 %v2459, %v2455
    %v3012 = vpack.c.b16 %v2460, %v2456
    %v3013 = vpack.c.b16 %v2461, %v2457
    %v3014 = vpack.c.b16 %v2462, %v2458
    %v3015 = vpack.c.b16 %v2467, %v2463
    %v3016 = vpack.c.b16 %v2468, %v2464
    %v3017 = vpack.c.b16 %v2469, %v2465
    %v3018 = vpack.c.b16 %v2470, %v2466
    %v3019 = vpack.c.b16 %v2475, %v2471
    %v3020 = vpack.c.b16 %v2476, %v2472
    %v3021 = vpack.c.b16 %v2477, %v2473
    %v3022 = vpack.c.b16 %v2478, %v2474
    %v3023 = vpack.c.b16 %v2483, %v2479
    %v3024 = vpack.c.b16 %v2484, %v2480
    %v3025 = vpack.c.b16 %v2485, %v2481
    %v3026 = vpack.c.b16 %v2486, %v2482
    %v3027 = vpack.c.b16 %v2491, %v2487
    %v3028 = vpack.c.b16 %v2492, %v2488
    %v3029 = vpack.c.b16 %v2493, %v2489
    %v3030 = vpack.c.b16 %v2494, %v2490
    %v3031 = vpack.c.b16 %v2499, %v2495
    %v3032 = vpack.c.b16 %v2500, %v2496
    %v3033 = vpack.c.b16 %v2501, %v2497
    %v3034 = vpack.c.b16 %v2502, %v2498
    %v3035 = vpack.c.b16 %v2507, %v2503
    %v3036 = vpack.c.b16 %v2508, %v2504
    %v3037 = vpack.c.b16 %v2509, %v2505
    %v3038 = vpack.c.b16 %v2510, %v2506
    %v3039 = vpack.c.b16 %v2515, %v2511
    %v3040 = vpack.c.b16 %v2516, %v2512
    %v3041 = vpack.c.b16 %v2517, %v2513
    %v3042 = vpack.c.b16 %v2518, %v2514
    %v3043 = vpack.c.b16 %v2523, %v2519
    %v3044 = vpack.c.b16 %v2524, %v2520
    %v3045 = vpack.c.b16 %v2525, %v2521
    %v3046 = vpack.c.b16 %v2526, %v2522
    %v3047 = vpack.c.b16 %v2531, %v2527
    %v3048 = vpack.c.b16 %v2532, %v2528
    %v3049 = vpack.c.b16 %v2533, %v2529
    %v3050 = vpack.c.b16 %v2534, %v2530
    %v3051 = vpack.c.b16 %v2539, %v2535
    %v3052 = vpack.c.b16 %v2540, %v2536
    %v3053 = vpack.c.b16 %v2541, %v2537
    %v3054 = vpack.c.b16 %v2542, %v2538
    %3567 = vmatpush.bf16.msra.mxu0 %v2571
    %3568 = vmatpush.bf16.msra.mxu0 %v2567
    %3569 = vmatpush.bf16.msra.mxu0 %v2563
    %3570 = vmatpush.bf16.msra.mxu0 %v2559
    %3571 = vmatpush.bf16.msra.mxu0 %v2555
    %3572 = vmatpush.bf16.msra.mxu0 %v2551
    %3573 = vmatpush.bf16.msra.mxu0 %v2547
    %3574 = vmatpush.bf16.msra.mxu0 %v2543
    %3575 = vmatmul.bf16.gmra.mxu0 %v975
    %v3576 = vpop.f32.mrf.mxu0
    %v3577 = vadd.f32 %v881, %v3576
    %v3578 = vpop.f32.mrf.mxu0
    %v3579 = vadd.f32 %v883, %v3578
    %3580 = vdwg.mxu0
    %3581 = vmatpush.bf16.msra.mxu0 %v2603
    %3582 = vmatpush.bf16.msra.mxu0 %v2599
    %3583 = vmatpush.bf16.msra.mxu0 %v2595
    %3584 = vmatpush.bf16.msra.mxu0 %v2591
    %3585 = vmatpush.bf16.msra.mxu0 %v2587
    %3586 = vmatpush.bf16.msra.mxu0 %v2583
    %3587 = vmatpush.bf16.msra.mxu0 %v2579
    %3588 = vmatpush.bf16.msra.mxu0 %v2575
    %3589 = vmatmul.bf16.gmra.mxu0 %v976
    %v3590 = vpop.f32.mrf.mxu0
    %v3591 = vadd.f32 %v3577, %v3590
    %v3592 = vpop.f32.mrf.mxu0
    %v3593 = vadd.f32 %v3579, %v3592
    %3594 = vdwg.mxu0
    %3595 = vmatpush.bf16.msra.mxu0 %v2635
    %3596 = vmatpush.bf16.msra.mxu0 %v2631
    %3597 = vmatpush.bf16.msra.mxu0 %v2627
    %3598 = vmatpush.bf16.msra.mxu0 %v2623
    %3599 = vmatpush.bf16.msra.mxu0 %v2619
    %3600 = vmatpush.bf16.msra.mxu0 %v2615
    %3601 = vmatpush.bf16.msra.mxu0 %v2611
    %3602 = vmatpush.bf16.msra.mxu0 %v2607
    %3603 = vmatmul.bf16.gmra.mxu0 %v977
    %v3604 = vpop.f32.mrf.mxu0
    %v3605 = vadd.f32 %v3591, %v3604
    %v3606 = vpop.f32.mrf.mxu0
    %v3607 = vadd.f32 %v3593, %v3606
    %3608 = vdwg.mxu0
    %3609 = vmatpush.bf16.msra.mxu0 %v2667
    %3610 = vmatpush.bf16.msra.mxu0 %v2663
    %3611 = vmatpush.bf16.msra.mxu0 %v2659
    %3612 = vmatpush.bf16.msra.mxu0 %v2655
    %3613 = vmatpush.bf16.msra.mxu0 %v2651
    %3614 = vmatpush.bf16.msra.mxu0 %v2647
    %3615 = vmatpush.bf16.msra.mxu0 %v2643
    %3616 = vmatpush.bf16.msra.mxu0 %v2639
    %3617 = vmatmul.bf16.gmra.mxu0 %v978
    %v3618 = vpop.f32.mrf.mxu0
    %v3619 = vadd.f32 %v3605, %v3618
    %v3620 = vpop.f32.mrf.mxu0
    %v3621 = vadd.f32 %v3607, %v3620
    %3622 = vdwg.mxu0
    %3623 = vmatpush.bf16.msra.mxu0 %v2699
    %3624 = vmatpush.bf16.msra.mxu0 %v2695
    %3625 = vmatpush.bf16.msra.mxu0 %v2691
    %3626 = vmatpush.bf16.msra.mxu0 %v2687
    %3627 = vmatpush.bf16.msra.mxu0 %v2683
    %3628 = vmatpush.bf16.msra.mxu0 %v2679
    %3629 = vmatpush.bf16.msra.mxu0 %v2675
    %3630 = vmatpush.bf16.msra.mxu0 %v2671
    %3631 = vmatmul.bf16.gmra.mxu0 %v979
    %v3632 = vpop.f32.mrf.mxu0
    %v3633 = vadd.f32 %v3619, %v3632
    %v3634 = vpop.f32.mrf.mxu0
    %v3635 = vadd.f32 %v3621, %v3634
    %3636 = vdwg.mxu0
    %3637 = vmatpush.bf16.msra.mxu0 %v2731
    %3638 = vmatpush.bf16.msra.mxu0 %v2727
    %3639 = vmatpush.bf16.msra.mxu0 %v2723
    %3640 = vmatpush.bf16.msra.mxu0 %v2719
    %3641 = vmatpush.bf16.msra.mxu0 %v2715
    %3642 = vmatpush.bf16.msra.mxu0 %v2711
    %3643 = vmatpush.bf16.msra.mxu0 %v2707
    %3644 = vmatpush.bf16.msra.mxu0 %v2703
    %3645 = vmatmul.bf16.gmra.mxu0 %v980
    %v3646 = vpop.f32.mrf.mxu0
    %v3647 = vadd.f32 %v3633, %v3646
    %v3648 = vpop.f32.mrf.mxu0
    %v3649 = vadd.f32 %v3635, %v3648
    %3650 = vdwg.mxu0
    %3651 = vmatpush.bf16.msra.mxu0 %v2763
    %3652 = vmatpush.bf16.msra.mxu0 %v2759
    %3653 = vmatpush.bf16.msra.mxu0 %v2755
    %3654 = vmatpush.bf16.msra.mxu0 %v2751
    %3655 = vmatpush.bf16.msra.mxu0 %v2747
    %3656 = vmatpush.bf16.msra.mxu0 %v2743
    %3657 = vmatpush.bf16.msra.mxu0 %v2739
    %3658 = vmatpush.bf16.msra.mxu0 %v2735
    %3659 = vmatmul.bf16.gmra.mxu0 %v981
    %v3660 = vpop.f32.mrf.mxu0
    %v3661 = vadd.f32 %v3647, %v3660
    %v3662 = vpop.f32.mrf.mxu0
    %v3663 = vadd.f32 %v3649, %v3662
    %3664 = vdwg.mxu0
    %3665 = vmatpush.bf16.msra.mxu0 %v2795
    %3666 = vmatpush.bf16.msra.mxu0 %v2791
    %3667 = vmatpush.bf16.msra.mxu0 %v2787
    %3668 = vmatpush.bf16.msra.mxu0 %v2783
    %3669 = vmatpush.bf16.msra.mxu0 %v2779
    %3670 = vmatpush.bf16.msra.mxu0 %v2775
    %3671 = vmatpush.bf16.msra.mxu0 %v2771
    %3672 = vmatpush.bf16.msra.mxu0 %v2767
    %3673 = vmatmul.bf16.gmra.mxu0 %v982
    %v3674 = vpop.f32.mrf.mxu0
    %v3675 = vadd.f32 %v3661, %v3674
    %v3676 = vpop.f32.mrf.mxu0
    %v3677 = vadd.f32 %v3663, %v3676
    %3678 = vdwg.mxu0
    %3679 = vmatpush.bf16.msra.mxu0 %v2827
    %3680 = vmatpush.bf16.msra.mxu0 %v2823
    %3681 = vmatpush.bf16.msra.mxu0 %v2819
    %3682 = vmatpush.bf16.msra.mxu0 %v2815
    %3683 = vmatpush.bf16.msra.mxu0 %v2811
    %3684 = vmatpush.bf16.msra.mxu0 %v2807
    %3685 = vmatpush.bf16.msra.mxu0 %v2803
    %3686 = vmatpush.bf16.msra.mxu0 %v2799
    %3687 = vmatmul.bf16.gmra.mxu0 %v983
    %v3688 = vpop.f32.mrf.mxu0
    %v3689 = vadd.f32 %v3675, %v3688
    %v3690 = vpop.f32.mrf.mxu0
    %v3691 = vadd.f32 %v3677, %v3690
    %3692 = vdwg.mxu0
    %3693 = vmatpush.bf16.msra.mxu0 %v2859
    %3694 = vmatpush.bf16.msra.mxu0 %v2855
    %3695 = vmatpush.bf16.msra.mxu0 %v2851
    %3696 = vmatpush.bf16.msra.mxu0 %v2847
    %3697 = vmatpush.bf16.msra.mxu0 %v2843
    %3698 = vmatpush.bf16.msra.mxu0 %v2839
    %3699 = vmatpush.bf16.msra.mxu0 %v2835
    %3700 = vmatpush.bf16.msra.mxu0 %v2831
    %3701 = vmatmul.bf16.gmra.mxu0 %v984
    %v3702 = vpop.f32.mrf.mxu0
    %v3703 = vadd.f32 %v3689, %v3702
    %v3704 = vpop.f32.mrf.mxu0
    %v3705 = vadd.f32 %v3691, %v3704
    %3706 = vdwg.mxu0
    %3707 = vmatpush.bf16.msra.mxu0 %v2891
    %3708 = vmatpush.bf16.msra.mxu0 %v2887
    %3709 = vmatpush.bf16.msra.mxu0 %v2883
    %3710 = vmatpush.bf16.msra.mxu0 %v2879
    %3711 = vmatpush.bf16.msra.mxu0 %v2875
    %3712 = vmatpush.bf16.msra.mxu0 %v2871
    %3713 = vmatpush.bf16.msra.mxu0 %v2867
    %3714 = vmatpush.bf16.msra.mxu0 %v2863
    %3715 = vmatmul.bf16.gmra.mxu0 %v985
    %v3716 = vpop.f32.mrf.mxu0
    %v3717 = vadd.f32 %v3703, %v3716
    %v3718 = vpop.f32.mrf.mxu0
    %v3719 = vadd.f32 %v3705, %v3718
    %3720 = vdwg.mxu0
    %3721 = vmatpush.bf16.msra.mxu0 %v2923
    %3722 = vmatpush.bf16.msra.mxu0 %v2919
    %3723 = vmatpush.bf16.msra.mxu0 %v2915
    %3724 = vmatpush.bf16.msra.mxu0 %v2911
    %3725 = vmatpush.bf16.msra.mxu0 %v2907
    %3726 = vmatpush.bf16.msra.mxu0 %v2903
    %3727 = vmatpush.bf16.msra.mxu0 %v2899
    %3728 = vmatpush.bf16.msra.mxu0 %v2895
    %3729 = vmatmul.bf16.gmra.mxu0 %v986
    %v3730 = vpop.f32.mrf.mxu0
    %v3731 = vadd.f32 %v3717, %v3730
    %v3732 = vpop.f32.mrf.mxu0
    %v3733 = vadd.f32 %v3719, %v3732
    %3734 = vdwg.mxu0
    %3735 = vmatpush.bf16.msra.mxu0 %v2955
    %3736 = vmatpush.bf16.msra.mxu0 %v2951
    %3737 = vmatpush.bf16.msra.mxu0 %v2947
    %3738 = vmatpush.bf16.msra.mxu0 %v2943
    %3739 = vmatpush.bf16.msra.mxu0 %v2939
    %3740 = vmatpush.bf16.msra.mxu0 %v2935
    %3741 = vmatpush.bf16.msra.mxu0 %v2931
    %3742 = vmatpush.bf16.msra.mxu0 %v2927
    %3743 = vmatmul.bf16.gmra.mxu0 %v987
    %v3744 = vpop.f32.mrf.mxu0
    %v3745 = vadd.f32 %v3731, %v3744
    %v3746 = vpop.f32.mrf.mxu0
    %v3747 = vadd.f32 %v3733, %v3746
    %3748 = vdwg.mxu0
    %3749 = vmatpush.bf16.msra.mxu0 %v2987
    %3750 = vmatpush.bf16.msra.mxu0 %v2983
    %3751 = vmatpush.bf16.msra.mxu0 %v2979
    %3752 = vmatpush.bf16.msra.mxu0 %v2975
    %3753 = vmatpush.bf16.msra.mxu0 %v2971
    %3754 = vmatpush.bf16.msra.mxu0 %v2967
    %3755 = vmatpush.bf16.msra.mxu0 %v2963
    %3756 = vmatpush.bf16.msra.mxu0 %v2959
    %3757 = vmatmul.bf16.gmra.mxu0 %v988
    %v3758 = vpop.f32.mrf.mxu0
    %v3759 = vadd.f32 %v3745, %v3758
    %v3760 = vpop.f32.mrf.mxu0
    %v3761 = vadd.f32 %v3747, %v3760
    %3762 = vdwg.mxu0
    %3763 = vmatpush.bf16.msra.mxu0 %v3019
    %3764 = vmatpush.bf16.msra.mxu0 %v3015
    %3765 = vmatpush.bf16.msra.mxu0 %v3011
    %3766 = vmatpush.bf16.msra.mxu0 %v3007
    %3767 = vmatpush.bf16.msra.mxu0 %v3003
    %3768 = vmatpush.bf16.msra.mxu0 %v2999
    %3769 = vmatpush.bf16.msra.mxu0 %v2995
    %3770 = vmatpush.bf16.msra.mxu0 %v2991
    %3771 = vmatmul.bf16.gmra.mxu0 %v989
    %v3772 = vpop.f32.mrf.mxu0
    %v3773 = vadd.f32 %v3759, %v3772
    %v3774 = vpop.f32.mrf.mxu0
    %v3775 = vadd.f32 %v3761, %v3774
    %3776 = vdwg.mxu0
    %3777 = vmatpush.bf16.msra.mxu0 %v3051
    %3778 = vmatpush.bf16.msra.mxu0 %v3047
    %3779 = vmatpush.bf16.msra.mxu0 %v3043
    %3780 = vmatpush.bf16.msra.mxu0 %v3039
    %3781 = vmatpush.bf16.msra.mxu0 %v3035
    %3782 = vmatpush.bf16.msra.mxu0 %v3031
    %3783 = vmatpush.bf16.msra.mxu0 %v3027
    %3784 = vmatpush.bf16.msra.mxu0 %v3023
    %3785 = vmatmul.bf16.gmra.mxu0 %v990
    %v3786 = vpop.f32.mrf.mxu0
    %v3787 = vadd.f32 %v3773, %v3786
    %v3788 = vpop.f32.mrf.mxu0
    %v3789 = vadd.f32 %v3775, %v3788
    %3790 = vdwg.mxu0
    %3791 = vmatpush.bf16.msra.mxu0 %v2572
    %3792 = vmatpush.bf16.msra.mxu0 %v2568
    %3793 = vmatpush.bf16.msra.mxu0 %v2564
    %3794 = vmatpush.bf16.msra.mxu0 %v2560
    %3795 = vmatpush.bf16.msra.mxu0 %v2556
    %3796 = vmatpush.bf16.msra.mxu0 %v2552
    %3797 = vmatpush.bf16.msra.mxu0 %v2548
    %3798 = vmatpush.bf16.msra.mxu0 %v2544
    %3799 = vmatmul.bf16.gmra.mxu0 %v975
    %v3800 = vpop.f32.mrf.mxu0
    %v3801 = vadd.f32 %v895, %v3800
    %v3802 = vpop.f32.mrf.mxu0
    %v3803 = vadd.f32 %v897, %v3802
    %3804 = vdwg.mxu0
    %3805 = vmatpush.bf16.msra.mxu0 %v2604
    %3806 = vmatpush.bf16.msra.mxu0 %v2600
    %3807 = vmatpush.bf16.msra.mxu0 %v2596
    %3808 = vmatpush.bf16.msra.mxu0 %v2592
    %3809 = vmatpush.bf16.msra.mxu0 %v2588
    %3810 = vmatpush.bf16.msra.mxu0 %v2584
    %3811 = vmatpush.bf16.msra.mxu0 %v2580
    %3812 = vmatpush.bf16.msra.mxu0 %v2576
    %3813 = vmatmul.bf16.gmra.mxu0 %v976
    %v3814 = vpop.f32.mrf.mxu0
    %v3815 = vadd.f32 %v3801, %v3814
    %v3816 = vpop.f32.mrf.mxu0
    %v3817 = vadd.f32 %v3803, %v3816
    %3818 = vdwg.mxu0
    %3819 = vmatpush.bf16.msra.mxu0 %v2636
    %3820 = vmatpush.bf16.msra.mxu0 %v2632
    %3821 = vmatpush.bf16.msra.mxu0 %v2628
    %3822 = vmatpush.bf16.msra.mxu0 %v2624
    %3823 = vmatpush.bf16.msra.mxu0 %v2620
    %3824 = vmatpush.bf16.msra.mxu0 %v2616
    %3825 = vmatpush.bf16.msra.mxu0 %v2612
    %3826 = vmatpush.bf16.msra.mxu0 %v2608
    %3827 = vmatmul.bf16.gmra.mxu0 %v977
    %v3828 = vpop.f32.mrf.mxu0
    %v3829 = vadd.f32 %v3815, %v3828
    %v3830 = vpop.f32.mrf.mxu0
    %v3831 = vadd.f32 %v3817, %v3830
    %3832 = vdwg.mxu0
    %3833 = vmatpush.bf16.msra.mxu0 %v2668
    %3834 = vmatpush.bf16.msra.mxu0 %v2664
    %3835 = vmatpush.bf16.msra.mxu0 %v2660
    %3836 = vmatpush.bf16.msra.mxu0 %v2656
    %3837 = vmatpush.bf16.msra.mxu0 %v2652
    %3838 = vmatpush.bf16.msra.mxu0 %v2648
    %3839 = vmatpush.bf16.msra.mxu0 %v2644
    %3840 = vmatpush.bf16.msra.mxu0 %v2640
    %3841 = vmatmul.bf16.gmra.mxu0 %v978
    %v3842 = vpop.f32.mrf.mxu0
    %v3843 = vadd.f32 %v3829, %v3842
    %v3844 = vpop.f32.mrf.mxu0
    %v3845 = vadd.f32 %v3831, %v3844
    %3846 = vdwg.mxu0
    %3847 = vmatpush.bf16.msra.mxu0 %v2700
    %3848 = vmatpush.bf16.msra.mxu0 %v2696
    %3849 = vmatpush.bf16.msra.mxu0 %v2692
    %3850 = vmatpush.bf16.msra.mxu0 %v2688
    %3851 = vmatpush.bf16.msra.mxu0 %v2684
    %3852 = vmatpush.bf16.msra.mxu0 %v2680
    %3853 = vmatpush.bf16.msra.mxu0 %v2676
    %3854 = vmatpush.bf16.msra.mxu0 %v2672
    %3855 = vmatmul.bf16.gmra.mxu0 %v979
    %v3856 = vpop.f32.mrf.mxu0
    %v3857 = vadd.f32 %v3843, %v3856
    %v3858 = vpop.f32.mrf.mxu0
    %v3859 = vadd.f32 %v3845, %v3858
    %3860 = vdwg.mxu0
    %3861 = vmatpush.bf16.msra.mxu0 %v2732
    %3862 = vmatpush.bf16.msra.mxu0 %v2728
    %3863 = vmatpush.bf16.msra.mxu0 %v2724
    %3864 = vmatpush.bf16.msra.mxu0 %v2720
    %3865 = vmatpush.bf16.msra.mxu0 %v2716
    %3866 = vmatpush.bf16.msra.mxu0 %v2712
    %3867 = vmatpush.bf16.msra.mxu0 %v2708
    %3868 = vmatpush.bf16.msra.mxu0 %v2704
    %3869 = vmatmul.bf16.gmra.mxu0 %v980
    %v3870 = vpop.f32.mrf.mxu0
    %v3871 = vadd.f32 %v3857, %v3870
    %v3872 = vpop.f32.mrf.mxu0
    %v3873 = vadd.f32 %v3859, %v3872
    %3874 = vdwg.mxu0
    %3875 = vmatpush.bf16.msra.mxu0 %v2764
    %3876 = vmatpush.bf16.msra.mxu0 %v2760
    %3877 = vmatpush.bf16.msra.mxu0 %v2756
    %3878 = vmatpush.bf16.msra.mxu0 %v2752
    %3879 = vmatpush.bf16.msra.mxu0 %v2748
    %3880 = vmatpush.bf16.msra.mxu0 %v2744
    %3881 = vmatpush.bf16.msra.mxu0 %v2740
    %3882 = vmatpush.bf16.msra.mxu0 %v2736
    %3883 = vmatmul.bf16.gmra.mxu0 %v981
    %v3884 = vpop.f32.mrf.mxu0
    %v3885 = vadd.f32 %v3871, %v3884
    %v3886 = vpop.f32.mrf.mxu0
    %v3887 = vadd.f32 %v3873, %v3886
    %3888 = vdwg.mxu0
    %3889 = vmatpush.bf16.msra.mxu0 %v2796
    %3890 = vmatpush.bf16.msra.mxu0 %v2792
    %3891 = vmatpush.bf16.msra.mxu0 %v2788
    %3892 = vmatpush.bf16.msra.mxu0 %v2784
    %3893 = vmatpush.bf16.msra.mxu0 %v2780
    %3894 = vmatpush.bf16.msra.mxu0 %v2776
    %3895 = vmatpush.bf16.msra.mxu0 %v2772
    %3896 = vmatpush.bf16.msra.mxu0 %v2768
    %3897 = vmatmul.bf16.gmra.mxu0 %v982
    %v3898 = vpop.f32.mrf.mxu0
    %v3899 = vadd.f32 %v3885, %v3898
    %v3900 = vpop.f32.mrf.mxu0
    %v3901 = vadd.f32 %v3887, %v3900
    %3902 = vdwg.mxu0
    %3903 = vmatpush.bf16.msra.mxu0 %v2828
    %3904 = vmatpush.bf16.msra.mxu0 %v2824
    %3905 = vmatpush.bf16.msra.mxu0 %v2820
    %3906 = vmatpush.bf16.msra.mxu0 %v2816
    %3907 = vmatpush.bf16.msra.mxu0 %v2812
    %3908 = vmatpush.bf16.msra.mxu0 %v2808
    %3909 = vmatpush.bf16.msra.mxu0 %v2804
    %3910 = vmatpush.bf16.msra.mxu0 %v2800
    %3911 = vmatmul.bf16.gmra.mxu0 %v983
    %v3912 = vpop.f32.mrf.mxu0
    %v3913 = vadd.f32 %v3899, %v3912
    %v3914 = vpop.f32.mrf.mxu0
    %v3915 = vadd.f32 %v3901, %v3914
    %3916 = vdwg.mxu0
    %3917 = vmatpush.bf16.msra.mxu0 %v2860
    %3918 = vmatpush.bf16.msra.mxu0 %v2856
    %3919 = vmatpush.bf16.msra.mxu0 %v2852
    %3920 = vmatpush.bf16.msra.mxu0 %v2848
    %3921 = vmatpush.bf16.msra.mxu0 %v2844
    %3922 = vmatpush.bf16.msra.mxu0 %v2840
    %3923 = vmatpush.bf16.msra.mxu0 %v2836
    %3924 = vmatpush.bf16.msra.mxu0 %v2832
    %3925 = vmatmul.bf16.gmra.mxu0 %v984
    %v3926 = vpop.f32.mrf.mxu0
    %v3927 = vadd.f32 %v3913, %v3926
    %v3928 = vpop.f32.mrf.mxu0
    %v3929 = vadd.f32 %v3915, %v3928
    %3930 = vdwg.mxu0
    %3931 = vmatpush.bf16.msra.mxu0 %v2892
    %3932 = vmatpush.bf16.msra.mxu0 %v2888
    %3933 = vmatpush.bf16.msra.mxu0 %v2884
    %3934 = vmatpush.bf16.msra.mxu0 %v2880
    %3935 = vmatpush.bf16.msra.mxu0 %v2876
    %3936 = vmatpush.bf16.msra.mxu0 %v2872
    %3937 = vmatpush.bf16.msra.mxu0 %v2868
    %3938 = vmatpush.bf16.msra.mxu0 %v2864
    %3939 = vmatmul.bf16.gmra.mxu0 %v985
    %v3940 = vpop.f32.mrf.mxu0
    %v3941 = vadd.f32 %v3927, %v3940
    %v3942 = vpop.f32.mrf.mxu0
    %v3943 = vadd.f32 %v3929, %v3942
    %3944 = vdwg.mxu0
    %3945 = vmatpush.bf16.msra.mxu0 %v2924
    %3946 = vmatpush.bf16.msra.mxu0 %v2920
    %3947 = vmatpush.bf16.msra.mxu0 %v2916
    %3948 = vmatpush.bf16.msra.mxu0 %v2912
    %3949 = vmatpush.bf16.msra.mxu0 %v2908
    %3950 = vmatpush.bf16.msra.mxu0 %v2904
    %3951 = vmatpush.bf16.msra.mxu0 %v2900
    %3952 = vmatpush.bf16.msra.mxu0 %v2896
    %3953 = vmatmul.bf16.gmra.mxu0 %v986
    %v3954 = vpop.f32.mrf.mxu0
    %v3955 = vadd.f32 %v3941, %v3954
    %v3956 = vpop.f32.mrf.mxu0
    %v3957 = vadd.f32 %v3943, %v3956
    %3958 = vdwg.mxu0
    %3959 = vmatpush.bf16.msra.mxu0 %v2956
    %3960 = vmatpush.bf16.msra.mxu0 %v2952
    %3961 = vmatpush.bf16.msra.mxu0 %v2948
    %3962 = vmatpush.bf16.msra.mxu0 %v2944
    %3963 = vmatpush.bf16.msra.mxu0 %v2940
    %3964 = vmatpush.bf16.msra.mxu0 %v2936
    %3965 = vmatpush.bf16.msra.mxu0 %v2932
    %3966 = vmatpush.bf16.msra.mxu0 %v2928
    %3967 = vmatmul.bf16.gmra.mxu0 %v987
    %v3968 = vpop.f32.mrf.mxu0
    %v3969 = vadd.f32 %v3955, %v3968
    %v3970 = vpop.f32.mrf.mxu0
    %v3971 = vadd.f32 %v3957, %v3970
    %3972 = vdwg.mxu0
    %3973 = vmatpush.bf16.msra.mxu0 %v2988
    %3974 = vmatpush.bf16.msra.mxu0 %v2984
    %3975 = vmatpush.bf16.msra.mxu0 %v2980
    %3976 = vmatpush.bf16.msra.mxu0 %v2976
    %3977 = vmatpush.bf16.msra.mxu0 %v2972
    %3978 = vmatpush.bf16.msra.mxu0 %v2968
    %3979 = vmatpush.bf16.msra.mxu0 %v2964
    %3980 = vmatpush.bf16.msra.mxu0 %v2960
    %3981 = vmatmul.bf16.gmra.mxu0 %v988
    %v3982 = vpop.f32.mrf.mxu0
    %v3983 = vadd.f32 %v3969, %v3982
    %v3984 = vpop.f32.mrf.mxu0
    %v3985 = vadd.f32 %v3971, %v3984
    %3986 = vdwg.mxu0
    %3987 = vmatpush.bf16.msra.mxu0 %v3020
    %3988 = vmatpush.bf16.msra.mxu0 %v3016
    %3989 = vmatpush.bf16.msra.mxu0 %v3012
    %3990 = vmatpush.bf16.msra.mxu0 %v3008
    %3991 = vmatpush.bf16.msra.mxu0 %v3004
    %3992 = vmatpush.bf16.msra.mxu0 %v3000
    %3993 = vmatpush.bf16.msra.mxu0 %v2996
    %3994 = vmatpush.bf16.msra.mxu0 %v2992
    %3995 = vmatmul.bf16.gmra.mxu0 %v989
    %v3996 = vpop.f32.mrf.mxu0
    %v3997 = vadd.f32 %v3983, %v3996
    %v3998 = vpop.f32.mrf.mxu0
    %v3999 = vadd.f32 %v3985, %v3998
    %4000 = vdwg.mxu0
    %4001 = vmatpush.bf16.msra.mxu0 %v3052
    %4002 = vmatpush.bf16.msra.mxu0 %v3048
    %4003 = vmatpush.bf16.msra.mxu0 %v3044
    %4004 = vmatpush.bf16.msra.mxu0 %v3040
    %4005 = vmatpush.bf16.msra.mxu0 %v3036
    %4006 = vmatpush.bf16.msra.mxu0 %v3032
    %4007 = vmatpush.bf16.msra.mxu0 %v3028
    %4008 = vmatpush.bf16.msra.mxu0 %v3024
    %4009 = vmatmul.bf16.gmra.mxu0 %v990
    %v4010 = vpop.f32.mrf.mxu0
    %v4011 = vadd.f32 %v3997, %v4010
    %v4012 = vpop.f32.mrf.mxu0
    %v4013 = vadd.f32 %v3999, %v4012
    %4014 = vdwg.mxu0
    %4015 = vmatpush.bf16.msra.mxu0 %v2573
    %4016 = vmatpush.bf16.msra.mxu0 %v2569
    %4017 = vmatpush.bf16.msra.mxu0 %v2565
    %4018 = vmatpush.bf16.msra.mxu0 %v2561
    %4019 = vmatpush.bf16.msra.mxu0 %v2557
    %4020 = vmatpush.bf16.msra.mxu0 %v2553
    %4021 = vmatpush.bf16.msra.mxu0 %v2549
    %4022 = vmatpush.bf16.msra.mxu0 %v2545
    %4023 = vmatmul.bf16.gmra.mxu0 %v975
    %v4024 = vpop.f32.mrf.mxu0
    %v4025 = vadd.f32 %v909, %v4024
    %v4026 = vpop.f32.mrf.mxu0
    %v4027 = vadd.f32 %v911, %v4026
    %4028 = vdwg.mxu0
    %4029 = vmatpush.bf16.msra.mxu0 %v2605
    %4030 = vmatpush.bf16.msra.mxu0 %v2601
    %4031 = vmatpush.bf16.msra.mxu0 %v2597
    %4032 = vmatpush.bf16.msra.mxu0 %v2593
    %4033 = vmatpush.bf16.msra.mxu0 %v2589
    %4034 = vmatpush.bf16.msra.mxu0 %v2585
    %4035 = vmatpush.bf16.msra.mxu0 %v2581
    %4036 = vmatpush.bf16.msra.mxu0 %v2577
    %4037 = vmatmul.bf16.gmra.mxu0 %v976
    %v4038 = vpop.f32.mrf.mxu0
    %v4039 = vadd.f32 %v4025, %v4038
    %v4040 = vpop.f32.mrf.mxu0
    %v4041 = vadd.f32 %v4027, %v4040
    %4042 = vdwg.mxu0
    %4043 = vmatpush.bf16.msra.mxu0 %v2637
    %4044 = vmatpush.bf16.msra.mxu0 %v2633
    %4045 = vmatpush.bf16.msra.mxu0 %v2629
    %4046 = vmatpush.bf16.msra.mxu0 %v2625
    %4047 = vmatpush.bf16.msra.mxu0 %v2621
    %4048 = vmatpush.bf16.msra.mxu0 %v2617
    %4049 = vmatpush.bf16.msra.mxu0 %v2613
    %4050 = vmatpush.bf16.msra.mxu0 %v2609
    %4051 = vmatmul.bf16.gmra.mxu0 %v977
    %v4052 = vpop.f32.mrf.mxu0
    %v4053 = vadd.f32 %v4039, %v4052
    %v4054 = vpop.f32.mrf.mxu0
    %v4055 = vadd.f32 %v4041, %v4054
    %4056 = vdwg.mxu0
    %4057 = vmatpush.bf16.msra.mxu0 %v2669
    %4058 = vmatpush.bf16.msra.mxu0 %v2665
    %4059 = vmatpush.bf16.msra.mxu0 %v2661
    %4060 = vmatpush.bf16.msra.mxu0 %v2657
    %4061 = vmatpush.bf16.msra.mxu0 %v2653
    %4062 = vmatpush.bf16.msra.mxu0 %v2649
    %4063 = vmatpush.bf16.msra.mxu0 %v2645
    %4064 = vmatpush.bf16.msra.mxu0 %v2641
    %4065 = vmatmul.bf16.gmra.mxu0 %v978
    %v4066 = vpop.f32.mrf.mxu0
    %v4067 = vadd.f32 %v4053, %v4066
    %v4068 = vpop.f32.mrf.mxu0
    %v4069 = vadd.f32 %v4055, %v4068
    %4070 = vdwg.mxu0
    %4071 = vmatpush.bf16.msra.mxu0 %v2701
    %4072 = vmatpush.bf16.msra.mxu0 %v2697
    %4073 = vmatpush.bf16.msra.mxu0 %v2693
    %4074 = vmatpush.bf16.msra.mxu0 %v2689
    %4075 = vmatpush.bf16.msra.mxu0 %v2685
    %4076 = vmatpush.bf16.msra.mxu0 %v2681
    %4077 = vmatpush.bf16.msra.mxu0 %v2677
    %4078 = vmatpush.bf16.msra.mxu0 %v2673
    %4079 = vmatmul.bf16.gmra.mxu0 %v979
    %v4080 = vpop.f32.mrf.mxu0
    %v4081 = vadd.f32 %v4067, %v4080
    %v4082 = vpop.f32.mrf.mxu0
    %v4083 = vadd.f32 %v4069, %v4082
    %4084 = vdwg.mxu0
    %4085 = vmatpush.bf16.msra.mxu0 %v2733
    %4086 = vmatpush.bf16.msra.mxu0 %v2729
    %4087 = vmatpush.bf16.msra.mxu0 %v2725
    %4088 = vmatpush.bf16.msra.mxu0 %v2721
    %4089 = vmatpush.bf16.msra.mxu0 %v2717
    %4090 = vmatpush.bf16.msra.mxu0 %v2713
    %4091 = vmatpush.bf16.msra.mxu0 %v2709
    %4092 = vmatpush.bf16.msra.mxu0 %v2705
    %4093 = vmatmul.bf16.gmra.mxu0 %v980
    %v4094 = vpop.f32.mrf.mxu0
    %v4095 = vadd.f32 %v4081, %v4094
    %v4096 = vpop.f32.mrf.mxu0
    %v4097 = vadd.f32 %v4083, %v4096
    %4098 = vdwg.mxu0
    %4099 = vmatpush.bf16.msra.mxu0 %v2765
    %4100 = vmatpush.bf16.msra.mxu0 %v2761
    %4101 = vmatpush.bf16.msra.mxu0 %v2757
    %4102 = vmatpush.bf16.msra.mxu0 %v2753
    %4103 = vmatpush.bf16.msra.mxu0 %v2749
    %4104 = vmatpush.bf16.msra.mxu0 %v2745
    %4105 = vmatpush.bf16.msra.mxu0 %v2741
    %4106 = vmatpush.bf16.msra.mxu0 %v2737
    %4107 = vmatmul.bf16.gmra.mxu0 %v981
    %v4108 = vpop.f32.mrf.mxu0
    %v4109 = vadd.f32 %v4095, %v4108
    %v4110 = vpop.f32.mrf.mxu0
    %v4111 = vadd.f32 %v4097, %v4110
    %4112 = vdwg.mxu0
    %4113 = vmatpush.bf16.msra.mxu0 %v2797
    %4114 = vmatpush.bf16.msra.mxu0 %v2793
    %4115 = vmatpush.bf16.msra.mxu0 %v2789
    %4116 = vmatpush.bf16.msra.mxu0 %v2785
    %4117 = vmatpush.bf16.msra.mxu0 %v2781
    %4118 = vmatpush.bf16.msra.mxu0 %v2777
    %4119 = vmatpush.bf16.msra.mxu0 %v2773
    %4120 = vmatpush.bf16.msra.mxu0 %v2769
    %4121 = vmatmul.bf16.gmra.mxu0 %v982
    %v4122 = vpop.f32.mrf.mxu0
    %v4123 = vadd.f32 %v4109, %v4122
    %v4124 = vpop.f32.mrf.mxu0
    %v4125 = vadd.f32 %v4111, %v4124
    %4126 = vdwg.mxu0
    %4127 = vmatpush.bf16.msra.mxu0 %v2829
    %4128 = vmatpush.bf16.msra.mxu0 %v2825
    %4129 = vmatpush.bf16.msra.mxu0 %v2821
    %4130 = vmatpush.bf16.msra.mxu0 %v2817
    %4131 = vmatpush.bf16.msra.mxu0 %v2813
    %4132 = vmatpush.bf16.msra.mxu0 %v2809
    %4133 = vmatpush.bf16.msra.mxu0 %v2805
    %4134 = vmatpush.bf16.msra.mxu0 %v2801
    %4135 = vmatmul.bf16.gmra.mxu0 %v983
    %v4136 = vpop.f32.mrf.mxu0
    %v4137 = vadd.f32 %v4123, %v4136
    %v4138 = vpop.f32.mrf.mxu0
    %v4139 = vadd.f32 %v4125, %v4138
    %4140 = vdwg.mxu0
    %4141 = vmatpush.bf16.msra.mxu0 %v2861
    %4142 = vmatpush.bf16.msra.mxu0 %v2857
    %4143 = vmatpush.bf16.msra.mxu0 %v2853
    %4144 = vmatpush.bf16.msra.mxu0 %v2849
    %4145 = vmatpush.bf16.msra.mxu0 %v2845
    %4146 = vmatpush.bf16.msra.mxu0 %v2841
    %4147 = vmatpush.bf16.msra.mxu0 %v2837
    %4148 = vmatpush.bf16.msra.mxu0 %v2833
    %4149 = vmatmul.bf16.gmra.mxu0 %v984
    %v4150 = vpop.f32.mrf.mxu0
    %v4151 = vadd.f32 %v4137, %v4150
    %v4152 = vpop.f32.mrf.mxu0
    %v4153 = vadd.f32 %v4139, %v4152
    %4154 = vdwg.mxu0
    %4155 = vmatpush.bf16.msra.mxu0 %v2893
    %4156 = vmatpush.bf16.msra.mxu0 %v2889
    %4157 = vmatpush.bf16.msra.mxu0 %v2885
    %4158 = vmatpush.bf16.msra.mxu0 %v2881
    %4159 = vmatpush.bf16.msra.mxu0 %v2877
    %4160 = vmatpush.bf16.msra.mxu0 %v2873
    %4161 = vmatpush.bf16.msra.mxu0 %v2869
    %4162 = vmatpush.bf16.msra.mxu0 %v2865
    %4163 = vmatmul.bf16.gmra.mxu0 %v985
    %v4164 = vpop.f32.mrf.mxu0
    %v4165 = vadd.f32 %v4151, %v4164
    %v4166 = vpop.f32.mrf.mxu0
    %v4167 = vadd.f32 %v4153, %v4166
    %4168 = vdwg.mxu0
    %4169 = vmatpush.bf16.msra.mxu0 %v2925
    %4170 = vmatpush.bf16.msra.mxu0 %v2921
    %4171 = vmatpush.bf16.msra.mxu0 %v2917
    %4172 = vmatpush.bf16.msra.mxu0 %v2913
    %4173 = vmatpush.bf16.msra.mxu0 %v2909
    %4174 = vmatpush.bf16.msra.mxu0 %v2905
    %4175 = vmatpush.bf16.msra.mxu0 %v2901
    %4176 = vmatpush.bf16.msra.mxu0 %v2897
    %4177 = vmatmul.bf16.gmra.mxu0 %v986
    %v4178 = vpop.f32.mrf.mxu0
    %v4179 = vadd.f32 %v4165, %v4178
    %v4180 = vpop.f32.mrf.mxu0
    %v4181 = vadd.f32 %v4167, %v4180
    %4182 = vdwg.mxu0
    %4183 = vmatpush.bf16.msra.mxu0 %v2957
    %4184 = vmatpush.bf16.msra.mxu0 %v2953
    %4185 = vmatpush.bf16.msra.mxu0 %v2949
    %4186 = vmatpush.bf16.msra.mxu0 %v2945
    %4187 = vmatpush.bf16.msra.mxu0 %v2941
    %4188 = vmatpush.bf16.msra.mxu0 %v2937
    %4189 = vmatpush.bf16.msra.mxu0 %v2933
    %4190 = vmatpush.bf16.msra.mxu0 %v2929
    %4191 = vmatmul.bf16.gmra.mxu0 %v987
    %v4192 = vpop.f32.mrf.mxu0
    %v4193 = vadd.f32 %v4179, %v4192
    %v4194 = vpop.f32.mrf.mxu0
    %v4195 = vadd.f32 %v4181, %v4194
    %4196 = vdwg.mxu0
    %4197 = vmatpush.bf16.msra.mxu0 %v2989
    %4198 = vmatpush.bf16.msra.mxu0 %v2985
    %4199 = vmatpush.bf16.msra.mxu0 %v2981
    %4200 = vmatpush.bf16.msra.mxu0 %v2977
    %4201 = vmatpush.bf16.msra.mxu0 %v2973
    %4202 = vmatpush.bf16.msra.mxu0 %v2969
    %4203 = vmatpush.bf16.msra.mxu0 %v2965
    %4204 = vmatpush.bf16.msra.mxu0 %v2961
    %4205 = vmatmul.bf16.gmra.mxu0 %v988
    %v4206 = vpop.f32.mrf.mxu0
    %v4207 = vadd.f32 %v4193, %v4206
    %v4208 = vpop.f32.mrf.mxu0
    %v4209 = vadd.f32 %v4195, %v4208
    %4210 = vdwg.mxu0
    %4211 = vmatpush.bf16.msra.mxu0 %v3021
    %4212 = vmatpush.bf16.msra.mxu0 %v3017
    %4213 = vmatpush.bf16.msra.mxu0 %v3013
    %4214 = vmatpush.bf16.msra.mxu0 %v3009
    %4215 = vmatpush.bf16.msra.mxu0 %v3005
    %4216 = vmatpush.bf16.msra.mxu0 %v3001
    %4217 = vmatpush.bf16.msra.mxu0 %v2997
    %4218 = vmatpush.bf16.msra.mxu0 %v2993
    %4219 = vmatmul.bf16.gmra.mxu0 %v989
    %v4220 = vpop.f32.mrf.mxu0
    %v4221 = vadd.f32 %v4207, %v4220
    %v4222 = vpop.f32.mrf.mxu0
    %v4223 = vadd.f32 %v4209, %v4222
    %4224 = vdwg.mxu0
    %4225 = vmatpush.bf16.msra.mxu0 %v3053
    %4226 = vmatpush.bf16.msra.mxu0 %v3049
    %4227 = vmatpush.bf16.msra.mxu0 %v3045
    %4228 = vmatpush.bf16.msra.mxu0 %v3041
    %4229 = vmatpush.bf16.msra.mxu0 %v3037
    %4230 = vmatpush.bf16.msra.mxu0 %v3033
    %4231 = vmatpush.bf16.msra.mxu0 %v3029
    %4232 = vmatpush.bf16.msra.mxu0 %v3025
    %4233 = vmatmul.bf16.gmra.mxu0 %v990
    %v4234 = vpop.f32.mrf.mxu0
    %v4235 = vadd.f32 %v4221, %v4234
    %v4236 = vpop.f32.mrf.mxu0
    %v4237 = vadd.f32 %v4223, %v4236
    %4238 = vdwg.mxu0
    %4239 = vmatpush.bf16.msra.mxu0 %v2574
    %4240 = vmatpush.bf16.msra.mxu0 %v2570
    %4241 = vmatpush.bf16.msra.mxu0 %v2566
    %4242 = vmatpush.bf16.msra.mxu0 %v2562
    %4243 = vmatpush.bf16.msra.mxu0 %v2558
    %4244 = vmatpush.bf16.msra.mxu0 %v2554
    %4245 = vmatpush.bf16.msra.mxu0 %v2550
    %4246 = vmatpush.bf16.msra.mxu0 %v2546
    %4247 = vmatmul.bf16.gmra.mxu0 %v975
    %v4248 = vpop.f32.mrf.mxu0
    %v4249 = vadd.f32 %v923, %v4248
    %v4250 = vpop.f32.mrf.mxu0
    %v4251 = vadd.f32 %v925, %v4250
    %4252 = vdwg.mxu0
    %4253 = vmatpush.bf16.msra.mxu0 %v2606
    %4254 = vmatpush.bf16.msra.mxu0 %v2602
    %4255 = vmatpush.bf16.msra.mxu0 %v2598
    %4256 = vmatpush.bf16.msra.mxu0 %v2594
    %4257 = vmatpush.bf16.msra.mxu0 %v2590
    %4258 = vmatpush.bf16.msra.mxu0 %v2586
    %4259 = vmatpush.bf16.msra.mxu0 %v2582
    %4260 = vmatpush.bf16.msra.mxu0 %v2578
    %4261 = vmatmul.bf16.gmra.mxu0 %v976
    %v4262 = vpop.f32.mrf.mxu0
    %v4263 = vadd.f32 %v4249, %v4262
    %v4264 = vpop.f32.mrf.mxu0
    %v4265 = vadd.f32 %v4251, %v4264
    %4266 = vdwg.mxu0
    %4267 = vmatpush.bf16.msra.mxu0 %v2638
    %4268 = vmatpush.bf16.msra.mxu0 %v2634
    %4269 = vmatpush.bf16.msra.mxu0 %v2630
    %4270 = vmatpush.bf16.msra.mxu0 %v2626
    %4271 = vmatpush.bf16.msra.mxu0 %v2622
    %4272 = vmatpush.bf16.msra.mxu0 %v2618
    %4273 = vmatpush.bf16.msra.mxu0 %v2614
    %4274 = vmatpush.bf16.msra.mxu0 %v2610
    %4275 = vmatmul.bf16.gmra.mxu0 %v977
    %v4276 = vpop.f32.mrf.mxu0
    %v4277 = vadd.f32 %v4263, %v4276
    %v4278 = vpop.f32.mrf.mxu0
    %v4279 = vadd.f32 %v4265, %v4278
    %4280 = vdwg.mxu0
    %4281 = vmatpush.bf16.msra.mxu0 %v2670
    %4282 = vmatpush.bf16.msra.mxu0 %v2666
    %4283 = vmatpush.bf16.msra.mxu0 %v2662
    %4284 = vmatpush.bf16.msra.mxu0 %v2658
    %4285 = vmatpush.bf16.msra.mxu0 %v2654
    %4286 = vmatpush.bf16.msra.mxu0 %v2650
    %4287 = vmatpush.bf16.msra.mxu0 %v2646
    %4288 = vmatpush.bf16.msra.mxu0 %v2642
    %4289 = vmatmul.bf16.gmra.mxu0 %v978
    %v4290 = vpop.f32.mrf.mxu0
    %v4291 = vadd.f32 %v4277, %v4290
    %v4292 = vpop.f32.mrf.mxu0
    %v4293 = vadd.f32 %v4279, %v4292
    %4294 = vdwg.mxu0
    %4295 = vmatpush.bf16.msra.mxu0 %v2702
    %4296 = vmatpush.bf16.msra.mxu0 %v2698
    %4297 = vmatpush.bf16.msra.mxu0 %v2694
    %4298 = vmatpush.bf16.msra.mxu0 %v2690
    %4299 = vmatpush.bf16.msra.mxu0 %v2686
    %4300 = vmatpush.bf16.msra.mxu0 %v2682
    %4301 = vmatpush.bf16.msra.mxu0 %v2678
    %4302 = vmatpush.bf16.msra.mxu0 %v2674
    %4303 = vmatmul.bf16.gmra.mxu0 %v979
    %v4304 = vpop.f32.mrf.mxu0
    %v4305 = vadd.f32 %v4291, %v4304
    %v4306 = vpop.f32.mrf.mxu0
    %v4307 = vadd.f32 %v4293, %v4306
    %4308 = vdwg.mxu0
    %4309 = vmatpush.bf16.msra.mxu0 %v2734
    %4310 = vmatpush.bf16.msra.mxu0 %v2730
    %4311 = vmatpush.bf16.msra.mxu0 %v2726
    %4312 = vmatpush.bf16.msra.mxu0 %v2722
    %4313 = vmatpush.bf16.msra.mxu0 %v2718
    %4314 = vmatpush.bf16.msra.mxu0 %v2714
    %4315 = vmatpush.bf16.msra.mxu0 %v2710
    %4316 = vmatpush.bf16.msra.mxu0 %v2706
    %4317 = vmatmul.bf16.gmra.mxu0 %v980
    %v4318 = vpop.f32.mrf.mxu0
    %v4319 = vadd.f32 %v4305, %v4318
    %v4320 = vpop.f32.mrf.mxu0
    %v4321 = vadd.f32 %v4307, %v4320
    %4322 = vdwg.mxu0
    %4323 = vmatpush.bf16.msra.mxu0 %v2766
    %4324 = vmatpush.bf16.msra.mxu0 %v2762
    %4325 = vmatpush.bf16.msra.mxu0 %v2758
    %4326 = vmatpush.bf16.msra.mxu0 %v2754
    %4327 = vmatpush.bf16.msra.mxu0 %v2750
    %4328 = vmatpush.bf16.msra.mxu0 %v2746
    %4329 = vmatpush.bf16.msra.mxu0 %v2742
    %4330 = vmatpush.bf16.msra.mxu0 %v2738
    %4331 = vmatmul.bf16.gmra.mxu0 %v981
    %v4332 = vpop.f32.mrf.mxu0
    %v4333 = vadd.f32 %v4319, %v4332
    %v4334 = vpop.f32.mrf.mxu0
    %v4335 = vadd.f32 %v4321, %v4334
    %4336 = vdwg.mxu0
    %4337 = vmatpush.bf16.msra.mxu0 %v2798
    %4338 = vmatpush.bf16.msra.mxu0 %v2794
    %4339 = vmatpush.bf16.msra.mxu0 %v2790
    %4340 = vmatpush.bf16.msra.mxu0 %v2786
    %4341 = vmatpush.bf16.msra.mxu0 %v2782
    %4342 = vmatpush.bf16.msra.mxu0 %v2778
    %4343 = vmatpush.bf16.msra.mxu0 %v2774
    %4344 = vmatpush.bf16.msra.mxu0 %v2770
    %4345 = vmatmul.bf16.gmra.mxu0 %v982
    %v4346 = vpop.f32.mrf.mxu0
    %v4347 = vadd.f32 %v4333, %v4346
    %v4348 = vpop.f32.mrf.mxu0
    %v4349 = vadd.f32 %v4335, %v4348
    %4350 = vdwg.mxu0
    %4351 = vmatpush.bf16.msra.mxu0 %v2830
    %4352 = vmatpush.bf16.msra.mxu0 %v2826
    %4353 = vmatpush.bf16.msra.mxu0 %v2822
    %4354 = vmatpush.bf16.msra.mxu0 %v2818
    %4355 = vmatpush.bf16.msra.mxu0 %v2814
    %4356 = vmatpush.bf16.msra.mxu0 %v2810
    %4357 = vmatpush.bf16.msra.mxu0 %v2806
    %4358 = vmatpush.bf16.msra.mxu0 %v2802
    %4359 = vmatmul.bf16.gmra.mxu0 %v983
    %v4360 = vpop.f32.mrf.mxu0
    %v4361 = vadd.f32 %v4347, %v4360
    %v4362 = vpop.f32.mrf.mxu0
    %v4363 = vadd.f32 %v4349, %v4362
    %4364 = vdwg.mxu0
    %4365 = vmatpush.bf16.msra.mxu0 %v2862
    %4366 = vmatpush.bf16.msra.mxu0 %v2858
    %4367 = vmatpush.bf16.msra.mxu0 %v2854
    %4368 = vmatpush.bf16.msra.mxu0 %v2850
    %4369 = vmatpush.bf16.msra.mxu0 %v2846
    %4370 = vmatpush.bf16.msra.mxu0 %v2842
    %4371 = vmatpush.bf16.msra.mxu0 %v2838
    %4372 = vmatpush.bf16.msra.mxu0 %v2834
    %4373 = vmatmul.bf16.gmra.mxu0 %v984
    %v4374 = vpop.f32.mrf.mxu0
    %v4375 = vadd.f32 %v4361, %v4374
    %v4376 = vpop.f32.mrf.mxu0
    %v4377 = vadd.f32 %v4363, %v4376
    %4378 = vdwg.mxu0
    %4379 = vmatpush.bf16.msra.mxu0 %v2894
    %4380 = vmatpush.bf16.msra.mxu0 %v2890
    %4381 = vmatpush.bf16.msra.mxu0 %v2886
    %4382 = vmatpush.bf16.msra.mxu0 %v2882
    %4383 = vmatpush.bf16.msra.mxu0 %v2878
    %4384 = vmatpush.bf16.msra.mxu0 %v2874
    %4385 = vmatpush.bf16.msra.mxu0 %v2870
    %4386 = vmatpush.bf16.msra.mxu0 %v2866
    %4387 = vmatmul.bf16.gmra.mxu0 %v985
    %v4388 = vpop.f32.mrf.mxu0
    %v4389 = vadd.f32 %v4375, %v4388
    %v4390 = vpop.f32.mrf.mxu0
    %v4391 = vadd.f32 %v4377, %v4390
    %4392 = vdwg.mxu0
    %4393 = vmatpush.bf16.msra.mxu0 %v2926
    %4394 = vmatpush.bf16.msra.mxu0 %v2922
    %4395 = vmatpush.bf16.msra.mxu0 %v2918
    %4396 = vmatpush.bf16.msra.mxu0 %v2914
    %4397 = vmatpush.bf16.msra.mxu0 %v2910
    %4398 = vmatpush.bf16.msra.mxu0 %v2906
    %4399 = vmatpush.bf16.msra.mxu0 %v2902
    %4400 = vmatpush.bf16.msra.mxu0 %v2898
    %4401 = vmatmul.bf16.gmra.mxu0 %v986
    %v4402 = vpop.f32.mrf.mxu0
    %v4403 = vadd.f32 %v4389, %v4402
    %v4404 = vpop.f32.mrf.mxu0
    %v4405 = vadd.f32 %v4391, %v4404
    %4406 = vdwg.mxu0
    %4407 = vmatpush.bf16.msra.mxu0 %v2958
    %4408 = vmatpush.bf16.msra.mxu0 %v2954
    %4409 = vmatpush.bf16.msra.mxu0 %v2950
    %4410 = vmatpush.bf16.msra.mxu0 %v2946
    %4411 = vmatpush.bf16.msra.mxu0 %v2942
    %4412 = vmatpush.bf16.msra.mxu0 %v2938
    %4413 = vmatpush.bf16.msra.mxu0 %v2934
    %4414 = vmatpush.bf16.msra.mxu0 %v2930
    %4415 = vmatmul.bf16.gmra.mxu0 %v987
    %v4416 = vpop.f32.mrf.mxu0
    %v4417 = vadd.f32 %v4403, %v4416
    %v4418 = vpop.f32.mrf.mxu0
    %v4419 = vadd.f32 %v4405, %v4418
    %4420 = vdwg.mxu0
    %4421 = vmatpush.bf16.msra.mxu0 %v2990
    %4422 = vmatpush.bf16.msra.mxu0 %v2986
    %4423 = vmatpush.bf16.msra.mxu0 %v2982
    %4424 = vmatpush.bf16.msra.mxu0 %v2978
    %4425 = vmatpush.bf16.msra.mxu0 %v2974
    %4426 = vmatpush.bf16.msra.mxu0 %v2970
    %4427 = vmatpush.bf16.msra.mxu0 %v2966
    %4428 = vmatpush.bf16.msra.mxu0 %v2962
    %4429 = vmatmul.bf16.gmra.mxu0 %v988
    %v4430 = vpop.f32.mrf.mxu0
    %v4431 = vadd.f32 %v4417, %v4430
    %v4432 = vpop.f32.mrf.mxu0
    %v4433 = vadd.f32 %v4419, %v4432
    %4434 = vdwg.mxu0
    %4435 = vmatpush.bf16.msra.mxu0 %v3022
    %4436 = vmatpush.bf16.msra.mxu0 %v3018
    %4437 = vmatpush.bf16.msra.mxu0 %v3014
    %4438 = vmatpush.bf16.msra.mxu0 %v3010
    %4439 = vmatpush.bf16.msra.mxu0 %v3006
    %4440 = vmatpush.bf16.msra.mxu0 %v3002
    %4441 = vmatpush.bf16.msra.mxu0 %v2998
    %4442 = vmatpush.bf16.msra.mxu0 %v2994
    %4443 = vmatmul.bf16.gmra.mxu0 %v989
    %v4444 = vpop.f32.mrf.mxu0
    %v4445 = vadd.f32 %v4431, %v4444
    %v4446 = vpop.f32.mrf.mxu0
    %v4447 = vadd.f32 %v4433, %v4446
    %4448 = vdwg.mxu0
    %4449 = vmatpush.bf16.msra.mxu0 %v3054
    %4450 = vmatpush.bf16.msra.mxu0 %v3050
    %4451 = vmatpush.bf16.msra.mxu0 %v3046
    %4452 = vmatpush.bf16.msra.mxu0 %v3042
    %4453 = vmatpush.bf16.msra.mxu0 %v3038
    %4454 = vmatpush.bf16.msra.mxu0 %v3034
    %4455 = vmatpush.bf16.msra.mxu0 %v3030
    %4456 = vmatpush.bf16.msra.mxu0 %v3026
    %4457 = vmatmul.bf16.gmra.mxu0 %v990
    %v4458 = vpop.f32.mrf.mxu0
    %v4459 = vadd.f32 %v4445, %v4458
    %v4460 = vpop.f32.mrf.mxu0
    %v4461 = vadd.f32 %v4447, %v4460
    %4462 = vdwg.mxu0
    %v4463 = vld [vmem:[#allocation7] sm:$0xf]
    %v4465 = vperm.slane %v4463, 0
    %v4466 = vperm.slane %v4463, 1
    %v4467 = vperm.slane %v4463, 2
    %v4468 = vperm.slane %v4463, 3
    %v4473 = vadd.f32 %v3787, %v4465
    %v4474 = vadd.f32 %v4011, %v4466
    %v4475 = vadd.f32 %v4235, %v4467
    %v4476 = vadd.f32 %v4459, %v4468
    %v4477 = vadd.f32 %v3789, %v4465
    %v4478 = vadd.f32 %v4013, %v4466
    %v4479 = vadd.f32 %v4237, %v4467
    %v4480 = vadd.f32 %v4461, %v4468
    %vm4481 = vcmp.gt.f32.partialorder %v4473, 0.0
    %vm4482 = vcmp.gt.f32.partialorder %v4474, 0.0
    %vm4483 = vcmp.gt.f32.partialorder %v4475, 0.0
    %vm4484 = vcmp.gt.f32.partialorder %v4476, 0.0
    %vm4485 = vcmp.gt.f32.partialorder %v4477, 0.0
    %vm4486 = vcmp.gt.f32.partialorder %v4478, 0.0
    %vm4487 = vcmp.gt.f32.partialorder %v4479, 0.0
    %vm4488 = vcmp.gt.f32.partialorder %v4480, 0.0
    %v4489 = vmul.f32 %v4473, 0.2
    %v4490 = vmul.f32 %v4474, 0.2
    %v4491 = vmul.f32 %v4475, 0.2
    %v4492 = vmul.f32 %v4476, 0.2
    %v4493 = vmul.f32 %v4477, 0.2
    %v4494 = vmul.f32 %v4478, 0.2
    %v4495 = vmul.f32 %v4479, 0.2
    %v4496 = vmul.f32 %v4480, 0.2
    %v4497 = vsel %vm4481, %v4473, %v4489
    %v4498 = vsel %vm4482, %v4474, %v4490
    %v4499 = vsel %vm4483, %v4475, %v4491
    %v4500 = vsel %vm4484, %v4476, %v4492
    %v4501 = vsel %vm4485, %v4477, %v4493
    %v4502 = vsel %vm4486, %v4478, %v4494
    %v4503 = vsel %vm4487, %v4479, %v4495
    %v4504 = vsel %vm4488, %v4480, %v4496
    %v4505 = vpack.c.bf16 %v4501, %v4497
    %v4506 = vpack.c.bf16 %v4502, %v4498
    %v4507 = vpack.c.bf16 %v4503, %v4499
    %v4508 = vpack.c.bf16 %v4504, %v4500
    %v4509 = vld [vmem:[#allocation8] sm:$0xff]
    %v4510 = vld [vmem:[#allocation8 + $0x8] sm:$0xff]
    %v4511 = vld [vmem:[#allocation8 + $0x10] sm:$0xff]
    %v4512 = vld [vmem:[#allocation8 + $0x18] sm:$0xff]
    %v4513 = vld [vmem:[#allocation8 + $0x20] sm:$0xff]
    %v4514 = vld [vmem:[#allocation8 + $0x28] sm:$0xff]
    %v4515 = vld [vmem:[#allocation8 + $0x30] sm:$0xff]
    %v4516 = vld [vmem:[#allocation8 + $0x38] sm:$0xff]
    %v4517 = vld [vmem:[#allocation8 + $0x40] sm:$0xff]
    %v4518 = vld [vmem:[#allocation8 + $0x48] sm:$0xff]
    %v4519 = vld [vmem:[#allocation8 + $0x50] sm:$0xff]
    %v4520 = vld [vmem:[#allocation8 + $0x58] sm:$0xff]
    %v4521 = vld [vmem:[#allocation8 + $0x60] sm:$0xff]
    %v4522 = vld [vmem:[#allocation8 + $0x68] sm:$0xff]
    %v4523 = vld [vmem:[#allocation8 + $0x70] sm:$0xff]
    %v4524 = vld [vmem:[#allocation8 + $0x78] sm:$0xff]
    %v4525 = vld [vmem:[#allocation8 + $0x80] sm:$0xff]
    %v4526 = vld [vmem:[#allocation8 + $0x88] sm:$0xff]
    %v4527 = vld [vmem:[#allocation8 + $0x90] sm:$0xff]
    %v4528 = vld [vmem:[#allocation8 + $0x98] sm:$0xff]
    %v4529 = vld [vmem:[#allocation8 + $0xa0] sm:$0xff]
    %v4530 = vld [vmem:[#allocation8 + $0xa8] sm:$0xff]
    %v4531 = vld [vmem:[#allocation8 + $0xb0] sm:$0xff]
    %v4532 = vld [vmem:[#allocation8 + $0xb8] sm:$0xff]
    %v4533 = vld [vmem:[#allocation8 + $0xc0] sm:$0xff]
    %v4534 = vld [vmem:[#allocation8 + $0xc8] sm:$0xff]
    %v4535 = vld [vmem:[#allocation8 + $0xd0] sm:$0xff]
    %v4536 = vld [vmem:[#allocation8 + $0xd8] sm:$0xff]
    %v4537 = vld [vmem:[#allocation8 + $0xe0] sm:$0xff]
    %v4538 = vld [vmem:[#allocation8 + $0xe8] sm:$0xff]
    %v4539 = vld [vmem:[#allocation8 + $0xf0] sm:$0xff]
    %v4540 = vld [vmem:[#allocation8 + $0xf8] sm:$0xff]
    %v4541 = vld [vmem:[#allocation8 + $0x100] sm:$0xff]
    %v4542 = vld [vmem:[#allocation8 + $0x108] sm:$0xff]
    %v4543 = vld [vmem:[#allocation8 + $0x110] sm:$0xff]
    %v4544 = vld [vmem:[#allocation8 + $0x118] sm:$0xff]
    %v4545 = vld [vmem:[#allocation8 + $0x120] sm:$0xff]
    %v4546 = vld [vmem:[#allocation8 + $0x128] sm:$0xff]
    %v4547 = vld [vmem:[#allocation8 + $0x130] sm:$0xff]
    %v4548 = vld [vmem:[#allocation8 + $0x138] sm:$0xff]
    %v4549 = vld [vmem:[#allocation8 + $0x140] sm:$0xff]
    %v4550 = vld [vmem:[#allocation8 + $0x148] sm:$0xff]
    %v4551 = vld [vmem:[#allocation8 + $0x150] sm:$0xff]
    %v4552 = vld [vmem:[#allocation8 + $0x158] sm:$0xff]
    %v4553 = vld [vmem:[#allocation8 + $0x160] sm:$0xff]
    %v4554 = vld [vmem:[#allocation8 + $0x168] sm:$0xff]
    %v4555 = vld [vmem:[#allocation8 + $0x170] sm:$0xff]
    %v4556 = vld [vmem:[#allocation8 + $0x178] sm:$0xff]
    %v4557 = vld [vmem:[#allocation8 + $0x180] sm:$0xff]
    %v4558 = vld [vmem:[#allocation8 + $0x188] sm:$0xff]
    %v4559 = vld [vmem:[#allocation8 + $0x190] sm:$0xff]
    %v4560 = vld [vmem:[#allocation8 + $0x198] sm:$0xff]
    %v4561 = vld [vmem:[#allocation8 + $0x1a0] sm:$0xff]
    %v4562 = vld [vmem:[#allocation8 + $0x1a8] sm:$0xff]
    %v4563 = vld [vmem:[#allocation8 + $0x1b0] sm:$0xff]
    %v4564 = vld [vmem:[#allocation8 + $0x1b8] sm:$0xff]
    %v4565 = vld [vmem:[#allocation8 + $0x1c0] sm:$0xff]
    %v4566 = vld [vmem:[#allocation8 + $0x1c8] sm:$0xff]
    %v4567 = vld [vmem:[#allocation8 + $0x1d0] sm:$0xff]
    %v4568 = vld [vmem:[#allocation8 + $0x1d8] sm:$0xff]
    %v4569 = vld [vmem:[#allocation8 + $0x1e0] sm:$0xff]
    %v4570 = vld [vmem:[#allocation8 + $0x1e8] sm:$0xff]
    %v4571 = vld [vmem:[#allocation8 + $0x1f0] sm:$0xff]
    %v4572 = vld [vmem:[#allocation8 + $0x1f8] sm:$0xff]
    %v4573 = vld [vmem:[#allocation8 + $0x200] sm:$0xff]
    %v4574 = vld [vmem:[#allocation8 + $0x208] sm:$0xff]
    %v4575 = vld [vmem:[#allocation8 + $0x210] sm:$0xff]
    %v4576 = vld [vmem:[#allocation8 + $0x218] sm:$0xff]
    %v4577 = vld [vmem:[#allocation8 + $0x220] sm:$0xff]
    %v4578 = vld [vmem:[#allocation8 + $0x228] sm:$0xff]
    %v4579 = vld [vmem:[#allocation8 + $0x230] sm:$0xff]
    %v4580 = vld [vmem:[#allocation8 + $0x238] sm:$0xff]
    %v4581 = vld [vmem:[#allocation8 + $0x240] sm:$0xff]
    %v4582 = vld [vmem:[#allocation8 + $0x248] sm:$0xff]
    %v4583 = vld [vmem:[#allocation8 + $0x250] sm:$0xff]
    %v4584 = vld [vmem:[#allocation8 + $0x258] sm:$0xff]
    %v4585 = vld [vmem:[#allocation8 + $0x260] sm:$0xff]
    %v4586 = vld [vmem:[#allocation8 + $0x268] sm:$0xff]
    %v4587 = vld [vmem:[#allocation8 + $0x270] sm:$0xff]
    %v4588 = vld [vmem:[#allocation8 + $0x278] sm:$0xff]
    %v4589 = vld [vmem:[#allocation8 + $0x280] sm:$0xff]
    %v4590 = vld [vmem:[#allocation8 + $0x288] sm:$0xff]
    %v4591 = vld [vmem:[#allocation8 + $0x290] sm:$0xff]
    %v4592 = vld [vmem:[#allocation8 + $0x298] sm:$0xff]
    %v4593 = vld [vmem:[#allocation8 + $0x2a0] sm:$0xff]
    %v4594 = vld [vmem:[#allocation8 + $0x2a8] sm:$0xff]
    %v4595 = vld [vmem:[#allocation8 + $0x2b0] sm:$0xff]
    %v4596 = vld [vmem:[#allocation8 + $0x2b8] sm:$0xff]
    %v4597 = vld [vmem:[#allocation8 + $0x2c0] sm:$0xff]
    %v4598 = vld [vmem:[#allocation8 + $0x2c8] sm:$0xff]
    %v4599 = vld [vmem:[#allocation8 + $0x2d0] sm:$0xff]
    %v4600 = vld [vmem:[#allocation8 + $0x2d8] sm:$0xff]
    %v4601 = vld [vmem:[#allocation8 + $0x2e0] sm:$0xff]
    %v4602 = vld [vmem:[#allocation8 + $0x2e8] sm:$0xff]
    %v4603 = vld [vmem:[#allocation8 + $0x2f0] sm:$0xff]
    %v4604 = vld [vmem:[#allocation8 + $0x2f8] sm:$0xff]
    %v4605 = vld [vmem:[#allocation8 + $0x300] sm:$0xff]
    %v4606 = vld [vmem:[#allocation8 + $0x308] sm:$0xff]
    %v4607 = vld [vmem:[#allocation8 + $0x310] sm:$0xff]
    %v4608 = vld [vmem:[#allocation8 + $0x318] sm:$0xff]
    %v4609 = vld [vmem:[#allocation8 + $0x320] sm:$0xff]
    %v4610 = vld [vmem:[#allocation8 + $0x328] sm:$0xff]
    %v4611 = vld [vmem:[#allocation8 + $0x330] sm:$0xff]
    %v4612 = vld [vmem:[#allocation8 + $0x338] sm:$0xff]
    %v4613 = vld [vmem:[#allocation8 + $0x340] sm:$0xff]
    %v4614 = vld [vmem:[#allocation8 + $0x348] sm:$0xff]
    %v4615 = vld [vmem:[#allocation8 + $0x350] sm:$0xff]
    %v4616 = vld [vmem:[#allocation8 + $0x358] sm:$0xff]
    %v4617 = vld [vmem:[#allocation8 + $0x360] sm:$0xff]
    %v4618 = vld [vmem:[#allocation8 + $0x368] sm:$0xff]
    %v4619 = vld [vmem:[#allocation8 + $0x370] sm:$0xff]
    %v4620 = vld [vmem:[#allocation8 + $0x378] sm:$0xff]
    %v4621 = vld [vmem:[#allocation8 + $0x380] sm:$0xff]
    %v4622 = vld [vmem:[#allocation8 + $0x388] sm:$0xff]
    %v4623 = vld [vmem:[#allocation8 + $0x390] sm:$0xff]
    %v4624 = vld [vmem:[#allocation8 + $0x398] sm:$0xff]
    %v4625 = vld [vmem:[#allocation8 + $0x3a0] sm:$0xff]
    %v4626 = vld [vmem:[#allocation8 + $0x3a8] sm:$0xff]
    %v4627 = vld [vmem:[#allocation8 + $0x3b0] sm:$0xff]
    %v4628 = vld [vmem:[#allocation8 + $0x3b8] sm:$0xff]
    %v4629 = vld [vmem:[#allocation8 + $0x3c0] sm:$0xff]
    %v4630 = vld [vmem:[#allocation8 + $0x3c8] sm:$0xff]
    %v4631 = vld [vmem:[#allocation8 + $0x3d0] sm:$0xff]
    %v4632 = vld [vmem:[#allocation8 + $0x3d8] sm:$0xff]
    %v4633 = vld [vmem:[#allocation8 + $0x3e0] sm:$0xff]
    %v4634 = vld [vmem:[#allocation8 + $0x3e8] sm:$0xff]
    %v4635 = vld [vmem:[#allocation8 + $0x3f0] sm:$0xff]
    %v4636 = vld [vmem:[#allocation8 + $0x3f8] sm:$0xff]
    %v4637 = vld [vmem:[#allocation10] sm:$0xf]
    %v4639 = vperm.slane %v4637, 0
    %v4640 = vperm.slane %v4637, 1
    %v4641 = vperm.slane %v4637, 2
    %v4642 = vperm.slane %v4637, 3
    %v4775 = vunpack.c.l.b16 %v4509
    %v4776 = vunpack.c.h.b16 %v4509
    %v4777 = vunpack.c.l.b16 %v4510
    %v4778 = vunpack.c.h.b16 %v4510
    %v4779 = vunpack.c.l.b16 %v4511
    %v4780 = vunpack.c.h.b16 %v4511
    %v4781 = vunpack.c.l.b16 %v4512
    %v4782 = vunpack.c.h.b16 %v4512
    %v4783 = vunpack.c.l.b16 %v4513
    %v4784 = vunpack.c.h.b16 %v4513
    %v4785 = vunpack.c.l.b16 %v4514
    %v4786 = vunpack.c.h.b16 %v4514
    %v4787 = vunpack.c.l.b16 %v4515
    %v4788 = vunpack.c.h.b16 %v4515
    %v4789 = vunpack.c.l.b16 %v4516
    %v4790 = vunpack.c.h.b16 %v4516
    %v4791 = vunpack.c.l.b16 %v4517
    %v4792 = vunpack.c.h.b16 %v4517
    %v4793 = vunpack.c.l.b16 %v4518
    %v4794 = vunpack.c.h.b16 %v4518
    %v4795 = vunpack.c.l.b16 %v4519
    %v4796 = vunpack.c.h.b16 %v4519
    %v4797 = vunpack.c.l.b16 %v4520
    %v4798 = vunpack.c.h.b16 %v4520
    %v4799 = vunpack.c.l.b16 %v4521
    %v4800 = vunpack.c.h.b16 %v4521
    %v4801 = vunpack.c.l.b16 %v4522
    %v4802 = vunpack.c.h.b16 %v4522
    %v4803 = vunpack.c.l.b16 %v4523
    %v4804 = vunpack.c.h.b16 %v4523
    %v4805 = vunpack.c.l.b16 %v4524
    %v4806 = vunpack.c.h.b16 %v4524
    %v4807 = vunpack.c.l.b16 %v4525
    %v4808 = vunpack.c.h.b16 %v4525
    %v4809 = vunpack.c.l.b16 %v4526
    %v4810 = vunpack.c.h.b16 %v4526
    %v4811 = vunpack.c.l.b16 %v4527
    %v4812 = vunpack.c.h.b16 %v4527
    %v4813 = vunpack.c.l.b16 %v4528
    %v4814 = vunpack.c.h.b16 %v4528
    %v4815 = vunpack.c.l.b16 %v4529
    %v4816 = vunpack.c.h.b16 %v4529
    %v4817 = vunpack.c.l.b16 %v4530
    %v4818 = vunpack.c.h.b16 %v4530
    %v4819 = vunpack.c.l.b16 %v4531
    %v4820 = vunpack.c.h.b16 %v4531
    %v4821 = vunpack.c.l.b16 %v4532
    %v4822 = vunpack.c.h.b16 %v4532
    %v4823 = vunpack.c.l.b16 %v4533
    %v4824 = vunpack.c.h.b16 %v4533
    %v4825 = vunpack.c.l.b16 %v4534
    %v4826 = vunpack.c.h.b16 %v4534
    %v4827 = vunpack.c.l.b16 %v4535
    %v4828 = vunpack.c.h.b16 %v4535
    %v4829 = vunpack.c.l.b16 %v4536
    %v4830 = vunpack.c.h.b16 %v4536
    %v4831 = vunpack.c.l.b16 %v4537
    %v4832 = vunpack.c.h.b16 %v4537
    %v4833 = vunpack.c.l.b16 %v4538
    %v4834 = vunpack.c.h.b16 %v4538
    %v4835 = vunpack.c.l.b16 %v4539
    %v4836 = vunpack.c.h.b16 %v4539
    %v4837 = vunpack.c.l.b16 %v4540
    %v4838 = vunpack.c.h.b16 %v4540
    %v4839 = vunpack.c.l.b16 %v4541
    %v4840 = vunpack.c.h.b16 %v4541
    %v4841 = vunpack.c.l.b16 %v4542
    %v4842 = vunpack.c.h.b16 %v4542
    %v4843 = vunpack.c.l.b16 %v4543
    %v4844 = vunpack.c.h.b16 %v4543
    %v4845 = vunpack.c.l.b16 %v4544
    %v4846 = vunpack.c.h.b16 %v4544
    %v4847 = vunpack.c.l.b16 %v4545
    %v4848 = vunpack.c.h.b16 %v4545
    %v4849 = vunpack.c.l.b16 %v4546
    %v4850 = vunpack.c.h.b16 %v4546
    %v4851 = vunpack.c.l.b16 %v4547
    %v4852 = vunpack.c.h.b16 %v4547
    %v4853 = vunpack.c.l.b16 %v4548
    %v4854 = vunpack.c.h.b16 %v4548
    %v4855 = vunpack.c.l.b16 %v4549
    %v4856 = vunpack.c.h.b16 %v4549
    %v4857 = vunpack.c.l.b16 %v4550
    %v4858 = vunpack.c.h.b16 %v4550
    %v4859 = vunpack.c.l.b16 %v4551
    %v4860 = vunpack.c.h.b16 %v4551
    %v4861 = vunpack.c.l.b16 %v4552
    %v4862 = vunpack.c.h.b16 %v4552
    %v4863 = vunpack.c.l.b16 %v4553
    %v4864 = vunpack.c.h.b16 %v4553
    %v4865 = vunpack.c.l.b16 %v4554
    %v4866 = vunpack.c.h.b16 %v4554
    %v4867 = vunpack.c.l.b16 %v4555
    %v4868 = vunpack.c.h.b16 %v4555
    %v4869 = vunpack.c.l.b16 %v4556
    %v4870 = vunpack.c.h.b16 %v4556
    %v4871 = vunpack.c.l.b16 %v4557
    %v4872 = vunpack.c.h.b16 %v4557
    %v4873 = vunpack.c.l.b16 %v4558
    %v4874 = vunpack.c.h.b16 %v4558
    %v4875 = vunpack.c.l.b16 %v4559
    %v4876 = vunpack.c.h.b16 %v4559
    %v4877 = vunpack.c.l.b16 %v4560
    %v4878 = vunpack.c.h.b16 %v4560
    %v4879 = vunpack.c.l.b16 %v4561
    %v4880 = vunpack.c.h.b16 %v4561
    %v4881 = vunpack.c.l.b16 %v4562
    %v4882 = vunpack.c.h.b16 %v4562
    %v4883 = vunpack.c.l.b16 %v4563
    %v4884 = vunpack.c.h.b16 %v4563
    %v4885 = vunpack.c.l.b16 %v4564
    %v4886 = vunpack.c.h.b16 %v4564
    %v4887 = vunpack.c.l.b16 %v4565
    %v4888 = vunpack.c.h.b16 %v4565
    %v4889 = vunpack.c.l.b16 %v4566
    %v4890 = vunpack.c.h.b16 %v4566
    %v4891 = vunpack.c.l.b16 %v4567
    %v4892 = vunpack.c.h.b16 %v4567
    %v4893 = vunpack.c.l.b16 %v4568
    %v4894 = vunpack.c.h.b16 %v4568
    %v4895 = vunpack.c.l.b16 %v4569
    %v4896 = vunpack.c.h.b16 %v4569
    %v4897 = vunpack.c.l.b16 %v4570
    %v4898 = vunpack.c.h.b16 %v4570
    %v4899 = vunpack.c.l.b16 %v4571
    %v4900 = vunpack.c.h.b16 %v4571
    %v4901 = vunpack.c.l.b16 %v4572
    %v4902 = vunpack.c.h.b16 %v4572
    %v4903 = vunpack.c.l.b16 %v4573
    %v4904 = vunpack.c.h.b16 %v4573
    %v4905 = vunpack.c.l.b16 %v4574
    %v4906 = vunpack.c.h.b16 %v4574
    %v4907 = vunpack.c.l.b16 %v4575
    %v4908 = vunpack.c.h.b16 %v4575
    %v4909 = vunpack.c.l.b16 %v4576
    %v4910 = vunpack.c.h.b16 %v4576
    %v4911 = vunpack.c.l.b16 %v4577
    %v4912 = vunpack.c.h.b16 %v4577
    %v4913 = vunpack.c.l.b16 %v4578
    %v4914 = vunpack.c.h.b16 %v4578
    %v4915 = vunpack.c.l.b16 %v4579
    %v4916 = vunpack.c.h.b16 %v4579
    %v4917 = vunpack.c.l.b16 %v4580
    %v4918 = vunpack.c.h.b16 %v4580
    %v4919 = vunpack.c.l.b16 %v4581
    %v4920 = vunpack.c.h.b16 %v4581
    %v4921 = vunpack.c.l.b16 %v4582
    %v4922 = vunpack.c.h.b16 %v4582
    %v4923 = vunpack.c.l.b16 %v4583
    %v4924 = vunpack.c.h.b16 %v4583
    %v4925 = vunpack.c.l.b16 %v4584
    %v4926 = vunpack.c.h.b16 %v4584
    %v4927 = vunpack.c.l.b16 %v4585
    %v4928 = vunpack.c.h.b16 %v4585
    %v4929 = vunpack.c.l.b16 %v4586
    %v4930 = vunpack.c.h.b16 %v4586
    %v4931 = vunpack.c.l.b16 %v4587
    %v4932 = vunpack.c.h.b16 %v4587
    %v4933 = vunpack.c.l.b16 %v4588
    %v4934 = vunpack.c.h.b16 %v4588
    %v4935 = vunpack.c.l.b16 %v4589
    %v4936 = vunpack.c.h.b16 %v4589
    %v4937 = vunpack.c.l.b16 %v4590
    %v4938 = vunpack.c.h.b16 %v4590
    %v4939 = vunpack.c.l.b16 %v4591
    %v4940 = vunpack.c.h.b16 %v4591
    %v4941 = vunpack.c.l.b16 %v4592
    %v4942 = vunpack.c.h.b16 %v4592
    %v4943 = vunpack.c.l.b16 %v4593
    %v4944 = vunpack.c.h.b16 %v4593
    %v4945 = vunpack.c.l.b16 %v4594
    %v4946 = vunpack.c.h.b16 %v4594
    %v4947 = vunpack.c.l.b16 %v4595
    %v4948 = vunpack.c.h.b16 %v4595
    %v4949 = vunpack.c.l.b16 %v4596
    %v4950 = vunpack.c.h.b16 %v4596
    %v4951 = vunpack.c.l.b16 %v4597
    %v4952 = vunpack.c.h.b16 %v4597
    %v4953 = vunpack.c.l.b16 %v4598
    %v4954 = vunpack.c.h.b16 %v4598
    %v4955 = vunpack.c.l.b16 %v4599
    %v4956 = vunpack.c.h.b16 %v4599
    %v4957 = vunpack.c.l.b16 %v4600
    %v4958 = vunpack.c.h.b16 %v4600
    %v4959 = vunpack.c.l.b16 %v4601
    %v4960 = vunpack.c.h.b16 %v4601
    %v4961 = vunpack.c.l.b16 %v4602
    %v4962 = vunpack.c.h.b16 %v4602
    %v4963 = vunpack.c.l.b16 %v4603
    %v4964 = vunpack.c.h.b16 %v4603
    %v4965 = vunpack.c.l.b16 %v4604
    %v4966 = vunpack.c.h.b16 %v4604
    %v4967 = vunpack.c.l.b16 %v4605
    %v4968 = vunpack.c.h.b16 %v4605
    %v4969 = vunpack.c.l.b16 %v4606
    %v4970 = vunpack.c.h.b16 %v4606
    %v4971 = vunpack.c.l.b16 %v4607
    %v4972 = vunpack.c.h.b16 %v4607
    %v4973 = vunpack.c.l.b16 %v4608
    %v4974 = vunpack.c.h.b16 %v4608
    %v4975 = vunpack.c.l.b16 %v4609
    %v4976 = vunpack.c.h.b16 %v4609
    %v4977 = vunpack.c.l.b16 %v4610
    %v4978 = vunpack.c.h.b16 %v4610
    %v4979 = vunpack.c.l.b16 %v4611
    %v4980 = vunpack.c.h.b16 %v4611
    %v4981 = vunpack.c.l.b16 %v4612
    %v4982 = vunpack.c.h.b16 %v4612
    %v4983 = vunpack.c.l.b16 %v4613
    %v4984 = vunpack.c.h.b16 %v4613
    %v4985 = vunpack.c.l.b16 %v4614
    %v4986 = vunpack.c.h.b16 %v4614
    %v4987 = vunpack.c.l.b16 %v4615
    %v4988 = vunpack.c.h.b16 %v4615
    %v4989 = vunpack.c.l.b16 %v4616
    %v4990 = vunpack.c.h.b16 %v4616
    %v4991 = vunpack.c.l.b16 %v4617
    %v4992 = vunpack.c.h.b16 %v4617
    %v4993 = vunpack.c.l.b16 %v4618
    %v4994 = vunpack.c.h.b16 %v4618
    %v4995 = vunpack.c.l.b16 %v4619
    %v4996 = vunpack.c.h.b16 %v4619
    %v4997 = vunpack.c.l.b16 %v4620
    %v4998 = vunpack.c.h.b16 %v4620
    %v4999 = vunpack.c.l.b16 %v4621
    %v5000 = vunpack.c.h.b16 %v4621
    %v5001 = vunpack.c.l.b16 %v4622
    %v5002 = vunpack.c.h.b16 %v4622
    %v5003 = vunpack.c.l.b16 %v4623
    %v5004 = vunpack.c.h.b16 %v4623
    %v5005 = vunpack.c.l.b16 %v4624
    %v5006 = vunpack.c.h.b16 %v4624
    %v5007 = vunpack.c.l.b16 %v4625
    %v5008 = vunpack.c.h.b16 %v4625
    %v5009 = vunpack.c.l.b16 %v4626
    %v5010 = vunpack.c.h.b16 %v4626
    %v5011 = vunpack.c.l.b16 %v4627
    %v5012 = vunpack.c.h.b16 %v4627
    %v5013 = vunpack.c.l.b16 %v4628
    %v5014 = vunpack.c.h.b16 %v4628
    %v5015 = vunpack.c.l.b16 %v4629
    %v5016 = vunpack.c.h.b16 %v4629
    %v5017 = vunpack.c.l.b16 %v4630
    %v5018 = vunpack.c.h.b16 %v4630
    %v5019 = vunpack.c.l.b16 %v4631
    %v5020 = vunpack.c.h.b16 %v4631
    %v5021 = vunpack.c.l.b16 %v4632
    %v5022 = vunpack.c.h.b16 %v4632
    %v5023 = vunpack.c.l.b16 %v4633
    %v5024 = vunpack.c.h.b16 %v4633
    %v5025 = vunpack.c.l.b16 %v4634
    %v5026 = vunpack.c.h.b16 %v4634
    %v5027 = vunpack.c.l.b16 %v4635
    %v5028 = vunpack.c.h.b16 %v4635
    %v5029 = vunpack.c.l.b16 %v4636
    %v5030 = vunpack.c.h.b16 %v4636
    %v5031 = vpack.c.b16 %v4779, %v4775
    %v5032 = vpack.c.b16 %v4780, %v4776
    %v5033 = vpack.c.b16 %v4781, %v4777
    %v5034 = vpack.c.b16 %v4782, %v4778
    %v5035 = vpack.c.b16 %v4787, %v4783
    %v5036 = vpack.c.b16 %v4788, %v4784
    %v5037 = vpack.c.b16 %v4789, %v4785
    %v5038 = vpack.c.b16 %v4790, %v4786
    %v5039 = vpack.c.b16 %v4795, %v4791
    %v5040 = vpack.c.b16 %v4796, %v4792
    %v5041 = vpack.c.b16 %v4797, %v4793
    %v5042 = vpack.c.b16 %v4798, %v4794
    %v5043 = vpack.c.b16 %v4803, %v4799
    %v5044 = vpack.c.b16 %v4804, %v4800
    %v5045 = vpack.c.b16 %v4805, %v4801
    %v5046 = vpack.c.b16 %v4806, %v4802
    %v5047 = vpack.c.b16 %v4811, %v4807
    %v5048 = vpack.c.b16 %v4812, %v4808
    %v5049 = vpack.c.b16 %v4813, %v4809
    %v5050 = vpack.c.b16 %v4814, %v4810
    %v5051 = vpack.c.b16 %v4819, %v4815
    %v5052 = vpack.c.b16 %v4820, %v4816
    %v5053 = vpack.c.b16 %v4821, %v4817
    %v5054 = vpack.c.b16 %v4822, %v4818
    %v5055 = vpack.c.b16 %v4827, %v4823
    %v5056 = vpack.c.b16 %v4828, %v4824
    %v5057 = vpack.c.b16 %v4829, %v4825
    %v5058 = vpack.c.b16 %v4830, %v4826
    %v5059 = vpack.c.b16 %v4835, %v4831
    %v5060 = vpack.c.b16 %v4836, %v4832
    %v5061 = vpack.c.b16 %v4837, %v4833
    %v5062 = vpack.c.b16 %v4838, %v4834
    %v5063 = vpack.c.b16 %v4843, %v4839
    %v5064 = vpack.c.b16 %v4844, %v4840
    %v5065 = vpack.c.b16 %v4845, %v4841
    %v5066 = vpack.c.b16 %v4846, %v4842
    %v5067 = vpack.c.b16 %v4851, %v4847
    %v5068 = vpack.c.b16 %v4852, %v4848
    %v5069 = vpack.c.b16 %v4853, %v4849
    %v5070 = vpack.c.b16 %v4854, %v4850
    %v5071 = vpack.c.b16 %v4859, %v4855
    %v5072 = vpack.c.b16 %v4860, %v4856
    %v5073 = vpack.c.b16 %v4861, %v4857
    %v5074 = vpack.c.b16 %v4862, %v4858
    %v5075 = vpack.c.b16 %v4867, %v4863
    %v5076 = vpack.c.b16 %v4868, %v4864
    %v5077 = vpack.c.b16 %v4869, %v4865
    %v5078 = vpack.c.b16 %v4870, %v4866
    %v5079 = vpack.c.b16 %v4875, %v4871
    %v5080 = vpack.c.b16 %v4876, %v4872
    %v5081 = vpack.c.b16 %v4877, %v4873
    %v5082 = vpack.c.b16 %v4878, %v4874
    %v5083 = vpack.c.b16 %v4883, %v4879
    %v5084 = vpack.c.b16 %v4884, %v4880
    %v5085 = vpack.c.b16 %v4885, %v4881
    %v5086 = vpack.c.b16 %v4886, %v4882
    %v5087 = vpack.c.b16 %v4891, %v4887
    %v5088 = vpack.c.b16 %v4892, %v4888
    %v5089 = vpack.c.b16 %v4893, %v4889
    %v5090 = vpack.c.b16 %v4894, %v4890
    %v5091 = vpack.c.b16 %v4899, %v4895
    %v5092 = vpack.c.b16 %v4900, %v4896
    %v5093 = vpack.c.b16 %v4901, %v4897
    %v5094 = vpack.c.b16 %v4902, %v4898
    %v5095 = vpack.c.b16 %v4907, %v4903
    %v5096 = vpack.c.b16 %v4908, %v4904
    %v5097 = vpack.c.b16 %v4909, %v4905
    %v5098 = vpack.c.b16 %v4910, %v4906
    %v5099 = vpack.c.b16 %v4915, %v4911
    %v5100 = vpack.c.b16 %v4916, %v4912
    %v5101 = vpack.c.b16 %v4917, %v4913
    %v5102 = vpack.c.b16 %v4918, %v4914
    %v5103 = vpack.c.b16 %v4923, %v4919
    %v5104 = vpack.c.b16 %v4924, %v4920
    %v5105 = vpack.c.b16 %v4925, %v4921
    %v5106 = vpack.c.b16 %v4926, %v4922
    %v5107 = vpack.c.b16 %v4931, %v4927
    %v5108 = vpack.c.b16 %v4932, %v4928
    %v5109 = vpack.c.b16 %v4933, %v4929
    %v5110 = vpack.c.b16 %v4934, %v4930
    %v5111 = vpack.c.b16 %v4939, %v4935
    %v5112 = vpack.c.b16 %v4940, %v4936
    %v5113 = vpack.c.b16 %v4941, %v4937
    %v5114 = vpack.c.b16 %v4942, %v4938
    %v5115 = vpack.c.b16 %v4947, %v4943
    %v5116 = vpack.c.b16 %v4948, %v4944
    %v5117 = vpack.c.b16 %v4949, %v4945
    %v5118 = vpack.c.b16 %v4950, %v4946
    %v5119 = vpack.c.b16 %v4955, %v4951
    %v5120 = vpack.c.b16 %v4956, %v4952
    %v5121 = vpack.c.b16 %v4957, %v4953
    %v5122 = vpack.c.b16 %v4958, %v4954
    %v5123 = vpack.c.b16 %v4963, %v4959
    %v5124 = vpack.c.b16 %v4964, %v4960
    %v5125 = vpack.c.b16 %v4965, %v4961
    %v5126 = vpack.c.b16 %v4966, %v4962
    %v5127 = vpack.c.b16 %v4971, %v4967
    %v5128 = vpack.c.b16 %v4972, %v4968
    %v5129 = vpack.c.b16 %v4973, %v4969
    %v5130 = vpack.c.b16 %v4974, %v4970
    %v5131 = vpack.c.b16 %v4979, %v4975
    %v5132 = vpack.c.b16 %v4980, %v4976
    %v5133 = vpack.c.b16 %v4981, %v4977
    %v5134 = vpack.c.b16 %v4982, %v4978
    %v5135 = vpack.c.b16 %v4987, %v4983
    %v5136 = vpack.c.b16 %v4988, %v4984
    %v5137 = vpack.c.b16 %v4989, %v4985
    %v5138 = vpack.c.b16 %v4990, %v4986
    %v5139 = vpack.c.b16 %v4995, %v4991
    %v5140 = vpack.c.b16 %v4996, %v4992
    %v5141 = vpack.c.b16 %v4997, %v4993
    %v5142 = vpack.c.b16 %v4998, %v4994
    %v5143 = vpack.c.b16 %v5003, %v4999
    %v5144 = vpack.c.b16 %v5004, %v5000
    %v5145 = vpack.c.b16 %v5005, %v5001
    %v5146 = vpack.c.b16 %v5006, %v5002
    %v5147 = vpack.c.b16 %v5011, %v5007
    %v5148 = vpack.c.b16 %v5012, %v5008
    %v5149 = vpack.c.b16 %v5013, %v5009
    %v5150 = vpack.c.b16 %v5014, %v5010
    %v5151 = vpack.c.b16 %v5019, %v5015
    %v5152 = vpack.c.b16 %v5020, %v5016
    %v5153 = vpack.c.b16 %v5021, %v5017
    %v5154 = vpack.c.b16 %v5022, %v5018
    %v5155 = vpack.c.b16 %v5027, %v5023
    %v5156 = vpack.c.b16 %v5028, %v5024
    %v5157 = vpack.c.b16 %v5029, %v5025
    %v5158 = vpack.c.b16 %v5030, %v5026
    %5287 = vmatpush.bf16.msra.mxu0 %v5059
    %5288 = vmatpush.bf16.msra.mxu0 %v5055
    %5289 = vmatpush.bf16.msra.mxu0 %v5051
    %5290 = vmatpush.bf16.msra.mxu0 %v5047
    %5291 = vmatpush.bf16.msra.mxu0 %v5043
    %5292 = vmatpush.bf16.msra.mxu0 %v5039
    %5293 = vmatpush.bf16.msra.mxu0 %v5035
    %5294 = vmatpush.bf16.msra.mxu0 %v5031
    %5295 = vmatmul.bf16.gmra.mxu0 %v4505
    %v5296 = vpop.f32.mrf.mxu0
    %v5297 = vadd.f32 %v4639, %v5296
    %v5298 = vpop.f32.mrf.mxu0
    %v5299 = vadd.f32 %v4639, %v5298
    %5300 = vdwg.mxu0
    %5301 = vmatpush.bf16.msra.mxu0 %v5091
    %5302 = vmatpush.bf16.msra.mxu0 %v5087
    %5303 = vmatpush.bf16.msra.mxu0 %v5083
    %5304 = vmatpush.bf16.msra.mxu0 %v5079
    %5305 = vmatpush.bf16.msra.mxu0 %v5075
    %5306 = vmatpush.bf16.msra.mxu0 %v5071
    %5307 = vmatpush.bf16.msra.mxu0 %v5067
    %5308 = vmatpush.bf16.msra.mxu0 %v5063
    %5309 = vmatmul.bf16.gmra.mxu0 %v4506
    %v5310 = vpop.f32.mrf.mxu0
    %v5311 = vadd.f32 %v5297, %v5310
    %v5312 = vpop.f32.mrf.mxu0
    %v5313 = vadd.f32 %v5299, %v5312
    %5314 = vdwg.mxu0
    %5315 = vmatpush.bf16.msra.mxu0 %v5123
    %5316 = vmatpush.bf16.msra.mxu0 %v5119
    %5317 = vmatpush.bf16.msra.mxu0 %v5115
    %5318 = vmatpush.bf16.msra.mxu0 %v5111
    %5319 = vmatpush.bf16.msra.mxu0 %v5107
    %5320 = vmatpush.bf16.msra.mxu0 %v5103
    %5321 = vmatpush.bf16.msra.mxu0 %v5099
    %5322 = vmatpush.bf16.msra.mxu0 %v5095
    %5323 = vmatmul.bf16.gmra.mxu0 %v4507
    %v5324 = vpop.f32.mrf.mxu0
    %v5325 = vadd.f32 %v5311, %v5324
    %v5326 = vpop.f32.mrf.mxu0
    %v5327 = vadd.f32 %v5313, %v5326
    %5328 = vdwg.mxu0
    %5329 = vmatpush.bf16.msra.mxu0 %v5155
    %5330 = vmatpush.bf16.msra.mxu0 %v5151
    %5331 = vmatpush.bf16.msra.mxu0 %v5147
    %5332 = vmatpush.bf16.msra.mxu0 %v5143
    %5333 = vmatpush.bf16.msra.mxu0 %v5139
    %5334 = vmatpush.bf16.msra.mxu0 %v5135
    %5335 = vmatpush.bf16.msra.mxu0 %v5131
    %5336 = vmatpush.bf16.msra.mxu0 %v5127
    %5337 = vmatmul.bf16.gmra.mxu0 %v4508
    %v5338 = vpop.f32.mrf.mxu0
    %v5339 = vadd.f32 %v5325, %v5338
    %v5340 = vpop.f32.mrf.mxu0
    %v5341 = vadd.f32 %v5327, %v5340
    %5342 = vdwg.mxu0
    %5343 = vmatpush.bf16.msra.mxu0 %v5060
    %5344 = vmatpush.bf16.msra.mxu0 %v5056
    %5345 = vmatpush.bf16.msra.mxu0 %v5052
    %5346 = vmatpush.bf16.msra.mxu0 %v5048
    %5347 = vmatpush.bf16.msra.mxu0 %v5044
    %5348 = vmatpush.bf16.msra.mxu0 %v5040
    %5349 = vmatpush.bf16.msra.mxu0 %v5036
    %5350 = vmatpush.bf16.msra.mxu0 %v5032
    %5351 = vmatmul.bf16.gmra.mxu0 %v4505
    %v5352 = vpop.f32.mrf.mxu0
    %v5353 = vadd.f32 %v4640, %v5352
    %v5354 = vpop.f32.mrf.mxu0
    %v5355 = vadd.f32 %v4640, %v5354
    %5356 = vdwg.mxu0
    %5357 = vmatpush.bf16.msra.mxu0 %v5092
    %5358 = vmatpush.bf16.msra.mxu0 %v5088
    %5359 = vmatpush.bf16.msra.mxu0 %v5084
    %5360 = vmatpush.bf16.msra.mxu0 %v5080
    %5361 = vmatpush.bf16.msra.mxu0 %v5076
    %5362 = vmatpush.bf16.msra.mxu0 %v5072
    %5363 = vmatpush.bf16.msra.mxu0 %v5068
    %5364 = vmatpush.bf16.msra.mxu0 %v5064
    %5365 = vmatmul.bf16.gmra.mxu0 %v4506
    %v5366 = vpop.f32.mrf.mxu0
    %v5367 = vadd.f32 %v5353, %v5366
    %v5368 = vpop.f32.mrf.mxu0
    %v5369 = vadd.f32 %v5355, %v5368
    %5370 = vdwg.mxu0
    %5371 = vmatpush.bf16.msra.mxu0 %v5124
    %5372 = vmatpush.bf16.msra.mxu0 %v5120
    %5373 = vmatpush.bf16.msra.mxu0 %v5116
    %5374 = vmatpush.bf16.msra.mxu0 %v5112
    %5375 = vmatpush.bf16.msra.mxu0 %v5108
    %5376 = vmatpush.bf16.msra.mxu0 %v5104
    %5377 = vmatpush.bf16.msra.mxu0 %v5100
    %5378 = vmatpush.bf16.msra.mxu0 %v5096
    %5379 = vmatmul.bf16.gmra.mxu0 %v4507
    %v5380 = vpop.f32.mrf.mxu0
    %v5381 = vadd.f32 %v5367, %v5380
    %v5382 = vpop.f32.mrf.mxu0
    %v5383 = vadd.f32 %v5369, %v5382
    %5384 = vdwg.mxu0
    %5385 = vmatpush.bf16.msra.mxu0 %v5156
    %5386 = vmatpush.bf16.msra.mxu0 %v5152
    %5387 = vmatpush.bf16.msra.mxu0 %v5148
    %5388 = vmatpush.bf16.msra.mxu0 %v5144
    %5389 = vmatpush.bf16.msra.mxu0 %v5140
    %5390 = vmatpush.bf16.msra.mxu0 %v5136
    %5391 = vmatpush.bf16.msra.mxu0 %v5132
    %5392 = vmatpush.bf16.msra.mxu0 %v5128
    %5393 = vmatmul.bf16.gmra.mxu0 %v4508
    %v5394 = vpop.f32.mrf.mxu0
    %v5395 = vadd.f32 %v5381, %v5394
    %v5396 = vpop.f32.mrf.mxu0
    %v5397 = vadd.f32 %v5383, %v5396
    %5398 = vdwg.mxu0
    %5399 = vmatpush.bf16.msra.mxu0 %v5061
    %5400 = vmatpush.bf16.msra.mxu0 %v5057
    %5401 = vmatpush.bf16.msra.mxu0 %v5053
    %5402 = vmatpush.bf16.msra.mxu0 %v5049
    %5403 = vmatpush.bf16.msra.mxu0 %v5045
    %5404 = vmatpush.bf16.msra.mxu0 %v5041
    %5405 = vmatpush.bf16.msra.mxu0 %v5037
    %5406 = vmatpush.bf16.msra.mxu0 %v5033
    %5407 = vmatmul.bf16.gmra.mxu0 %v4505
    %v5408 = vpop.f32.mrf.mxu0
    %v5409 = vadd.f32 %v4641, %v5408
    %v5410 = vpop.f32.mrf.mxu0
    %v5411 = vadd.f32 %v4641, %v5410
    %5412 = vdwg.mxu0
    %5413 = vmatpush.bf16.msra.mxu0 %v5093
    %5414 = vmatpush.bf16.msra.mxu0 %v5089
    %5415 = vmatpush.bf16.msra.mxu0 %v5085
    %5416 = vmatpush.bf16.msra.mxu0 %v5081
    %5417 = vmatpush.bf16.msra.mxu0 %v5077
    %5418 = vmatpush.bf16.msra.mxu0 %v5073
    %5419 = vmatpush.bf16.msra.mxu0 %v5069
    %5420 = vmatpush.bf16.msra.mxu0 %v5065
    %5421 = vmatmul.bf16.gmra.mxu0 %v4506
    %v5422 = vpop.f32.mrf.mxu0
    %v5423 = vadd.f32 %v5409, %v5422
    %v5424 = vpop.f32.mrf.mxu0
    %v5425 = vadd.f32 %v5411, %v5424
    %5426 = vdwg.mxu0
    %5427 = vmatpush.bf16.msra.mxu0 %v5125
    %5428 = vmatpush.bf16.msra.mxu0 %v5121
    %5429 = vmatpush.bf16.msra.mxu0 %v5117
    %5430 = vmatpush.bf16.msra.mxu0 %v5113
    %5431 = vmatpush.bf16.msra.mxu0 %v5109
    %5432 = vmatpush.bf16.msra.mxu0 %v5105
    %5433 = vmatpush.bf16.msra.mxu0 %v5101
    %5434 = vmatpush.bf16.msra.mxu0 %v5097
    %5435 = vmatmul.bf16.gmra.mxu0 %v4507
    %v5436 = vpop.f32.mrf.mxu0
    %v5437 = vadd.f32 %v5423, %v5436
    %v5438 = vpop.f32.mrf.mxu0
    %v5439 = vadd.f32 %v5425, %v5438
    %5440 = vdwg.mxu0
    %5441 = vmatpush.bf16.msra.mxu0 %v5157
    %5442 = vmatpush.bf16.msra.mxu0 %v5153
    %5443 = vmatpush.bf16.msra.mxu0 %v5149
    %5444 = vmatpush.bf16.msra.mxu0 %v5145
    %5445 = vmatpush.bf16.msra.mxu0 %v5141
    %5446 = vmatpush.bf16.msra.mxu0 %v5137
    %5447 = vmatpush.bf16.msra.mxu0 %v5133
    %5448 = vmatpush.bf16.msra.mxu0 %v5129
    %5449 = vmatmul.bf16.gmra.mxu0 %v4508
    %v5450 = vpop.f32.mrf.mxu0
    %v5451 = vadd.f32 %v5437, %v5450
    %v5452 = vpop.f32.mrf.mxu0
    %v5453 = vadd.f32 %v5439, %v5452
    %5454 = vdwg.mxu0
    %5455 = vmatpush.bf16.msra.mxu0 %v5062
    %5456 = vmatpush.bf16.msra.mxu0 %v5058
    %5457 = vmatpush.bf16.msra.mxu0 %v5054
    %5458 = vmatpush.bf16.msra.mxu0 %v5050
    %5459 = vmatpush.bf16.msra.mxu0 %v5046
    %5460 = vmatpush.bf16.msra.mxu0 %v5042
    %5461 = vmatpush.bf16.msra.mxu0 %v5038
    %5462 = vmatpush.bf16.msra.mxu0 %v5034
    %5463 = vmatmul.bf16.gmra.mxu0 %v4505
    %v5464 = vpop.f32.mrf.mxu0
    %v5465 = vadd.f32 %v4642, %v5464
    %v5466 = vpop.f32.mrf.mxu0
    %v5467 = vadd.f32 %v4642, %v5466
    %5468 = vdwg.mxu0
    %5469 = vmatpush.bf16.msra.mxu0 %v5094
    %5470 = vmatpush.bf16.msra.mxu0 %v5090
    %5471 = vmatpush.bf16.msra.mxu0 %v5086
    %5472 = vmatpush.bf16.msra.mxu0 %v5082
    %5473 = vmatpush.bf16.msra.mxu0 %v5078
    %5474 = vmatpush.bf16.msra.mxu0 %v5074
    %5475 = vmatpush.bf16.msra.mxu0 %v5070
    %5476 = vmatpush.bf16.msra.mxu0 %v5066
    %5477 = vmatmul.bf16.gmra.mxu0 %v4506
    %v5478 = vpop.f32.mrf.mxu0
    %v5479 = vadd.f32 %v5465, %v5478
    %v5480 = vpop.f32.mrf.mxu0
    %v5481 = vadd.f32 %v5467, %v5480
    %5482 = vdwg.mxu0
    %5483 = vmatpush.bf16.msra.mxu0 %v5126
    %5484 = vmatpush.bf16.msra.mxu0 %v5122
    %5485 = vmatpush.bf16.msra.mxu0 %v5118
    %5486 = vmatpush.bf16.msra.mxu0 %v5114
    %5487 = vmatpush.bf16.msra.mxu0 %v5110
    %5488 = vmatpush.bf16.msra.mxu0 %v5106
    %5489 = vmatpush.bf16.msra.mxu0 %v5102
    %5490 = vmatpush.bf16.msra.mxu0 %v5098
    %5491 = vmatmul.bf16.gmra.mxu0 %v4507
    %v5492 = vpop.f32.mrf.mxu0
    %v5493 = vadd.f32 %v5479, %v5492
    %v5494 = vpop.f32.mrf.mxu0
    %v5495 = vadd.f32 %v5481, %v5494
    %5496 = vdwg.mxu0
    %5497 = vmatpush.bf16.msra.mxu0 %v5158
    %5498 = vmatpush.bf16.msra.mxu0 %v5154
    %5499 = vmatpush.bf16.msra.mxu0 %v5150
    %5500 = vmatpush.bf16.msra.mxu0 %v5146
    %5501 = vmatpush.bf16.msra.mxu0 %v5142
    %5502 = vmatpush.bf16.msra.mxu0 %v5138
    %5503 = vmatpush.bf16.msra.mxu0 %v5134
    %5504 = vmatpush.bf16.msra.mxu0 %v5130
    %5505 = vmatmul.bf16.gmra.mxu0 %v4508
    %v5506 = vpop.f32.mrf.mxu0
    %v5507 = vadd.f32 %v5493, %v5506
    %v5508 = vpop.f32.mrf.mxu0
    %v5509 = vadd.f32 %v5495, %v5508
    %5510 = vdwg.mxu0
    %vm5511 = vcmp.gt.f32.partialorder %v5339, 0.0
    %vm5512 = vcmp.gt.f32.partialorder %v5395, 0.0
    %vm5513 = vcmp.gt.f32.partialorder %v5451, 0.0
    %vm5514 = vcmp.gt.f32.partialorder %v5507, 0.0
    %vm5515 = vcmp.gt.f32.partialorder %v5341, 0.0
    %vm5516 = vcmp.gt.f32.partialorder %v5397, 0.0
    %vm5517 = vcmp.gt.f32.partialorder %v5453, 0.0
    %vm5518 = vcmp.gt.f32.partialorder %v5509, 0.0
    %v5519 = vmul.f32 %v5339, 0.2
    %v5520 = vmul.f32 %v5395, 0.2
    %v5521 = vmul.f32 %v5451, 0.2
    %v5522 = vmul.f32 %v5507, 0.2
    %v5523 = vmul.f32 %v5341, 0.2
    %v5524 = vmul.f32 %v5397, 0.2
    %v5525 = vmul.f32 %v5453, 0.2
    %v5526 = vmul.f32 %v5509, 0.2
    %v5527 = vsel %vm5511, %v5339, %v5519
    %v5528 = vsel %vm5512, %v5395, %v5520
    %v5529 = vsel %vm5513, %v5451, %v5521
    %v5530 = vsel %vm5514, %v5507, %v5522
    %v5531 = vsel %vm5515, %v5341, %v5523
    %v5532 = vsel %vm5516, %v5397, %v5524
    %v5533 = vsel %vm5517, %v5453, %v5525
    %v5534 = vsel %vm5518, %v5509, %v5526
    %v5535 = vpack.c.bf16 %v5531, %v5527
    %v5536 = vpack.c.bf16 %v5532, %v5528
    %v5537 = vpack.c.bf16 %v5533, %v5529
    %v5538 = vpack.c.bf16 %v5534, %v5530
    %v5539 = vld [vmem:[#allocation11] sm:$0xff]
    %v5540 = vld [vmem:[#allocation11 + $0x8] sm:$0xff]
    %v5541 = vld [vmem:[#allocation11 + $0x10] sm:$0xff]
    %v5542 = vld [vmem:[#allocation11 + $0x18] sm:$0xff]
    %v5543 = vld [vmem:[#allocation11 + $0x20] sm:$0xff]
    %v5544 = vld [vmem:[#allocation11 + $0x28] sm:$0xff]
    %v5545 = vld [vmem:[#allocation11 + $0x30] sm:$0xff]
    %v5546 = vld [vmem:[#allocation11 + $0x38] sm:$0xff]
    %v5547 = vld [vmem:[#allocation11 + $0x40] sm:$0xff]
    %v5548 = vld [vmem:[#allocation11 + $0x48] sm:$0xff]
    %v5549 = vld [vmem:[#allocation11 + $0x50] sm:$0xff]
    %v5550 = vld [vmem:[#allocation11 + $0x58] sm:$0xff]
    %v5551 = vld [vmem:[#allocation11 + $0x60] sm:$0xff]
    %v5552 = vld [vmem:[#allocation11 + $0x68] sm:$0xff]
    %v5553 = vld [vmem:[#allocation11 + $0x70] sm:$0xff]
    %v5554 = vld [vmem:[#allocation11 + $0x78] sm:$0xff]
    %v5555 = vld [vmem:[#allocation11 + $0x80] sm:$0xff]
    %v5556 = vld [vmem:[#allocation11 + $0x88] sm:$0xff]
    %v5557 = vld [vmem:[#allocation11 + $0x90] sm:$0xff]
    %v5558 = vld [vmem:[#allocation11 + $0x98] sm:$0xff]
    %v5559 = vld [vmem:[#allocation11 + $0xa0] sm:$0xff]
    %v5560 = vld [vmem:[#allocation11 + $0xa8] sm:$0xff]
    %v5561 = vld [vmem:[#allocation11 + $0xb0] sm:$0xff]
    %v5562 = vld [vmem:[#allocation11 + $0xb8] sm:$0xff]
    %v5563 = vld [vmem:[#allocation11 + $0xc0] sm:$0xff]
    %v5564 = vld [vmem:[#allocation11 + $0xc8] sm:$0xff]
    %v5565 = vld [vmem:[#allocation11 + $0xd0] sm:$0xff]
    %v5566 = vld [vmem:[#allocation11 + $0xd8] sm:$0xff]
    %v5567 = vld [vmem:[#allocation11 + $0xe0] sm:$0xff]
    %v5568 = vld [vmem:[#allocation11 + $0xe8] sm:$0xff]
    %v5569 = vld [vmem:[#allocation11 + $0xf0] sm:$0xff]
    %v5570 = vld [vmem:[#allocation11 + $0xf8] sm:$0xff]
    %v5571 = vld [vmem:[#allocation11 + $0x100] sm:$0xff]
    %v5572 = vld [vmem:[#allocation11 + $0x108] sm:$0xff]
    %v5573 = vld [vmem:[#allocation11 + $0x110] sm:$0xff]
    %v5574 = vld [vmem:[#allocation11 + $0x118] sm:$0xff]
    %v5575 = vld [vmem:[#allocation11 + $0x120] sm:$0xff]
    %v5576 = vld [vmem:[#allocation11 + $0x128] sm:$0xff]
    %v5577 = vld [vmem:[#allocation11 + $0x130] sm:$0xff]
    %v5578 = vld [vmem:[#allocation11 + $0x138] sm:$0xff]
    %v5579 = vld [vmem:[#allocation11 + $0x140] sm:$0xff]
    %v5580 = vld [vmem:[#allocation11 + $0x148] sm:$0xff]
    %v5581 = vld [vmem:[#allocation11 + $0x150] sm:$0xff]
    %v5582 = vld [vmem:[#allocation11 + $0x158] sm:$0xff]
    %v5583 = vld [vmem:[#allocation11 + $0x160] sm:$0xff]
    %v5584 = vld [vmem:[#allocation11 + $0x168] sm:$0xff]
    %v5585 = vld [vmem:[#allocation11 + $0x170] sm:$0xff]
    %v5586 = vld [vmem:[#allocation11 + $0x178] sm:$0xff]
    %v5587 = vld [vmem:[#allocation11 + $0x180] sm:$0xff]
    %v5588 = vld [vmem:[#allocation11 + $0x188] sm:$0xff]
    %v5589 = vld [vmem:[#allocation11 + $0x190] sm:$0xff]
    %v5590 = vld [vmem:[#allocation11 + $0x198] sm:$0xff]
    %v5591 = vld [vmem:[#allocation11 + $0x1a0] sm:$0xff]
    %v5592 = vld [vmem:[#allocation11 + $0x1a8] sm:$0xff]
    %v5593 = vld [vmem:[#allocation11 + $0x1b0] sm:$0xff]
    %v5594 = vld [vmem:[#allocation11 + $0x1b8] sm:$0xff]
    %v5595 = vld [vmem:[#allocation11 + $0x1c0] sm:$0xff]
    %v5596 = vld [vmem:[#allocation11 + $0x1c8] sm:$0xff]
    %v5597 = vld [vmem:[#allocation11 + $0x1d0] sm:$0xff]
    %v5598 = vld [vmem:[#allocation11 + $0x1d8] sm:$0xff]
    %v5599 = vld [vmem:[#allocation11 + $0x1e0] sm:$0xff]
    %v5600 = vld [vmem:[#allocation11 + $0x1e8] sm:$0xff]
    %v5601 = vld [vmem:[#allocation11 + $0x1f0] sm:$0xff]
    %v5602 = vld [vmem:[#allocation11 + $0x1f8] sm:$0xff]
    %v5603 = vld [vmem:[#allocation11 + $0x200] sm:$0xff]
    %v5604 = vld [vmem:[#allocation11 + $0x208] sm:$0xff]
    %v5605 = vld [vmem:[#allocation11 + $0x210] sm:$0xff]
    %v5606 = vld [vmem:[#allocation11 + $0x218] sm:$0xff]
    %v5607 = vld [vmem:[#allocation11 + $0x220] sm:$0xff]
    %v5608 = vld [vmem:[#allocation11 + $0x228] sm:$0xff]
    %v5609 = vld [vmem:[#allocation11 + $0x230] sm:$0xff]
    %v5610 = vld [vmem:[#allocation11 + $0x238] sm:$0xff]
    %v5611 = vld [vmem:[#allocation11 + $0x240] sm:$0xff]
    %v5612 = vld [vmem:[#allocation11 + $0x248] sm:$0xff]
    %v5613 = vld [vmem:[#allocation11 + $0x250] sm:$0xff]
    %v5614 = vld [vmem:[#allocation11 + $0x258] sm:$0xff]
    %v5615 = vld [vmem:[#allocation11 + $0x260] sm:$0xff]
    %v5616 = vld [vmem:[#allocation11 + $0x268] sm:$0xff]
    %v5617 = vld [vmem:[#allocation11 + $0x270] sm:$0xff]
    %v5618 = vld [vmem:[#allocation11 + $0x278] sm:$0xff]
    %v5619 = vld [vmem:[#allocation11 + $0x280] sm:$0xff]
    %v5620 = vld [vmem:[#allocation11 + $0x288] sm:$0xff]
    %v5621 = vld [vmem:[#allocation11 + $0x290] sm:$0xff]
    %v5622 = vld [vmem:[#allocation11 + $0x298] sm:$0xff]
    %v5623 = vld [vmem:[#allocation11 + $0x2a0] sm:$0xff]
    %v5624 = vld [vmem:[#allocation11 + $0x2a8] sm:$0xff]
    %v5625 = vld [vmem:[#allocation11 + $0x2b0] sm:$0xff]
    %v5626 = vld [vmem:[#allocation11 + $0x2b8] sm:$0xff]
    %v5627 = vld [vmem:[#allocation11 + $0x2c0] sm:$0xff]
    %v5628 = vld [vmem:[#allocation11 + $0x2c8] sm:$0xff]
    %v5629 = vld [vmem:[#allocation11 + $0x2d0] sm:$0xff]
    %v5630 = vld [vmem:[#allocation11 + $0x2d8] sm:$0xff]
    %v5631 = vld [vmem:[#allocation11 + $0x2e0] sm:$0xff]
    %v5632 = vld [vmem:[#allocation11 + $0x2e8] sm:$0xff]
    %v5633 = vld [vmem:[#allocation11 + $0x2f0] sm:$0xff]
    %v5634 = vld [vmem:[#allocation11 + $0x2f8] sm:$0xff]
    %v5635 = vld [vmem:[#allocation11 + $0x300] sm:$0xff]
    %v5636 = vld [vmem:[#allocation11 + $0x308] sm:$0xff]
    %v5637 = vld [vmem:[#allocation11 + $0x310] sm:$0xff]
    %v5638 = vld [vmem:[#allocation11 + $0x318] sm:$0xff]
    %v5639 = vld [vmem:[#allocation11 + $0x320] sm:$0xff]
    %v5640 = vld [vmem:[#allocation11 + $0x328] sm:$0xff]
    %v5641 = vld [vmem:[#allocation11 + $0x330] sm:$0xff]
    %v5642 = vld [vmem:[#allocation11 + $0x338] sm:$0xff]
    %v5643 = vld [vmem:[#allocation11 + $0x340] sm:$0xff]
    %v5644 = vld [vmem:[#allocation11 + $0x348] sm:$0xff]
    %v5645 = vld [vmem:[#allocation11 + $0x350] sm:$0xff]
    %v5646 = vld [vmem:[#allocation11 + $0x358] sm:$0xff]
    %v5647 = vld [vmem:[#allocation11 + $0x360] sm:$0xff]
    %v5648 = vld [vmem:[#allocation11 + $0x368] sm:$0xff]
    %v5649 = vld [vmem:[#allocation11 + $0x370] sm:$0xff]
    %v5650 = vld [vmem:[#allocation11 + $0x378] sm:$0xff]
    %v5651 = vld [vmem:[#allocation11 + $0x380] sm:$0xff]
    %v5652 = vld [vmem:[#allocation11 + $0x388] sm:$0xff]
    %v5653 = vld [vmem:[#allocation11 + $0x390] sm:$0xff]
    %v5654 = vld [vmem:[#allocation11 + $0x398] sm:$0xff]
    %v5655 = vld [vmem:[#allocation11 + $0x3a0] sm:$0xff]
    %v5656 = vld [vmem:[#allocation11 + $0x3a8] sm:$0xff]
    %v5657 = vld [vmem:[#allocation11 + $0x3b0] sm:$0xff]
    %v5658 = vld [vmem:[#allocation11 + $0x3b8] sm:$0xff]
    %v5659 = vld [vmem:[#allocation11 + $0x3c0] sm:$0xff]
    %v5660 = vld [vmem:[#allocation11 + $0x3c8] sm:$0xff]
    %v5661 = vld [vmem:[#allocation11 + $0x3d0] sm:$0xff]
    %v5662 = vld [vmem:[#allocation11 + $0x3d8] sm:$0xff]
    %v5663 = vld [vmem:[#allocation11 + $0x3e0] sm:$0xff]
    %v5664 = vld [vmem:[#allocation11 + $0x3e8] sm:$0xff]
    %v5665 = vld [vmem:[#allocation11 + $0x3f0] sm:$0xff]
    %v5666 = vld [vmem:[#allocation11 + $0x3f8] sm:$0xff]
    %v5667 = vld [vmem:[#allocation13] sm:$0xf]
    %v5669 = vperm.slane %v5667, 0
    %v5670 = vperm.slane %v5667, 1
    %v5671 = vperm.slane %v5667, 2
    %v5672 = vperm.slane %v5667, 3
    %v5805 = vunpack.c.l.b16 %v5539
    %v5806 = vunpack.c.h.b16 %v5539
    %v5807 = vunpack.c.l.b16 %v5540
    %v5808 = vunpack.c.h.b16 %v5540
    %v5809 = vunpack.c.l.b16 %v5541
    %v5810 = vunpack.c.h.b16 %v5541
    %v5811 = vunpack.c.l.b16 %v5542
    %v5812 = vunpack.c.h.b16 %v5542
    %v5813 = vunpack.c.l.b16 %v5543
    %v5814 = vunpack.c.h.b16 %v5543
    %v5815 = vunpack.c.l.b16 %v5544
    %v5816 = vunpack.c.h.b16 %v5544
    %v5817 = vunpack.c.l.b16 %v5545
    %v5818 = vunpack.c.h.b16 %v5545
    %v5819 = vunpack.c.l.b16 %v5546
    %v5820 = vunpack.c.h.b16 %v5546
    %v5821 = vunpack.c.l.b16 %v5547
    %v5822 = vunpack.c.h.b16 %v5547
    %v5823 = vunpack.c.l.b16 %v5548
    %v5824 = vunpack.c.h.b16 %v5548
    %v5825 = vunpack.c.l.b16 %v5549
    %v5826 = vunpack.c.h.b16 %v5549
    %v5827 = vunpack.c.l.b16 %v5550
    %v5828 = vunpack.c.h.b16 %v5550
    %v5829 = vunpack.c.l.b16 %v5551
    %v5830 = vunpack.c.h.b16 %v5551
    %v5831 = vunpack.c.l.b16 %v5552
    %v5832 = vunpack.c.h.b16 %v5552
    %v5833 = vunpack.c.l.b16 %v5553
    %v5834 = vunpack.c.h.b16 %v5553
    %v5835 = vunpack.c.l.b16 %v5554
    %v5836 = vunpack.c.h.b16 %v5554
    %v5837 = vunpack.c.l.b16 %v5555
    %v5838 = vunpack.c.h.b16 %v5555
    %v5839 = vunpack.c.l.b16 %v5556
    %v5840 = vunpack.c.h.b16 %v5556
    %v5841 = vunpack.c.l.b16 %v5557
    %v5842 = vunpack.c.h.b16 %v5557
    %v5843 = vunpack.c.l.b16 %v5558
    %v5844 = vunpack.c.h.b16 %v5558
    %v5845 = vunpack.c.l.b16 %v5559
    %v5846 = vunpack.c.h.b16 %v5559
    %v5847 = vunpack.c.l.b16 %v5560
    %v5848 = vunpack.c.h.b16 %v5560
    %v5849 = vunpack.c.l.b16 %v5561
    %v5850 = vunpack.c.h.b16 %v5561
    %v5851 = vunpack.c.l.b16 %v5562
    %v5852 = vunpack.c.h.b16 %v5562
    %v5853 = vunpack.c.l.b16 %v5563
    %v5854 = vunpack.c.h.b16 %v5563
    %v5855 = vunpack.c.l.b16 %v5564
    %v5856 = vunpack.c.h.b16 %v5564
    %v5857 = vunpack.c.l.b16 %v5565
    %v5858 = vunpack.c.h.b16 %v5565
    %v5859 = vunpack.c.l.b16 %v5566
    %v5860 = vunpack.c.h.b16 %v5566
    %v5861 = vunpack.c.l.b16 %v5567
    %v5862 = vunpack.c.h.b16 %v5567
    %v5863 = vunpack.c.l.b16 %v5568
    %v5864 = vunpack.c.h.b16 %v5568
    %v5865 = vunpack.c.l.b16 %v5569
    %v5866 = vunpack.c.h.b16 %v5569
    %v5867 = vunpack.c.l.b16 %v5570
    %v5868 = vunpack.c.h.b16 %v5570
    %v5869 = vunpack.c.l.b16 %v5571
    %v5870 = vunpack.c.h.b16 %v5571
    %v5871 = vunpack.c.l.b16 %v5572
    %v5872 = vunpack.c.h.b16 %v5572
    %v5873 = vunpack.c.l.b16 %v5573
    %v5874 = vunpack.c.h.b16 %v5573
    %v5875 = vunpack.c.l.b16 %v5574
    %v5876 = vunpack.c.h.b16 %v5574
    %v5877 = vunpack.c.l.b16 %v5575
    %v5878 = vunpack.c.h.b16 %v5575
    %v5879 = vunpack.c.l.b16 %v5576
    %v5880 = vunpack.c.h.b16 %v5576
    %v5881 = vunpack.c.l.b16 %v5577
    %v5882 = vunpack.c.h.b16 %v5577
    %v5883 = vunpack.c.l.b16 %v5578
    %v5884 = vunpack.c.h.b16 %v5578
    %v5885 = vunpack.c.l.b16 %v5579
    %v5886 = vunpack.c.h.b16 %v5579
    %v5887 = vunpack.c.l.b16 %v5580
    %v5888 = vunpack.c.h.b16 %v5580
    %v5889 = vunpack.c.l.b16 %v5581
    %v5890 = vunpack.c.h.b16 %v5581
    %v5891 = vunpack.c.l.b16 %v5582
    %v5892 = vunpack.c.h.b16 %v5582
    %v5893 = vunpack.c.l.b16 %v5583
    %v5894 = vunpack.c.h.b16 %v5583
    %v5895 = vunpack.c.l.b16 %v5584
    %v5896 = vunpack.c.h.b16 %v5584
    %v5897 = vunpack.c.l.b16 %v5585
    %v5898 = vunpack.c.h.b16 %v5585
    %v5899 = vunpack.c.l.b16 %v5586
    %v5900 = vunpack.c.h.b16 %v5586
    %v5901 = vunpack.c.l.b16 %v5587
    %v5902 = vunpack.c.h.b16 %v5587
    %v5903 = vunpack.c.l.b16 %v5588
    %v5904 = vunpack.c.h.b16 %v5588
    %v5905 = vunpack.c.l.b16 %v5589
    %v5906 = vunpack.c.h.b16 %v5589
    %v5907 = vunpack.c.l.b16 %v5590
    %v5908 = vunpack.c.h.b16 %v5590
    %v5909 = vunpack.c.l.b16 %v5591
    %v5910 = vunpack.c.h.b16 %v5591
    %v5911 = vunpack.c.l.b16 %v5592
    %v5912 = vunpack.c.h.b16 %v5592
    %v5913 = vunpack.c.l.b16 %v5593
    %v5914 = vunpack.c.h.b16 %v5593
    %v5915 = vunpack.c.l.b16 %v5594
    %v5916 = vunpack.c.h.b16 %v5594
    %v5917 = vunpack.c.l.b16 %v5595
    %v5918 = vunpack.c.h.b16 %v5595
    %v5919 = vunpack.c.l.b16 %v5596
    %v5920 = vunpack.c.h.b16 %v5596
    %v5921 = vunpack.c.l.b16 %v5597
    %v5922 = vunpack.c.h.b16 %v5597
    %v5923 = vunpack.c.l.b16 %v5598
    %v5924 = vunpack.c.h.b16 %v5598
    %v5925 = vunpack.c.l.b16 %v5599
    %v5926 = vunpack.c.h.b16 %v5599
    %v5927 = vunpack.c.l.b16 %v5600
    %v5928 = vunpack.c.h.b16 %v5600
    %v5929 = vunpack.c.l.b16 %v5601
    %v5930 = vunpack.c.h.b16 %v5601
    %v5931 = vunpack.c.l.b16 %v5602
    %v5932 = vunpack.c.h.b16 %v5602
    %v5933 = vunpack.c.l.b16 %v5603
    %v5934 = vunpack.c.h.b16 %v5603
    %v5935 = vunpack.c.l.b16 %v5604
    %v5936 = vunpack.c.h.b16 %v5604
    %v5937 = vunpack.c.l.b16 %v5605
    %v5938 = vunpack.c.h.b16 %v5605
    %v5939 = vunpack.c.l.b16 %v5606
    %v5940 = vunpack.c.h.b16 %v5606
    %v5941 = vunpack.c.l.b16 %v5607
    %v5942 = vunpack.c.h.b16 %v5607
    %v5943 = vunpack.c.l.b16 %v5608
    %v5944 = vunpack.c.h.b16 %v5608
    %v5945 = vunpack.c.l.b16 %v5609
    %v5946 = vunpack.c.h.b16 %v5609
    %v5947 = vunpack.c.l.b16 %v5610
    %v5948 = vunpack.c.h.b16 %v5610
    %v5949 = vunpack.c.l.b16 %v5611
    %v5950 = vunpack.c.h.b16 %v5611
    %v5951 = vunpack.c.l.b16 %v5612
    %v5952 = vunpack.c.h.b16 %v5612
    %v5953 = vunpack.c.l.b16 %v5613
    %v5954 = vunpack.c.h.b16 %v5613
    %v5955 = vunpack.c.l.b16 %v5614
    %v5956 = vunpack.c.h.b16 %v5614
    %v5957 = vunpack.c.l.b16 %v5615
    %v5958 = vunpack.c.h.b16 %v5615
    %v5959 = vunpack.c.l.b16 %v5616
    %v5960 = vunpack.c.h.b16 %v5616
    %v5961 = vunpack.c.l.b16 %v5617
    %v5962 = vunpack.c.h.b16 %v5617
    %v5963 = vunpack.c.l.b16 %v5618
    %v5964 = vunpack.c.h.b16 %v5618
    %v5965 = vunpack.c.l.b16 %v5619
    %v5966 = vunpack.c.h.b16 %v5619
    %v5967 = vunpack.c.l.b16 %v5620
    %v5968 = vunpack.c.h.b16 %v5620
    %v5969 = vunpack.c.l.b16 %v5621
    %v5970 = vunpack.c.h.b16 %v5621
    %v5971 = vunpack.c.l.b16 %v5622
    %v5972 = vunpack.c.h.b16 %v5622
    %v5973 = vunpack.c.l.b16 %v5623
    %v5974 = vunpack.c.h.b16 %v5623
    %v5975 = vunpack.c.l.b16 %v5624
    %v5976 = vunpack.c.h.b16 %v5624
    %v5977 = vunpack.c.l.b16 %v5625
    %v5978 = vunpack.c.h.b16 %v5625
    %v5979 = vunpack.c.l.b16 %v5626
    %v5980 = vunpack.c.h.b16 %v5626
    %v5981 = vunpack.c.l.b16 %v5627
    %v5982 = vunpack.c.h.b16 %v5627
    %v5983 = vunpack.c.l.b16 %v5628
    %v5984 = vunpack.c.h.b16 %v5628
    %v5985 = vunpack.c.l.b16 %v5629
    %v5986 = vunpack.c.h.b16 %v5629
    %v5987 = vunpack.c.l.b16 %v5630
    %v5988 = vunpack.c.h.b16 %v5630
    %v5989 = vunpack.c.l.b16 %v5631
    %v5990 = vunpack.c.h.b16 %v5631
    %v5991 = vunpack.c.l.b16 %v5632
    %v5992 = vunpack.c.h.b16 %v5632
    %v5993 = vunpack.c.l.b16 %v5633
    %v5994 = vunpack.c.h.b16 %v5633
    %v5995 = vunpack.c.l.b16 %v5634
    %v5996 = vunpack.c.h.b16 %v5634
    %v5997 = vunpack.c.l.b16 %v5635
    %v5998 = vunpack.c.h.b16 %v5635
    %v5999 = vunpack.c.l.b16 %v5636
    %v6000 = vunpack.c.h.b16 %v5636
    %v6001 = vunpack.c.l.b16 %v5637
    %v6002 = vunpack.c.h.b16 %v5637
    %v6003 = vunpack.c.l.b16 %v5638
    %v6004 = vunpack.c.h.b16 %v5638
    %v6005 = vunpack.c.l.b16 %v5639
    %v6006 = vunpack.c.h.b16 %v5639
    %v6007 = vunpack.c.l.b16 %v5640
    %v6008 = vunpack.c.h.b16 %v5640
    %v6009 = vunpack.c.l.b16 %v5641
    %v6010 = vunpack.c.h.b16 %v5641
    %v6011 = vunpack.c.l.b16 %v5642
    %v6012 = vunpack.c.h.b16 %v5642
    %v6013 = vunpack.c.l.b16 %v5643
    %v6014 = vunpack.c.h.b16 %v5643
    %v6015 = vunpack.c.l.b16 %v5644
    %v6016 = vunpack.c.h.b16 %v5644
    %v6017 = vunpack.c.l.b16 %v5645
    %v6018 = vunpack.c.h.b16 %v5645
    %v6019 = vunpack.c.l.b16 %v5646
    %v6020 = vunpack.c.h.b16 %v5646
    %v6021 = vunpack.c.l.b16 %v5647
    %v6022 = vunpack.c.h.b16 %v5647
    %v6023 = vunpack.c.l.b16 %v5648
    %v6024 = vunpack.c.h.b16 %v5648
    %v6025 = vunpack.c.l.b16 %v5649
    %v6026 = vunpack.c.h.b16 %v5649
    %v6027 = vunpack.c.l.b16 %v5650
    %v6028 = vunpack.c.h.b16 %v5650
    %v6029 = vunpack.c.l.b16 %v5651
    %v6030 = vunpack.c.h.b16 %v5651
    %v6031 = vunpack.c.l.b16 %v5652
    %v6032 = vunpack.c.h.b16 %v5652
    %v6033 = vunpack.c.l.b16 %v5653
    %v6034 = vunpack.c.h.b16 %v5653
    %v6035 = vunpack.c.l.b16 %v5654
    %v6036 = vunpack.c.h.b16 %v5654
    %v6037 = vunpack.c.l.b16 %v5655
    %v6038 = vunpack.c.h.b16 %v5655
    %v6039 = vunpack.c.l.b16 %v5656
    %v6040 = vunpack.c.h.b16 %v5656
    %v6041 = vunpack.c.l.b16 %v5657
    %v6042 = vunpack.c.h.b16 %v5657
    %v6043 = vunpack.c.l.b16 %v5658
    %v6044 = vunpack.c.h.b16 %v5658
    %v6045 = vunpack.c.l.b16 %v5659
    %v6046 = vunpack.c.h.b16 %v5659
    %v6047 = vunpack.c.l.b16 %v5660
    %v6048 = vunpack.c.h.b16 %v5660
    %v6049 = vunpack.c.l.b16 %v5661
    %v6050 = vunpack.c.h.b16 %v5661
    %v6051 = vunpack.c.l.b16 %v5662
    %v6052 = vunpack.c.h.b16 %v5662
    %v6053 = vunpack.c.l.b16 %v5663
    %v6054 = vunpack.c.h.b16 %v5663
    %v6055 = vunpack.c.l.b16 %v5664
    %v6056 = vunpack.c.h.b16 %v5664
    %v6057 = vunpack.c.l.b16 %v5665
    %v6058 = vunpack.c.h.b16 %v5665
    %v6059 = vunpack.c.l.b16 %v5666
    %v6060 = vunpack.c.h.b16 %v5666
    %v6061 = vpack.c.b16 %v5809, %v5805
    %v6062 = vpack.c.b16 %v5810, %v5806
    %v6063 = vpack.c.b16 %v5811, %v5807
    %v6064 = vpack.c.b16 %v5812, %v5808
    %v6065 = vpack.c.b16 %v5817, %v5813
    %v6066 = vpack.c.b16 %v5818, %v5814
    %v6067 = vpack.c.b16 %v5819, %v5815
    %v6068 = vpack.c.b16 %v5820, %v5816
    %v6069 = vpack.c.b16 %v5825, %v5821
    %v6070 = vpack.c.b16 %v5826, %v5822
    %v6071 = vpack.c.b16 %v5827, %v5823
    %v6072 = vpack.c.b16 %v5828, %v5824
    %v6073 = vpack.c.b16 %v5833, %v5829
    %v6074 = vpack.c.b16 %v5834, %v5830
    %v6075 = vpack.c.b16 %v5835, %v5831
    %v6076 = vpack.c.b16 %v5836, %v5832
    %v6077 = vpack.c.b16 %v5841, %v5837
    %v6078 = vpack.c.b16 %v5842, %v5838
    %v6079 = vpack.c.b16 %v5843, %v5839
    %v6080 = vpack.c.b16 %v5844, %v5840
    %v6081 = vpack.c.b16 %v5849, %v5845
    %v6082 = vpack.c.b16 %v5850, %v5846
    %v6083 = vpack.c.b16 %v5851, %v5847
    %v6084 = vpack.c.b16 %v5852, %v5848
    %v6085 = vpack.c.b16 %v5857, %v5853
    %v6086 = vpack.c.b16 %v5858, %v5854
    %v6087 = vpack.c.b16 %v5859, %v5855
    %v6088 = vpack.c.b16 %v5860, %v5856
    %v6089 = vpack.c.b16 %v5865, %v5861
    %v6090 = vpack.c.b16 %v5866, %v5862
    %v6091 = vpack.c.b16 %v5867, %v5863
    %v6092 = vpack.c.b16 %v5868, %v5864
    %v6093 = vpack.c.b16 %v5873, %v5869
    %v6094 = vpack.c.b16 %v5874, %v5870
    %v6095 = vpack.c.b16 %v5875, %v5871
    %v6096 = vpack.c.b16 %v5876, %v5872
    %v6097 = vpack.c.b16 %v5881, %v5877
    %v6098 = vpack.c.b16 %v5882, %v5878
    %v6099 = vpack.c.b16 %v5883, %v5879
    %v6100 = vpack.c.b16 %v5884, %v5880
    %v6101 = vpack.c.b16 %v5889, %v5885
    %v6102 = vpack.c.b16 %v5890, %v5886
    %v6103 = vpack.c.b16 %v5891, %v5887
    %v6104 = vpack.c.b16 %v5892, %v5888
    %v6105 = vpack.c.b16 %v5897, %v5893
    %v6106 = vpack.c.b16 %v5898, %v5894
    %v6107 = vpack.c.b16 %v5899, %v5895
    %v6108 = vpack.c.b16 %v5900, %v5896
    %v6109 = vpack.c.b16 %v5905, %v5901
    %v6110 = vpack.c.b16 %v5906, %v5902
    %v6111 = vpack.c.b16 %v5907, %v5903
    %v6112 = vpack.c.b16 %v5908, %v5904
    %v6113 = vpack.c.b16 %v5913, %v5909
    %v6114 = vpack.c.b16 %v5914, %v5910
    %v6115 = vpack.c.b16 %v5915, %v5911
    %v6116 = vpack.c.b16 %v5916, %v5912
    %v6117 = vpack.c.b16 %v5921, %v5917
    %v6118 = vpack.c.b16 %v5922, %v5918
    %v6119 = vpack.c.b16 %v5923, %v5919
    %v6120 = vpack.c.b16 %v5924, %v5920
    %v6121 = vpack.c.b16 %v5929, %v5925
    %v6122 = vpack.c.b16 %v5930, %v5926
    %v6123 = vpack.c.b16 %v5931, %v5927
    %v6124 = vpack.c.b16 %v5932, %v5928
    %v6125 = vpack.c.b16 %v5937, %v5933
    %v6126 = vpack.c.b16 %v5938, %v5934
    %v6127 = vpack.c.b16 %v5939, %v5935
    %v6128 = vpack.c.b16 %v5940, %v5936
    %v6129 = vpack.c.b16 %v5945, %v5941
    %v6130 = vpack.c.b16 %v5946, %v5942
    %v6131 = vpack.c.b16 %v5947, %v5943
    %v6132 = vpack.c.b16 %v5948, %v5944
    %v6133 = vpack.c.b16 %v5953, %v5949
    %v6134 = vpack.c.b16 %v5954, %v5950
    %v6135 = vpack.c.b16 %v5955, %v5951
    %v6136 = vpack.c.b16 %v5956, %v5952
    %v6137 = vpack.c.b16 %v5961, %v5957
    %v6138 = vpack.c.b16 %v5962, %v5958
    %v6139 = vpack.c.b16 %v5963, %v5959
    %v6140 = vpack.c.b16 %v5964, %v5960
    %v6141 = vpack.c.b16 %v5969, %v5965
    %v6142 = vpack.c.b16 %v5970, %v5966
    %v6143 = vpack.c.b16 %v5971, %v5967
    %v6144 = vpack.c.b16 %v5972, %v5968
    %v6145 = vpack.c.b16 %v5977, %v5973
    %v6146 = vpack.c.b16 %v5978, %v5974
    %v6147 = vpack.c.b16 %v5979, %v5975
    %v6148 = vpack.c.b16 %v5980, %v5976
    %v6149 = vpack.c.b16 %v5985, %v5981
    %v6150 = vpack.c.b16 %v5986, %v5982
    %v6151 = vpack.c.b16 %v5987, %v5983
    %v6152 = vpack.c.b16 %v5988, %v5984
    %v6153 = vpack.c.b16 %v5993, %v5989
    %v6154 = vpack.c.b16 %v5994, %v5990
    %v6155 = vpack.c.b16 %v5995, %v5991
    %v6156 = vpack.c.b16 %v5996, %v5992
    %v6157 = vpack.c.b16 %v6001, %v5997
    %v6158 = vpack.c.b16 %v6002, %v5998
    %v6159 = vpack.c.b16 %v6003, %v5999
    %v6160 = vpack.c.b16 %v6004, %v6000
    %v6161 = vpack.c.b16 %v6009, %v6005
    %v6162 = vpack.c.b16 %v6010, %v6006
    %v6163 = vpack.c.b16 %v6011, %v6007
    %v6164 = vpack.c.b16 %v6012, %v6008
    %v6165 = vpack.c.b16 %v6017, %v6013
    %v6166 = vpack.c.b16 %v6018, %v6014
    %v6167 = vpack.c.b16 %v6019, %v6015
    %v6168 = vpack.c.b16 %v6020, %v6016
    %v6169 = vpack.c.b16 %v6025, %v6021
    %v6170 = vpack.c.b16 %v6026, %v6022
    %v6171 = vpack.c.b16 %v6027, %v6023
    %v6172 = vpack.c.b16 %v6028, %v6024
    %v6173 = vpack.c.b16 %v6033, %v6029
    %v6174 = vpack.c.b16 %v6034, %v6030
    %v6175 = vpack.c.b16 %v6035, %v6031
    %v6176 = vpack.c.b16 %v6036, %v6032
    %v6177 = vpack.c.b16 %v6041, %v6037
    %v6178 = vpack.c.b16 %v6042, %v6038
    %v6179 = vpack.c.b16 %v6043, %v6039
    %v6180 = vpack.c.b16 %v6044, %v6040
    %v6181 = vpack.c.b16 %v6049, %v6045
    %v6182 = vpack.c.b16 %v6050, %v6046
    %v6183 = vpack.c.b16 %v6051, %v6047
    %v6184 = vpack.c.b16 %v6052, %v6048
    %v6185 = vpack.c.b16 %v6057, %v6053
    %v6186 = vpack.c.b16 %v6058, %v6054
    %v6187 = vpack.c.b16 %v6059, %v6055
    %v6188 = vpack.c.b16 %v6060, %v6056
    %6317 = vmatpush.bf16.msra.mxu0 %v6089
    %6318 = vmatpush.bf16.msra.mxu0 %v6085
    %6319 = vmatpush.bf16.msra.mxu0 %v6081
    %6320 = vmatpush.bf16.msra.mxu0 %v6077
    %6321 = vmatpush.bf16.msra.mxu0 %v6073
    %6322 = vmatpush.bf16.msra.mxu0 %v6069
    %6323 = vmatpush.bf16.msra.mxu0 %v6065
    %6324 = vmatpush.bf16.msra.mxu0 %v6061
    %6325 = vmatmul.bf16.gmra.mxu0 %v5535
    %v6326 = vpop.f32.mrf.mxu0
    %v6327 = vadd.f32 %v5669, %v6326
    %v6328 = vpop.f32.mrf.mxu0
    %v6329 = vadd.f32 %v5669, %v6328
    %6330 = vdwg.mxu0
    %6331 = vmatpush.bf16.msra.mxu0 %v6121
    %6332 = vmatpush.bf16.msra.mxu0 %v6117
    %6333 = vmatpush.bf16.msra.mxu0 %v6113
    %6334 = vmatpush.bf16.msra.mxu0 %v6109
    %6335 = vmatpush.bf16.msra.mxu0 %v6105
    %6336 = vmatpush.bf16.msra.mxu0 %v6101
    %6337 = vmatpush.bf16.msra.mxu0 %v6097
    %6338 = vmatpush.bf16.msra.mxu0 %v6093
    %6339 = vmatmul.bf16.gmra.mxu0 %v5536
    %v6340 = vpop.f32.mrf.mxu0
    %v6341 = vadd.f32 %v6327, %v6340
    %v6342 = vpop.f32.mrf.mxu0
    %v6343 = vadd.f32 %v6329, %v6342
    %6344 = vdwg.mxu0
    %6345 = vmatpush.bf16.msra.mxu0 %v6153
    %6346 = vmatpush.bf16.msra.mxu0 %v6149
    %6347 = vmatpush.bf16.msra.mxu0 %v6145
    %6348 = vmatpush.bf16.msra.mxu0 %v6141
    %6349 = vmatpush.bf16.msra.mxu0 %v6137
    %6350 = vmatpush.bf16.msra.mxu0 %v6133
    %6351 = vmatpush.bf16.msra.mxu0 %v6129
    %6352 = vmatpush.bf16.msra.mxu0 %v6125
    %6353 = vmatmul.bf16.gmra.mxu0 %v5537
    %v6354 = vpop.f32.mrf.mxu0
    %v6355 = vadd.f32 %v6341, %v6354
    %v6356 = vpop.f32.mrf.mxu0
    %v6357 = vadd.f32 %v6343, %v6356
    %6358 = vdwg.mxu0
    %6359 = vmatpush.bf16.msra.mxu0 %v6185
    %6360 = vmatpush.bf16.msra.mxu0 %v6181
    %6361 = vmatpush.bf16.msra.mxu0 %v6177
    %6362 = vmatpush.bf16.msra.mxu0 %v6173
    %6363 = vmatpush.bf16.msra.mxu0 %v6169
    %6364 = vmatpush.bf16.msra.mxu0 %v6165
    %6365 = vmatpush.bf16.msra.mxu0 %v6161
    %6366 = vmatpush.bf16.msra.mxu0 %v6157
    %6367 = vmatmul.bf16.gmra.mxu0 %v5538
    %v6368 = vpop.f32.mrf.mxu0
    %v6369 = vadd.f32 %v6355, %v6368
    %v6370 = vpop.f32.mrf.mxu0
    %v6371 = vadd.f32 %v6357, %v6370
    %6372 = vdwg.mxu0
    %6373 = vmatpush.bf16.msra.mxu0 %v6090
    %6374 = vmatpush.bf16.msra.mxu0 %v6086
    %6375 = vmatpush.bf16.msra.mxu0 %v6082
    %6376 = vmatpush.bf16.msra.mxu0 %v6078
    %6377 = vmatpush.bf16.msra.mxu0 %v6074
    %6378 = vmatpush.bf16.msra.mxu0 %v6070
    %6379 = vmatpush.bf16.msra.mxu0 %v6066
    %6380 = vmatpush.bf16.msra.mxu0 %v6062
    %6381 = vmatmul.bf16.gmra.mxu0 %v5535
    %v6382 = vpop.f32.mrf.mxu0
    %v6383 = vadd.f32 %v5670, %v6382
    %v6384 = vpop.f32.mrf.mxu0
    %v6385 = vadd.f32 %v5670, %v6384
    %6386 = vdwg.mxu0
    %6387 = vmatpush.bf16.msra.mxu0 %v6122
    %6388 = vmatpush.bf16.msra.mxu0 %v6118
    %6389 = vmatpush.bf16.msra.mxu0 %v6114
    %6390 = vmatpush.bf16.msra.mxu0 %v6110
    %6391 = vmatpush.bf16.msra.mxu0 %v6106
    %6392 = vmatpush.bf16.msra.mxu0 %v6102
    %6393 = vmatpush.bf16.msra.mxu0 %v6098
    %6394 = vmatpush.bf16.msra.mxu0 %v6094
    %6395 = vmatmul.bf16.gmra.mxu0 %v5536
    %v6396 = vpop.f32.mrf.mxu0
    %v6397 = vadd.f32 %v6383, %v6396
    %v6398 = vpop.f32.mrf.mxu0
    %v6399 = vadd.f32 %v6385, %v6398
    %6400 = vdwg.mxu0
    %6401 = vmatpush.bf16.msra.mxu0 %v6154
    %6402 = vmatpush.bf16.msra.mxu0 %v6150
    %6403 = vmatpush.bf16.msra.mxu0 %v6146
    %6404 = vmatpush.bf16.msra.mxu0 %v6142
    %6405 = vmatpush.bf16.msra.mxu0 %v6138
    %6406 = vmatpush.bf16.msra.mxu0 %v6134
    %6407 = vmatpush.bf16.msra.mxu0 %v6130
    %6408 = vmatpush.bf16.msra.mxu0 %v6126
    %6409 = vmatmul.bf16.gmra.mxu0 %v5537
    %v6410 = vpop.f32.mrf.mxu0
    %v6411 = vadd.f32 %v6397, %v6410
    %v6412 = vpop.f32.mrf.mxu0
    %v6413 = vadd.f32 %v6399, %v6412
    %6414 = vdwg.mxu0
    %6415 = vmatpush.bf16.msra.mxu0 %v6186
    %6416 = vmatpush.bf16.msra.mxu0 %v6182
    %6417 = vmatpush.bf16.msra.mxu0 %v6178
    %6418 = vmatpush.bf16.msra.mxu0 %v6174
    %6419 = vmatpush.bf16.msra.mxu0 %v6170
    %6420 = vmatpush.bf16.msra.mxu0 %v6166
    %6421 = vmatpush.bf16.msra.mxu0 %v6162
    %6422 = vmatpush.bf16.msra.mxu0 %v6158
    %6423 = vmatmul.bf16.gmra.mxu0 %v5538
    %v6424 = vpop.f32.mrf.mxu0
    %v6425 = vadd.f32 %v6411, %v6424
    %v6426 = vpop.f32.mrf.mxu0
    %v6427 = vadd.f32 %v6413, %v6426
    %6428 = vdwg.mxu0
    %6429 = vmatpush.bf16.msra.mxu0 %v6091
    %6430 = vmatpush.bf16.msra.mxu0 %v6087
    %6431 = vmatpush.bf16.msra.mxu0 %v6083
    %6432 = vmatpush.bf16.msra.mxu0 %v6079
    %6433 = vmatpush.bf16.msra.mxu0 %v6075
    %6434 = vmatpush.bf16.msra.mxu0 %v6071
    %6435 = vmatpush.bf16.msra.mxu0 %v6067
    %6436 = vmatpush.bf16.msra.mxu0 %v6063
    %6437 = vmatmul.bf16.gmra.mxu0 %v5535
    %v6438 = vpop.f32.mrf.mxu0
    %v6439 = vadd.f32 %v5671, %v6438
    %v6440 = vpop.f32.mrf.mxu0
    %v6441 = vadd.f32 %v5671, %v6440
    %6442 = vdwg.mxu0
    %6443 = vmatpush.bf16.msra.mxu0 %v6123
    %6444 = vmatpush.bf16.msra.mxu0 %v6119
    %6445 = vmatpush.bf16.msra.mxu0 %v6115
    %6446 = vmatpush.bf16.msra.mxu0 %v6111
    %6447 = vmatpush.bf16.msra.mxu0 %v6107
    %6448 = vmatpush.bf16.msra.mxu0 %v6103
    %6449 = vmatpush.bf16.msra.mxu0 %v6099
    %6450 = vmatpush.bf16.msra.mxu0 %v6095
    %6451 = vmatmul.bf16.gmra.mxu0 %v5536
    %v6452 = vpop.f32.mrf.mxu0
    %v6453 = vadd.f32 %v6439, %v6452
    %v6454 = vpop.f32.mrf.mxu0
    %v6455 = vadd.f32 %v6441, %v6454
    %6456 = vdwg.mxu0
    %6457 = vmatpush.bf16.msra.mxu0 %v6155
    %6458 = vmatpush.bf16.msra.mxu0 %v6151
    %6459 = vmatpush.bf16.msra.mxu0 %v6147
    %6460 = vmatpush.bf16.msra.mxu0 %v6143
    %6461 = vmatpush.bf16.msra.mxu0 %v6139
    %6462 = vmatpush.bf16.msra.mxu0 %v6135
    %6463 = vmatpush.bf16.msra.mxu0 %v6131
    %6464 = vmatpush.bf16.msra.mxu0 %v6127
    %6465 = vmatmul.bf16.gmra.mxu0 %v5537
    %v6466 = vpop.f32.mrf.mxu0
    %v6467 = vadd.f32 %v6453, %v6466
    %v6468 = vpop.f32.mrf.mxu0
    %v6469 = vadd.f32 %v6455, %v6468
    %6470 = vdwg.mxu0
    %6471 = vmatpush.bf16.msra.mxu0 %v6187
    %6472 = vmatpush.bf16.msra.mxu0 %v6183
    %6473 = vmatpush.bf16.msra.mxu0 %v6179
    %6474 = vmatpush.bf16.msra.mxu0 %v6175
    %6475 = vmatpush.bf16.msra.mxu0 %v6171
    %6476 = vmatpush.bf16.msra.mxu0 %v6167
    %6477 = vmatpush.bf16.msra.mxu0 %v6163
    %6478 = vmatpush.bf16.msra.mxu0 %v6159
    %6479 = vmatmul.bf16.gmra.mxu0 %v5538
    %v6480 = vpop.f32.mrf.mxu0
    %v6481 = vadd.f32 %v6467, %v6480
    %v6482 = vpop.f32.mrf.mxu0
    %v6483 = vadd.f32 %v6469, %v6482
    %6484 = vdwg.mxu0
    %6485 = vmatpush.bf16.msra.mxu0 %v6092
    %6486 = vmatpush.bf16.msra.mxu0 %v6088
    %6487 = vmatpush.bf16.msra.mxu0 %v6084
    %6488 = vmatpush.bf16.msra.mxu0 %v6080
    %6489 = vmatpush.bf16.msra.mxu0 %v6076
    %6490 = vmatpush.bf16.msra.mxu0 %v6072
    %6491 = vmatpush.bf16.msra.mxu0 %v6068
    %6492 = vmatpush.bf16.msra.mxu0 %v6064
    %6493 = vmatmul.bf16.gmra.mxu0 %v5535
    %v6494 = vpop.f32.mrf.mxu0
    %v6495 = vadd.f32 %v5672, %v6494
    %v6496 = vpop.f32.mrf.mxu0
    %v6497 = vadd.f32 %v5672, %v6496
    %6498 = vdwg.mxu0
    %6499 = vmatpush.bf16.msra.mxu0 %v6124
    %6500 = vmatpush.bf16.msra.mxu0 %v6120
    %6501 = vmatpush.bf16.msra.mxu0 %v6116
    %6502 = vmatpush.bf16.msra.mxu0 %v6112
    %6503 = vmatpush.bf16.msra.mxu0 %v6108
    %6504 = vmatpush.bf16.msra.mxu0 %v6104
    %6505 = vmatpush.bf16.msra.mxu0 %v6100
    %6506 = vmatpush.bf16.msra.mxu0 %v6096
    %6507 = vmatmul.bf16.gmra.mxu0 %v5536
    %v6508 = vpop.f32.mrf.mxu0
    %v6509 = vadd.f32 %v6495, %v6508
    %v6510 = vpop.f32.mrf.mxu0
    %v6511 = vadd.f32 %v6497, %v6510
    %6512 = vdwg.mxu0
    %6513 = vmatpush.bf16.msra.mxu0 %v6156
    %6514 = vmatpush.bf16.msra.mxu0 %v6152
    %6515 = vmatpush.bf16.msra.mxu0 %v6148
    %6516 = vmatpush.bf16.msra.mxu0 %v6144
    %6517 = vmatpush.bf16.msra.mxu0 %v6140
    %6518 = vmatpush.bf16.msra.mxu0 %v6136
    %6519 = vmatpush.bf16.msra.mxu0 %v6132
    %6520 = vmatpush.bf16.msra.mxu0 %v6128
    %6521 = vmatmul.bf16.gmra.mxu0 %v5537
    %v6522 = vpop.f32.mrf.mxu0
    %v6523 = vadd.f32 %v6509, %v6522
    %v6524 = vpop.f32.mrf.mxu0
    %v6525 = vadd.f32 %v6511, %v6524
    %6526 = vdwg.mxu0
    %6527 = vmatpush.bf16.msra.mxu0 %v6188
    %6528 = vmatpush.bf16.msra.mxu0 %v6184
    %6529 = vmatpush.bf16.msra.mxu0 %v6180
    %6530 = vmatpush.bf16.msra.mxu0 %v6176
    %6531 = vmatpush.bf16.msra.mxu0 %v6172
    %6532 = vmatpush.bf16.msra.mxu0 %v6168
    %6533 = vmatpush.bf16.msra.mxu0 %v6164
    %6534 = vmatpush.bf16.msra.mxu0 %v6160
    %6535 = vmatmul.bf16.gmra.mxu0 %v5538
    %v6536 = vpop.f32.mrf.mxu0
    %v6537 = vadd.f32 %v6523, %v6536
    %v6538 = vpop.f32.mrf.mxu0
    %v6539 = vadd.f32 %v6525, %v6538
    %6540 = vdwg.mxu0
    %vm6541 = vcmp.gt.f32.partialorder %v6369, 0.0
    %vm6542 = vcmp.gt.f32.partialorder %v6425, 0.0
    %vm6543 = vcmp.gt.f32.partialorder %v6481, 0.0
    %vm6544 = vcmp.gt.f32.partialorder %v6537, 0.0
    %vm6545 = vcmp.gt.f32.partialorder %v6371, 0.0
    %vm6546 = vcmp.gt.f32.partialorder %v6427, 0.0
    %vm6547 = vcmp.gt.f32.partialorder %v6483, 0.0
    %vm6548 = vcmp.gt.f32.partialorder %v6539, 0.0
    %v6549 = vmul.f32 %v6369, 0.2
    %v6550 = vmul.f32 %v6425, 0.2
    %v6551 = vmul.f32 %v6481, 0.2
    %v6552 = vmul.f32 %v6537, 0.2
    %v6553 = vmul.f32 %v6371, 0.2
    %v6554 = vmul.f32 %v6427, 0.2
    %v6555 = vmul.f32 %v6483, 0.2
    %v6556 = vmul.f32 %v6539, 0.2
    %v6557 = vsel %vm6541, %v6369, %v6549
    %v6558 = vsel %vm6542, %v6425, %v6550
    %v6559 = vsel %vm6543, %v6481, %v6551
    %v6560 = vsel %vm6544, %v6537, %v6552
    %v6561 = vsel %vm6545, %v6371, %v6553
    %v6562 = vsel %vm6546, %v6427, %v6554
    %v6563 = vsel %vm6547, %v6483, %v6555
    %v6564 = vsel %vm6548, %v6539, %v6556
    %v6565 = vpack.c.bf16 %v6561, %v6557
    %v6566 = vpack.c.bf16 %v6562, %v6558
    %v6567 = vpack.c.bf16 %v6563, %v6559
    %v6568 = vpack.c.bf16 %v6564, %v6560
    %v6569 = vld [vmem:[%s9] sm:$0xf]
    %v6570 = vld [vmem:[%s9 + $0x4] sm:$0xf]
    %v6571 = vld [vmem:[%s9 + $0x8] sm:$0xf]
    %v6572 = vld [vmem:[%s9 + $0xc] sm:$0xf]
    %v6573 = vld [vmem:[%s9 + $0x10] sm:$0xf]
    %v6574 = vld [vmem:[%s9 + $0x14] sm:$0xf]
    %v6575 = vld [vmem:[%s9 + $0x18] sm:$0xf]
    %v6576 = vld [vmem:[%s9 + $0x1c] sm:$0xf]
    %v6577 = vld [vmem:[%s9 + $0x20] sm:$0xf]
    %v6578 = vld [vmem:[%s9 + $0x24] sm:$0xf]
    %v6579 = vld [vmem:[%s9 + $0x28] sm:$0xf]
    %v6580 = vld [vmem:[%s9 + $0x2c] sm:$0xf]
    %v6581 = vld [vmem:[%s9 + $0x30] sm:$0xf]
    %v6582 = vld [vmem:[%s9 + $0x34] sm:$0xf]
    %v6583 = vld [vmem:[%s9 + $0x38] sm:$0xf]
    %v6584 = vld [vmem:[%s9 + $0x3c] sm:$0xf]
    %v6585 = vld [vmem:[%s9 + $0x40] sm:$0xf]
    %v6586 = vld [vmem:[%s9 + $0x44] sm:$0xf]
    %v6587 = vld [vmem:[%s9 + $0x48] sm:$0xf]
    %v6588 = vld [vmem:[%s9 + $0x4c] sm:$0xf]
    %v6589 = vld [vmem:[%s9 + $0x50] sm:$0xf]
    %v6590 = vld [vmem:[%s9 + $0x54] sm:$0xf]
    %v6591 = vld [vmem:[%s9 + $0x58] sm:$0xf]
    %v6592 = vld [vmem:[%s9 + $0x5c] sm:$0xf]
    %v6593 = vld [vmem:[%s9 + $0x60] sm:$0xf]
    %v6594 = vld [vmem:[%s9 + $0x64] sm:$0xf]
    %v6595 = vld [vmem:[%s9 + $0x68] sm:$0xf]
    %v6596 = vld [vmem:[%s9 + $0x6c] sm:$0xf]
    %v6597 = vld [vmem:[%s9 + $0x70] sm:$0xf]
    %v6598 = vld [vmem:[%s9 + $0x74] sm:$0xf]
    %v6599 = vld [vmem:[%s9 + $0x78] sm:$0xf]
    %v6600 = vld [vmem:[%s9 + $0x7c] sm:$0xf]
    %v6601 = vld [vmem:[%s9 + $0x80] sm:$0xf]
    %v6602 = vld [vmem:[%s9 + $0x84] sm:$0xf]
    %v6603 = vld [vmem:[%s9 + $0x88] sm:$0xf]
    %v6604 = vld [vmem:[%s9 + $0x8c] sm:$0xf]
    %v6605 = vld [vmem:[%s9 + $0x90] sm:$0xf]
    %v6606 = vld [vmem:[%s9 + $0x94] sm:$0xf]
    %v6607 = vld [vmem:[%s9 + $0x98] sm:$0xf]
    %v6608 = vld [vmem:[%s9 + $0x9c] sm:$0xf]
    %v6609 = vld [vmem:[%s9 + $0xa0] sm:$0xf]
    %v6610 = vld [vmem:[%s9 + $0xa4] sm:$0xf]
    %v6611 = vld [vmem:[%s9 + $0xa8] sm:$0xf]
    %v6612 = vld [vmem:[%s9 + $0xac] sm:$0xf]
    %v6613 = vld [vmem:[%s9 + $0xb0] sm:$0xf]
    %v6614 = vld [vmem:[%s9 + $0xb4] sm:$0xf]
    %v6615 = vld [vmem:[%s9 + $0xb8] sm:$0xf]
    %v6616 = vld [vmem:[%s9 + $0xbc] sm:$0xf]
    %v6617 = vld [vmem:[%s9 + $0xc0] sm:$0xf]
    %v6618 = vld [vmem:[%s9 + $0xc4] sm:$0xf]
    %v6619 = vld [vmem:[%s9 + $0xc8] sm:$0xf]
    %v6620 = vld [vmem:[%s9 + $0xcc] sm:$0xf]
    %v6621 = vld [vmem:[%s9 + $0xd0] sm:$0xf]
    %v6622 = vld [vmem:[%s9 + $0xd4] sm:$0xf]
    %v6623 = vld [vmem:[%s9 + $0xd8] sm:$0xf]
    %v6624 = vld [vmem:[%s9 + $0xdc] sm:$0xf]
    %v6625 = vld [vmem:[%s9 + $0xe0] sm:$0xf]
    %v6626 = vld [vmem:[%s9 + $0xe4] sm:$0xf]
    %v6627 = vld [vmem:[%s9 + $0xe8] sm:$0xf]
    %v6628 = vld [vmem:[%s9 + $0xec] sm:$0xf]
    %v6629 = vld [vmem:[%s9 + $0xf0] sm:$0xf]
    %v6630 = vld [vmem:[%s9 + $0xf4] sm:$0xf]
    %v6631 = vld [vmem:[%s9 + $0xf8] sm:$0xf]
    %v6632 = vld [vmem:[%s9 + $0xfc] sm:$0xf]
    %v6633 = vld [vmem:[#allocation2] sm:$0x1]
    %v6635 = vperm.slane %v6633, 0
    %v6701 = vunpack.c.l.b16 %v6569
    %v6702 = vunpack.c.l.b16 %v6570
    %v6703 = vunpack.c.l.b16 %v6571
    %v6704 = vunpack.c.l.b16 %v6572
    %v6705 = vunpack.c.l.b16 %v6573
    %v6706 = vunpack.c.l.b16 %v6574
    %v6707 = vunpack.c.l.b16 %v6575
    %v6708 = vunpack.c.l.b16 %v6576
    %v6709 = vunpack.c.l.b16 %v6577
    %v6710 = vunpack.c.l.b16 %v6578
    %v6711 = vunpack.c.l.b16 %v6579
    %v6712 = vunpack.c.l.b16 %v6580
    %v6713 = vunpack.c.l.b16 %v6581
    %v6714 = vunpack.c.l.b16 %v6582
    %v6715 = vunpack.c.l.b16 %v6583
    %v6716 = vunpack.c.l.b16 %v6584
    %v6717 = vunpack.c.l.b16 %v6585
    %v6718 = vunpack.c.l.b16 %v6586
    %v6719 = vunpack.c.l.b16 %v6587
    %v6720 = vunpack.c.l.b16 %v6588
    %v6721 = vunpack.c.l.b16 %v6589
    %v6722 = vunpack.c.l.b16 %v6590
    %v6723 = vunpack.c.l.b16 %v6591
    %v6724 = vunpack.c.l.b16 %v6592
    %v6725 = vunpack.c.l.b16 %v6593
    %v6726 = vunpack.c.l.b16 %v6594
    %v6727 = vunpack.c.l.b16 %v6595
    %v6728 = vunpack.c.l.b16 %v6596
    %v6729 = vunpack.c.l.b16 %v6597
    %v6730 = vunpack.c.l.b16 %v6598
    %v6731 = vunpack.c.l.b16 %v6599
    %v6732 = vunpack.c.l.b16 %v6600
    %v6733 = vunpack.c.l.b16 %v6601
    %v6734 = vunpack.c.l.b16 %v6602
    %v6735 = vunpack.c.l.b16 %v6603
    %v6736 = vunpack.c.l.b16 %v6604
    %v6737 = vunpack.c.l.b16 %v6605
    %v6738 = vunpack.c.l.b16 %v6606
    %v6739 = vunpack.c.l.b16 %v6607
    %v6740 = vunpack.c.l.b16 %v6608
    %v6741 = vunpack.c.l.b16 %v6609
    %v6742 = vunpack.c.l.b16 %v6610
    %v6743 = vunpack.c.l.b16 %v6611
    %v6744 = vunpack.c.l.b16 %v6612
    %v6745 = vunpack.c.l.b16 %v6613
    %v6746 = vunpack.c.l.b16 %v6614
    %v6747 = vunpack.c.l.b16 %v6615
    %v6748 = vunpack.c.l.b16 %v6616
    %v6749 = vunpack.c.l.b16 %v6617
    %v6750 = vunpack.c.l.b16 %v6618
    %v6751 = vunpack.c.l.b16 %v6619
    %v6752 = vunpack.c.l.b16 %v6620
    %v6753 = vunpack.c.l.b16 %v6621
    %v6754 = vunpack.c.l.b16 %v6622
    %v6755 = vunpack.c.l.b16 %v6623
    %v6756 = vunpack.c.l.b16 %v6624
    %v6757 = vunpack.c.l.b16 %v6625
    %v6758 = vunpack.c.l.b16 %v6626
    %v6759 = vunpack.c.l.b16 %v6627
    %v6760 = vunpack.c.l.b16 %v6628
    %v6761 = vunpack.c.l.b16 %v6629
    %v6762 = vunpack.c.l.b16 %v6630
    %v6763 = vunpack.c.l.b16 %v6631
    %v6764 = vunpack.c.l.b16 %v6632
    %v6765 = vpack.c.b16 %v6702, %v6701
    %v6766 = vpack.c.b16 %v6704, %v6703
    %v6767 = vpack.c.b16 %v6706, %v6705
    %v6768 = vpack.c.b16 %v6708, %v6707
    %v6769 = vpack.c.b16 %v6710, %v6709
    %v6770 = vpack.c.b16 %v6712, %v6711
    %v6771 = vpack.c.b16 %v6714, %v6713
    %v6772 = vpack.c.b16 %v6716, %v6715
    %v6773 = vpack.c.b16 %v6718, %v6717
    %v6774 = vpack.c.b16 %v6720, %v6719
    %v6775 = vpack.c.b16 %v6722, %v6721
    %v6776 = vpack.c.b16 %v6724, %v6723
    %v6777 = vpack.c.b16 %v6726, %v6725
    %v6778 = vpack.c.b16 %v6728, %v6727
    %v6779 = vpack.c.b16 %v6730, %v6729
    %v6780 = vpack.c.b16 %v6732, %v6731
    %v6781 = vpack.c.b16 %v6734, %v6733
    %v6782 = vpack.c.b16 %v6736, %v6735
    %v6783 = vpack.c.b16 %v6738, %v6737
    %v6784 = vpack.c.b16 %v6740, %v6739
    %v6785 = vpack.c.b16 %v6742, %v6741
    %v6786 = vpack.c.b16 %v6744, %v6743
    %v6787 = vpack.c.b16 %v6746, %v6745
    %v6788 = vpack.c.b16 %v6748, %v6747
    %v6789 = vpack.c.b16 %v6750, %v6749
    %v6790 = vpack.c.b16 %v6752, %v6751
    %v6791 = vpack.c.b16 %v6754, %v6753
    %v6792 = vpack.c.b16 %v6756, %v6755
    %v6793 = vpack.c.b16 %v6758, %v6757
    %v6794 = vpack.c.b16 %v6760, %v6759
    %v6795 = vpack.c.b16 %v6762, %v6761
    %v6796 = vpack.c.b16 %v6764, %v6763
    %6829 = vmatpush.bf16.msra.mxu0 %v6772
    %6830 = vmatpush.bf16.msra.mxu0 %v6771
    %6831 = vmatpush.bf16.msra.mxu0 %v6770
    %6832 = vmatpush.bf16.msra.mxu0 %v6769
    %6833 = vmatpush.bf16.msra.mxu0 %v6768
    %6834 = vmatpush.bf16.msra.mxu0 %v6767
    %6835 = vmatpush.bf16.msra.mxu0 %v6766
    %6836 = vmatpush.bf16.msra.mxu0 %v6765
    %6837 = vmatmul.bf16.gmra.mxu0 %v6565
    %v6838 = vpop.f32.mrf.mxu0
    %v6839 = vadd.f32 %v6635, %v6838
    %v6840 = vpop.f32.mrf.mxu0
    %v6841 = vadd.f32 %v6635, %v6840
    %6842 = vdwg.mxu0
    %6843 = vmatpush.bf16.msra.mxu0 %v6780
    %6844 = vmatpush.bf16.msra.mxu0 %v6779
    %6845 = vmatpush.bf16.msra.mxu0 %v6778
    %6846 = vmatpush.bf16.msra.mxu0 %v6777
    %6847 = vmatpush.bf16.msra.mxu0 %v6776
    %6848 = vmatpush.bf16.msra.mxu0 %v6775
    %6849 = vmatpush.bf16.msra.mxu0 %v6774
    %6850 = vmatpush.bf16.msra.mxu0 %v6773
    %6851 = vmatmul.bf16.gmra.mxu0 %v6566
    %v6852 = vpop.f32.mrf.mxu0
    %v6853 = vadd.f32 %v6839, %v6852
    %v6854 = vpop.f32.mrf.mxu0
    %v6855 = vadd.f32 %v6841, %v6854
    %6856 = vdwg.mxu0
    %6857 = vmatpush.bf16.msra.mxu0 %v6788
    %6858 = vmatpush.bf16.msra.mxu0 %v6787
    %6859 = vmatpush.bf16.msra.mxu0 %v6786
    %6860 = vmatpush.bf16.msra.mxu0 %v6785
    %6861 = vmatpush.bf16.msra.mxu0 %v6784
    %6862 = vmatpush.bf16.msra.mxu0 %v6783
    %6863 = vmatpush.bf16.msra.mxu0 %v6782
    %6864 = vmatpush.bf16.msra.mxu0 %v6781
    %6865 = vmatmul.bf16.gmra.mxu0 %v6567
    %v6866 = vpop.f32.mrf.mxu0
    %v6867 = vadd.f32 %v6853, %v6866
    %v6868 = vpop.f32.mrf.mxu0
    %v6869 = vadd.f32 %v6855, %v6868
    %6870 = vdwg.mxu0
    %6871 = vmatpush.bf16.msra.mxu0 %v6796
    %6872 = vmatpush.bf16.msra.mxu0 %v6795
    %6873 = vmatpush.bf16.msra.mxu0 %v6794
    %6874 = vmatpush.bf16.msra.mxu0 %v6793
    %6875 = vmatpush.bf16.msra.mxu0 %v6792
    %6876 = vmatpush.bf16.msra.mxu0 %v6791
    %6877 = vmatpush.bf16.msra.mxu0 %v6790
    %6878 = vmatpush.bf16.msra.mxu0 %v6789
    %6879 = vmatmul.bf16.gmra.mxu0 %v6568
    %v6880 = vpop.f32.mrf.mxu0
    %v6881 = vadd.f32 %v6867, %v6880
    %v6882 = vpop.f32.mrf.mxu0
    %v6883 = vadd.f32 %v6869, %v6882
    %6884 = vdwg.mxu0
    %v6885 = vand.u32 2147483647, %v6881
    %v6886 = vand.u32 2147483647, %v6883
    %v6887 = vsub.f32 0.0, %v6885
    %v6888 = vsub.f32 0.0, %v6886
    %v6889 = vmul.f32 %v6887, 1.442695
    %v6890 = vpow.pop %v6889
    %v6891 = vmul.f32 %v6888, 1.442695
    %v6892 = vpow.pop %v6891
    %vm6893 = vcmp.ge.f32.partialorder %v6881, 0.0
    %vm6894 = vcmp.ge.f32.partialorder %v6883, 0.0
    %v6895 = vadd.f32 %v6890, 1.0
    %v6896 = vadd.f32 %v6892, 1.0
    %v6897 = vrcp.pop %v6895
    %v6898 = vmul.f32 %v6895, %v6897
    %v6899 = vsub.f32 1.0, %v6898
    %v6900 = vmul.f32 %v6897, %v6899
    %v6901 = vadd.f32 %v6897, %v6900
    %vm6902 = vweird.f32 %v6895
    %vm6903 = vweird.f32 %v6897
    %vm6904 = vmor %vm6902, %vm6903
    %v6905 = vsel %vm6904, %v6897, %v6901
    %v6906 = vand.u32 2147483647, %v6895
    %vm6907 = vcmp.eq.f32.partialorder %v6906, 8.507059e+37
    %v6908 = vand.u32 %v6895, 2147483648
    %v6909 = vor.u32 1.1754944e-38, %v6908
    %v6910 = vsel %vm6907, %v6909, %v6905
    %v6911 = vmul.f32 1.0, %v6910
    %v6912 = vrcp.pop %v6896
    %v6913 = vmul.f32 %v6896, %v6912
    %v6914 = vsub.f32 1.0, %v6913
    %v6915 = vmul.f32 %v6912, %v6914
    %v6916 = vadd.f32 %v6912, %v6915
    %vm6917 = vweird.f32 %v6896
    %vm6918 = vweird.f32 %v6912
    %vm6919 = vmor %vm6917, %vm6918
    %v6920 = vsel %vm6919, %v6912, %v6916
    %v6921 = vand.u32 2147483647, %v6896
    %vm6922 = vcmp.eq.f32.partialorder %v6921, 8.507059e+37
    %v6923 = vand.u32 %v6896, 2147483648
    %v6924 = vor.u32 1.1754944e-38, %v6923
    %v6925 = vsel %vm6922, %v6924, %v6920
    %v6926 = vmul.f32 1.0, %v6925
    %v6927 = vmul.f32 %v6890, %v6910
    %v6928 = vmul.f32 %v6892, %v6925
    %v6929 = vsel %vm6893, %v6911, %v6927
    %v6930 = vsel %vm6894, %v6926, %v6928
    %vm6931 = vcmask 7168
    %6932 = vst.msk [vmem:[%s11] sm:$0xff] %vm6931, %v6929
    %6933 = vst.msk [vmem:[%s11 + $0x8] sm:$0xff] %vm6931, %v6930
    // Predicated region
    $region74: #{discriminator_forward.1} parent=1 // pred_check
      _
    $region75: #{discriminator_forward.1} parent=1 // pred_check_branch
      %6935 = sbr.rel (0) target = $region77
    $region76: #{discriminator_forward.1} parent=1 // pred_region
      _
    $region77: #{discriminator_forward.1} parent=1 // pred_fallthru
      _
    // Predicated region
    $region78: #{discriminator_forward.1} parent=1 // pred_check
      _
    $region79: #{discriminator_forward.1} parent=1 // pred_check_branch
      %6937 = sbr.rel (0) target = $region81
    $region80: #{discriminator_forward.1} parent=1 // pred_region
      _
    $region81: #{discriminator_forward.1} parent=1 // pred_fallthru
      _
    %6938 = vsyncpa [#allocation4], 1
    %6939 = vsyncpa [#allocation6], 1
    %6940 = vsyncpa [#allocation9], 1
    %6941 = vsyncpa [#allocation12], 1

</llo_original>
